<compile_context>
chip_gen: v7x
topology: tpu7x:2x2x1
jax: 0.10.0
libtpu: 0.0.40
codegen_flags: <defaults>
</compile_context>

<pallas_src>
import jax
import jax.numpy as jnp
from jax import lax
from jax.experimental import pallas as pl
from jax.experimental.pallas import tpu as pltpu

EPS = 0.01

# MXU input dtype for the D-contraction matmuls (block Grams and the final
# projection).  bf16 halves HBM traffic for the mem-bound projection and is the
# MXU-native input dtype on v5e/v6e/v7x; accumulation stays f32 via
# preferred_element_type, and the (bs x bs) Cholesky, forward substitution and
# Frechet lerp stay f32.  Set to jnp.float32 for bit-closer reference parity.
MXU_INPUT_DTYPE = jnp.bfloat16


def _vmem_limit_bytes():
    """Per-generation VMEM request: ~3/4 of physical VMEM (v5e/v6e: 96 MiB of
    128 MiB; v7x: 48 MiB of 64 MiB), leaving headroom for pipeline buffers and
    Mosaic-internal scratch instead of one hard-coded number for all chips."""
    cap = 64 * 1024 * 1024                      # conservative fallback (= v7x physical)
    try:
        cap = int(getattr(pltpu.get_tpu_info(), "vmem_capacity_bytes", cap))
    except Exception:
        pass
    return (3 * cap) // 4


# --------------------- tiny in-kernel linear algebra ----------------------- #

def _cholesky_lower(a, diag_eps):
    """Unrolled Cholesky:  L L^T = a + diag_eps*I   (a: (n, n) f32, n small/static).
    The eps regularization is folded onto the diagonal (no eps*I materialized)."""
    n = a.shape[0]
    col = lax.broadcasted_iota(jnp.int32, (n, n), 1)
    rowv = lax.broadcasted_iota(jnp.int32, (n, 1), 0)
    l = jnp.zeros_like(a)
    for j in range(n):
        lj = l[j:j + 1, :]                           # row j of L (cols >= j still 0)
        s = jnp.sum(l * lj, axis=1, keepdims=True)   # s[i] = sum_{k<j} L[i,k] L[j,k]
        c = a[:, j:j + 1] - s                        # (n, 1)
        djj = c[j:j + 1, :] + diag_eps               # (1, 1) pivot (+eps on diagonal)
        inv_sqrt = lax.rsqrt(djj)
        vals = c * inv_sqrt                          # rows i > j
        vals = jnp.where(rowv == j, djj * inv_sqrt, vals)    # row j -> sqrt(pivot)
        vals = jnp.where(rowv >= j, vals, 0.0)               # rows i < j -> 0
        l = jnp.where(col == j, vals, l)             # write column j
    return l


def _forward_substitute_rows(l, v):
    """Solve L @ Y = V for Y, V a (n, D) row matrix, L (n, n) lower-triangular.

    Unrolled scalar x row AXPYs on the VPU (D-wide rows) -- replaces the previous
    triangular inverse + chain of serialized (1,n)x(n,n) MXU pushes."""
    n = v.shape[0]
    rows = []
    for k in range(n):
        acc = v[k:k + 1, :]
        for j in range(k):
            acc = acc - l[k:k + 1, j:j + 1] * rows[j]
        rows.append(acc * (1.0 / l[k:k + 1, k:k + 1]))
    # Assemble the (n, D) result with sublane-row selects (cheap VPU work, avoids
    # an unaligned sublane concatenate).
    rowv = lax.broadcasted_iota(jnp.int32, (n, 1), 0)
    y = jnp.zeros_like(v)
    for k in range(n):
        y = jnp.where(rowv == k, rows[k], y)
    return y


def _chol_retract(v):
    """Cholesky retraction of a row matrix v: (n, D).

    Returns L^{-1} v (f32) with L L^T = v v^T + EPS*I, i.e. the transposed
    `chol_orthogonalize` / Frechet-mean update of the PyTorch reference, using a
    forward substitution instead of a general triangular inverse.  The D-wide
    Gram runs on the MXU in MXU_INPUT_DTYPE with f32 accumulation."""
    vh = v.astype(MXU_INPUT_DTYPE)
    vv = lax.dot_general(vh, vh, dimension_numbers=(((1,), (1,)), ((), ())),
                         preferred_element_type=jnp.float32)     # (n, n) Gram over D
    l = _cholesky_lower(vv, EPS)
    return _forward_substitute_rows(l, v.astype(jnp.float32))


# ------------------------------ Pallas kernels ------------------------------ #

def _orth_kernel(b_ref, u_ref):
    """Independent per-block orthogonalization: U_i^T = L^{-1} B_i."""
    u_ref[...] = _chol_retract(b_ref[...]).astype(u_ref.dtype)


def _frechet_kernel(w_ref, u_ref, fm_ref):
    """Weighted iterative Frechet mean, serial over blocks.

    fm^T is carried directly in the output block (constant block index across the
    grid -> VMEM-resident accumulator; written back to HBM once at the end)."""
    i = pl.program_id(0)
    u = u_ref[...].astype(jnp.float32)

    @pl.when(i == 0)
    def _init():
        fm_ref[...] = u

    @pl.when(i > 0)
    def _step():
        w = w_ref[i - 1]                             # scalar weight from SMEM
        mt = (1.0 - w) * fm_ref[...] + w * u         # M^T (f32 lerp on the VPU)
        fm_ref[...] = _chol_retract(mt)              # fm^T <- L^{-1} M^T


def grassmann_subspace(blocks, weights, vmem_limit):
    """blocks: (nb, bs, D) in MXU_INPUT_DTYPE, weights: (nb,) f32 -> fm^T (bs, D) f32."""
    nb, bs, d = blocks.shape

    # 1) Per-block orthogonalization.  "parallel" grid so the independent blocks
    #    can shard across both v7x TensorCores; the U^T intermediate stays in the
    #    MXU input dtype (bf16) to keep its extra HBM round trip cheap.
    # TODO(synk): for very large D on v7x, chunk the Gram over D (inner
    # emit_pipeline) instead of holding a whole (bs, D) block per buffer.
    u = pl.pallas_call(
        _orth_kernel,
        out_shape=jax.ShapeDtypeStruct((nb, bs, d), blocks.dtype),
        grid=(nb,),
        in_specs=[pl.BlockSpec((pl.Squeezed(), bs, d), lambda i: (i, 0, 0))],
        out_specs=pl.BlockSpec((pl.Squeezed(), bs, d), lambda i: (i, 0, 0)),
        compiler_params=pltpu.CompilerParams(
            dimension_semantics=("parallel",),
            vmem_limit_bytes=vmem_limit),
    )(blocks)

    # 2) Serial weighted Frechet mean; fm^T carried in the output block itself.
    return pl.pallas_call(
        _frechet_kernel,
        out_shape=jax.ShapeDtypeStruct((bs, d), jnp.float32),
        grid=(nb,),
        in_specs=[
            pl.BlockSpec(memory_space=pltpu.MemorySpace.SMEM),          # weights scalars
            pl.BlockSpec((pl.Squeezed(), bs, d), lambda i: (i, 0, 0)),  # U_i^T
        ],
        out_specs=pl.BlockSpec((bs, d), lambda i: (0, 0)),   # constant -> resident carry
        compiler_params=pltpu.CompilerParams(
            dimension_semantics=("arbitrary",),               # serial Frechet carry
            vmem_limit_bytes=vmem_limit),
    )(weights, u)


def _proj_kernel(x_ref, fmt_ref, o_ref):
    """Full-D row-tile projection: o = X_tile @ fm (contract over D), no K axis."""
    o_ref[...] = lax.dot_general(
        x_ref[...], fmt_ref[...],
        dimension_numbers=(((1,), (1,)), ((), ())),
        preferred_element_type=jnp.float32)


def _proj_kernel_ktiled(x_ref, fmt_ref, o_ref):
    """K-tiled fallback for very large D: accumulate in the resident f32 output
    block (constant block index across the inner 'arbitrary' K axis)."""
    @pl.when(pl.program_id(1) == 0)
    def _zero():
        o_ref[...] = jnp.zeros_like(o_ref)

    o_ref[...] += lax.dot_general(
        x_ref[...], fmt_ref[...],
        dimension_numbers=(((1,), (1,)), ((), ())),
        preferred_element_type=jnp.float32)


def _plan_proj_tiles(m, d, nf, budget_bytes, elem_bytes):
    """Pick (tm, tk) for the projection.

    The projection is HBM-bound on streaming X (~2*nf flops/byte, nf tiny), so
    prefer large row tiles (512-1024 reach ~85% of HBM roofline vs ~60% at 256)
    and keep the whole D resident whenever it fits: tk == d drops the K grid
    axis, the accumulator branches, and any re-fetch of fm^T."""
    def fits(tm, tk):
        x_tile = 2 * tm * tk * elem_bytes             # double-buffered X tile
        fm_tile = 2 * nf * tk * elem_bytes            # fm^T tile
        out = 2 * tm * max(nf, 128) * 4               # lane-padded f32 out buffers
        return x_tile + fm_tile + out <= budget_bytes

    m8 = -(-m // 8) * 8
    row_cands = sorted({t for t in (1024, 512, 256, 128) if t < m8} | {min(m8, 1024)},
                       reverse=True)

    for tm in row_cands:                              # pass 1: whole-D tiles
        if fits(tm, d):
            return tm, d
    for tm in row_cands:                              # pass 2: K-tile for huge D
        for tk in range(4096, 127, -128):
            if d % tk == 0 and fits(tm, tk):
                return tm, tk
    # TODO(synk): for huge non-128-divisible D that overflows VMEM, pad D or run
    # an inner emit_pipeline over D chunks instead of this full-extent fallback.
    return row_cands[-1], d


def temporal_projection(x, fmt, vmem_limit):
    """x: (in_frames, D), fmt: (out_frames, D) -> x @ fmt^T : (in_frames, out_frames) f32."""
    m, d = x.shape
    nf = fmt.shape[0]
    fmt = fmt.astype(x.dtype)                         # MXU input dtype (tiny array)
    tm, tk = _plan_proj_tiles(m, d, nf, vmem_limit - (4 << 20), x.dtype.itemsize)

    m_pad = -(-m // tm) * tm                          # cdiv grid + zero-padded rows
    if m_pad != m:
        x = jnp.pad(x, ((0, m_pad - m), (0, 0)))

    # Note: the (tm, nf) output block has lane width nf << 128 (masked stores),
    # but padding fm^T to 128 rows would multiply the *output* HBM bytes by
    # 128/nf, which is a net loss for the mem-bound regime at moderate D.
    if tk == d:
        out = pl.pallas_call(
            _proj_kernel,
            out_shape=jax.ShapeDtypeStruct((m_pad, nf), jnp.float32),
            grid=(m_pad // tm,),
            in_specs=[pl.BlockSpec((tm, d), lambda i: (i, 0)),
                      pl.BlockSpec((nf, d), lambda i: (0, 0))],   # fm^T stays resident
            out_specs=pl.BlockSpec((tm, nf), lambda i: (i, 0)),
            compiler_params=pltpu.CompilerParams(
                dimension_semantics=("parallel",),                # megacore-shardable rows
                vmem_limit_bytes=vmem_limit),
        )(x, fmt)
    else:
        out = pl.pallas_call(
            _proj_kernel_ktiled,
            out_shape=jax.ShapeDtypeStruct((m_pad, nf), jnp.float32),
            grid=(m_pad // tm, d // tk),
            in_specs=[pl.BlockSpec((tm, tk), lambda i, k: (i, k)),
                      pl.BlockSpec((nf, tk), lambda i, k: (0, k))],
            out_specs=pl.BlockSpec((tm, nf), lambda i, k: (i, 0)),
            compiler_params=pltpu.CompilerParams(
                dimension_semantics=("parallel", "arbitrary"),
                vmem_limit_bytes=vmem_limit),
        )(x, fmt)
    return out[:m] if m_pad != m else out


# -------------------------------- module ------------------------------------ #

class GrassmannAverageProjection:
    """JAX/Pallas forward pass of the PyTorch GrassmannAverageProjection module."""

    def __init__(self, in_frames, out_frames):
        self.out_frames = out_frames
        self.num_blocks = in_frames // out_frames
        # Matches the PyTorch parameter init: [1/2, 1/3, ..., 1/(num_blocks+1)].
        self.weights = jnp.array([1.0 / n for n in range(2, self.num_blocks + 2)],
                                 dtype=jnp.float32)
        self.weight_reference = float(sum(1.0 / n
                                          for n in range(2, self.num_blocks + 2)))
        self._vmem_limit = _vmem_limit_bytes()        # queried once, outside jit

    def __call__(self, x):
        in_frames, d = x.shape
        bs = in_frames // self.num_blocks
        xh = x.astype(MXU_INPUT_DTYPE)                # cast once: halves HBM traffic
        blocks = xh[: self.num_blocks * bs].reshape(self.num_blocks, bs, d)
        # TODO(synk): ops.weightedIterativeStatistic / weightedFrechetMeanUpdate are
        # not provided by the reference; implemented as the incremental weighted
        # Grassmann mean  fm <- chol_retract((1 - w_i) * fm + w_i * U_i).
        fmt = grassmann_subspace(blocks, self.weights, self._vmem_limit)   # fm^T (bs, D)
        proj = temporal_projection(xh, fmt, self._vmem_limit)              # (in_frames, bs)
        weight_penalty = (self.weight_reference
                          - jnp.sum(jnp.abs(self.weights))) ** 2
        return proj, weight_penalty


# ---------------------- pure-jnp reference (for checking) ------------------- #

def _reference_forward(x, num_blocks, weights, weight_reference):
    """Direct jnp transcription of the PyTorch math (no Pallas, f32)."""
    in_frames, d = x.shape
    bs = in_frames // num_blocks
    eye = EPS * jnp.eye(bs, dtype=jnp.float32)

    def chol_orth(b):                                   # b: (bs, D) row matrix
        vv = b @ b.T + eye
        r = jnp.linalg.cholesky(vv).T                   # upper factor (potrf upper=True)
        return b.T @ jnp.linalg.inv(r)                  # (D, bs)

    fm = chol_orth(x[:bs])
    for i in range(1, num_blocks):
        u = chol_orth(x[i * bs:(i + 1) * bs])
        w = weights[i - 1]
        m = (1.0 - w) * fm + w * u
        g = m.T @ m + eye
        r = jnp.linalg.cholesky(g).T
        fm = m @ jnp.linalg.inv(r)
    proj = x @ fm
    penalty = (weight_reference - jnp.sum(jnp.abs(weights))) ** 2
    return proj, penalty


# ---------------------------------- main ------------------------------------ #

if __name__ == "__main__":
    in_frames, out_frames, D = 32, 8, 256               # num_blocks = 4, block_size = 8
    key = jax.random.PRNGKey(0)
    x = jax.random.normal(key, (in_frames, D), dtype=jnp.float32)

    model = GrassmannAverageProjection(in_frames, out_frames)
    fwd = jax.jit(model.__call__)
    proj, penalty = fwd(x)
    jax.block_until_ready((proj, penalty))

    assert proj.shape == (in_frames, out_frames), proj.shape
    assert proj.dtype == jnp.float32
    assert penalty.shape == ()

    # Numerical sanity check against the pure-jnp transcription of the PyTorch
    # math.  The kernel feeds the MXU bf16 inputs (f32 accumulation), so compare
    # with a relative-Frobenius bound plus a loose elementwise bound.
    ref_proj, ref_pen = jax.jit(
        lambda v: _reference_forward(v, model.num_blocks, model.weights,
                                     model.weight_reference))(x)
    rel = jnp.linalg.norm(proj - ref_proj) / jnp.linalg.norm(ref_proj)
    max_abs = jnp.max(jnp.abs(proj - ref_proj))
    assert float(rel) < 3e-2, float(rel)
    assert float(max_abs) < 1.5e-1, float(max_abs)
    assert jnp.allclose(penalty, ref_pen, rtol=1e-5, atol=1e-6)

    print("KERNEL_OK")
</pallas_src>

<mosaic_0001>
module attributes {stable_mosaic.version = 11 : i64} {
  func.func @_orth_kernel(%arg0: i32, %arg1: memref<1x8x256xbf16, #tpu.memory_space<vmem>>, %arg2: memref<1x8x256xbf16, #tpu.memory_space<vmem>>) attributes {dimension_semantics = [#tpu.dimension_semantics<parallel>], iteration_bounds = array<i64: 4>, scalar_prefetch = 0 : i64, scratch_operands = 0 : i64, tpu.core_type = #tpu.core_type<tc>, window_params = [{transform_indices = @transform_0, window_bounds = array<i64: 1, 8, 256>}, {transform_indices = @transform_1, window_bounds = array<i64: 1, 8, 256>}]} {
    %c0 = arith.constant 0 : index
    %c0_0 = arith.constant 0 : index
    %c0_1 = arith.constant 0 : index
    %0 = vector.load %arg1[%c0, %c0_0, %c0_1] : memref<1x8x256xbf16, #tpu.memory_space<vmem>>, vector<1x8x256xbf16>
    %1 = vector.shape_cast %0 : vector<1x8x256xbf16> to vector<8x256xbf16>
    %cst = arith.constant dense<0.000000e+00> : vector<8x8xf32>
    %2 = tpu.matmul %1, %1, %cst {dimension_numbers = #tpu.dot_dimension_numbers<[1], [1], [0], [0], [0, 0, 1, 0], [], []>} : vector<8x256xbf16>, vector<8x256xbf16>, vector<8x8xf32> -> vector<8x8xf32>
    %3 = tpu.iota {dimensions = array<i32: 1>} : vector<8x8xi32>
    %4 = tpu.iota {dimensions = array<i32: 0>} : vector<8x1xi32>
    %cst_2 = arith.constant 0.000000e+00 : f32
    %5 = vector.broadcast %cst_2 : f32 to vector<8x8xf32>
    %6 = vector.extract_strided_slice %5 {offsets = [0, 0], sizes = [1, 8], strides = [1, 1]} : vector<8x8xf32> to vector<1x8xf32>
    %7 = vector.broadcast %6 : vector<1x8xf32> to vector<8x8xf32>
    %8 = arith.mulf %5, %7 : vector<8x8xf32>
    %cst_3 = arith.constant dense<0.000000e+00> : vector<8xf32>
    %9 = vector.multi_reduction <add>, %8, %cst_3 [1] : vector<8x8xf32> to vector<8xf32>
    %10 = vector.shape_cast %9 : vector<8xf32> to vector<8x1xf32>
    %11 = vector.extract_strided_slice %2 {offsets = [0, 0], sizes = [8, 1], strides = [1, 1]} : vector<8x8xf32> to vector<8x1xf32>
    %12 = arith.subf %11, %10 : vector<8x1xf32>
    %13 = vector.extract_strided_slice %12 {offsets = [0, 0], sizes = [1, 1], strides = [1, 1]} : vector<8x1xf32> to vector<1x1xf32>
    %cst_4 = arith.constant 0.00999999977 : f32
    %14 = vector.broadcast %cst_4 : f32 to vector<1x1xf32>
    %15 = arith.addf %13, %14 : vector<1x1xf32>
    %16 = math.rsqrt %15 : vector<1x1xf32>
    %17 = vector.broadcast %16 : vector<1x1xf32> to vector<8x1xf32>
    %18 = arith.mulf %12, %17 : vector<8x1xf32>
    %c0_i32 = arith.constant 0 : i32
    %19 = vector.broadcast %c0_i32 : i32 to vector<8x1xi32>
    %20 = arith.cmpi eq, %4, %19 : vector<8x1xi32>
    %21 = arith.mulf %15, %16 : vector<1x1xf32>
    %22 = vector.shape_cast %21 : vector<1x1xf32> to vector<1x1xf32>
    %23 = vector.broadcast %22 : vector<1x1xf32> to vector<8x1xf32>
    %24 = arith.select %20, %23, %18 : vector<8x1xi1>, vector<8x1xf32>
    %c0_i32_5 = arith.constant 0 : i32
    %25 = vector.broadcast %c0_i32_5 : i32 to vector<8x1xi32>
    %26 = arith.cmpi sge, %4, %25 : vector<8x1xi32>
    %cst_6 = arith.constant 0.000000e+00 : f32
    %27 = vector.broadcast %cst_6 : f32 to vector<8x1xf32>
    %28 = arith.select %26, %24, %27 : vector<8x1xi1>, vector<8x1xf32>
    %c0_i32_7 = arith.constant 0 : i32
    %29 = vector.broadcast %c0_i32_7 : i32 to vector<8x8xi32>
    %30 = arith.cmpi eq, %3, %29 : vector<8x8xi32>
    %31 = vector.shape_cast %28 : vector<8x1xf32> to vector<8x1xf32>
    %32 = vector.broadcast %31 : vector<8x1xf32> to vector<8x8xf32>
    %33 = arith.select %30, %32, %5 : vector<8x8xi1>, vector<8x8xf32>
    %34 = vector.extract_strided_slice %33 {offsets = [1, 0], sizes = [1, 8], strides = [1, 1]} : vector<8x8xf32> to vector<1x8xf32>
    %35 = vector.broadcast %34 : vector<1x8xf32> to vector<8x8xf32>
    %36 = arith.mulf %33, %35 : vector<8x8xf32>
    %cst_8 = arith.constant dense<0.000000e+00> : vector<8xf32>
    %37 = vector.multi_reduction <add>, %36, %cst_8 [1] : vector<8x8xf32> to vector<8xf32>
    %38 = vector.shape_cast %37 : vector<8xf32> to vector<8x1xf32>
    %39 = vector.extract_strided_slice %2 {offsets = [0, 1], sizes = [8, 1], strides = [1, 1]} : vector<8x8xf32> to vector<8x1xf32>
    %40 = arith.subf %39, %38 : vector<8x1xf32>
    %41 = vector.extract_strided_slice %40 {offsets = [1, 0], sizes = [1, 1], strides = [1, 1]} : vector<8x1xf32> to vector<1x1xf32>
    %cst_9 = arith.constant 0.00999999977 : f32
    %42 = vector.broadcast %cst_9 : f32 to vector<1x1xf32>
    %43 = arith.addf %41, %42 : vector<1x1xf32>
    %44 = math.rsqrt %43 : vector<1x1xf32>
    %45 = vector.broadcast %44 : vector<1x1xf32> to vector<8x1xf32>
    %46 = arith.mulf %40, %45 : vector<8x1xf32>
    %c1_i32 = arith.constant 1 : i32
    %47 = vector.broadcast %c1_i32 : i32 to vector<8x1xi32>
    %48 = arith.cmpi eq, %4, %47 : vector<8x1xi32>
    %49 = arith.mulf %43, %44 : vector<1x1xf32>
    %50 = vector.shape_cast %49 : vector<1x1xf32> to vector<1x1xf32>
    %51 = vector.broadcast %50 : vector<1x1xf32> to vector<8x1xf32>
    %52 = arith.select %48, %51, %46 : vector<8x1xi1>, vector<8x1xf32>
    %c1_i32_10 = arith.constant 1 : i32
    %53 = vector.broadcast %c1_i32_10 : i32 to vector<8x1xi32>
    %54 = arith.cmpi sge, %4, %53 : vector<8x1xi32>
    %cst_11 = arith.constant 0.000000e+00 : f32
    %55 = vector.broadcast %cst_11 : f32 to vector<8x1xf32>
    %56 = arith.select %54, %52, %55 : vector<8x1xi1>, vector<8x1xf32>
    %c1_i32_12 = arith.constant 1 : i32
    %57 = vector.broadcast %c1_i32_12 : i32 to vector<8x8xi32>
    %58 = arith.cmpi eq, %3, %57 : vector<8x8xi32>
    %59 = vector.shape_cast %56 : vector<8x1xf32> to vector<8x1xf32>
    %60 = vector.broadcast %59 : vector<8x1xf32> to vector<8x8xf32>
    %61 = arith.select %58, %60, %33 : vector<8x8xi1>, vector<8x8xf32>
    %62 = vector.extract_strided_slice %61 {offsets = [2, 0], sizes = [1, 8], strides = [1, 1]} : vector<8x8xf32> to vector<1x8xf32>
    %63 = vector.broadcast %62 : vector<1x8xf32> to vector<8x8xf32>
    %64 = arith.mulf %61, %63 : vector<8x8xf32>
    %cst_13 = arith.constant dense<0.000000e+00> : vector<8xf32>
    %65 = vector.multi_reduction <add>, %64, %cst_13 [1] : vector<8x8xf32> to vector<8xf32>
    %66 = vector.shape_cast %65 : vector<8xf32> to vector<8x1xf32>
    %67 = vector.extract_strided_slice %2 {offsets = [0, 2], sizes = [8, 1], strides = [1, 1]} : vector<8x8xf32> to vector<8x1xf32>
    %68 = arith.subf %67, %66 : vector<8x1xf32>
    %69 = vector.extract_strided_slice %68 {offsets = [2, 0], sizes = [1, 1], strides = [1, 1]} : vector<8x1xf32> to vector<1x1xf32>
    %cst_14 = arith.constant 0.00999999977 : f32
    %70 = vector.broadcast %cst_14 : f32 to vector<1x1xf32>
    %71 = arith.addf %69, %70 : vector<1x1xf32>
    %72 = math.rsqrt %71 : vector<1x1xf32>
    %73 = vector.broadcast %72 : vector<1x1xf32> to vector<8x1xf32>
    %74 = arith.mulf %68, %73 : vector<8x1xf32>
    %c2_i32 = arith.constant 2 : i32
    %75 = vector.broadcast %c2_i32 : i32 to vector<8x1xi32>
    %76 = arith.cmpi eq, %4, %75 : vector<8x1xi32>
    %77 = arith.mulf %71, %72 : vector<1x1xf32>
    %78 = vector.shape_cast %77 : vector<1x1xf32> to vector<1x1xf32>
    %79 = vector.broadcast %78 : vector<1x1xf32> to vector<8x1xf32>
    %80 = arith.select %76, %79, %74 : vector<8x1xi1>, vector<8x1xf32>
    %c2_i32_15 = arith.constant 2 : i32
    %81 = vector.broadcast %c2_i32_15 : i32 to vector<8x1xi32>
    %82 = arith.cmpi sge, %4, %81 : vector<8x1xi32>
    %cst_16 = arith.constant 0.000000e+00 : f32
    %83 = vector.broadcast %cst_16 : f32 to vector<8x1xf32>
    %84 = arith.select %82, %80, %83 : vector<8x1xi1>, vector<8x1xf32>
    %c2_i32_17 = arith.constant 2 : i32
    %85 = vector.broadcast %c2_i32_17 : i32 to vector<8x8xi32>
    %86 = arith.cmpi eq, %3, %85 : vector<8x8xi32>
    %87 = vector.shape_cast %84 : vector<8x1xf32> to vector<8x1xf32>
    %88 = vector.broadcast %87 : vector<8x1xf32> to vector<8x8xf32>
    %89 = arith.select %86, %88, %61 : vector<8x8xi1>, vector<8x8xf32>
    %90 = vector.extract_strided_slice %89 {offsets = [3, 0], sizes = [1, 8], strides = [1, 1]} : vector<8x8xf32> to vector<1x8xf32>
    %91 = vector.broadcast %90 : vector<1x8xf32> to vector<8x8xf32>
    %92 = arith.mulf %89, %91 : vector<8x8xf32>
    %cst_18 = arith.constant dense<0.000000e+00> : vector<8xf32>
    %93 = vector.multi_reduction <add>, %92, %cst_18 [1] : vector<8x8xf32> to vector<8xf32>
    %94 = vector.shape_cast %93 : vector<8xf32> to vector<8x1xf32>
    %95 = vector.extract_strided_slice %2 {offsets = [0, 3], sizes = [8, 1], strides = [1, 1]} : vector<8x8xf32> to vector<8x1xf32>
    %96 = arith.subf %95, %94 : vector<8x1xf32>
    %97 = vector.extract_strided_slice %96 {offsets = [3, 0], sizes = [1, 1], strides = [1, 1]} : vector<8x1xf32> to vector<1x1xf32>
    %cst_19 = arith.constant 0.00999999977 : f32
    %98 = vector.broadcast %cst_19 : f32 to vector<1x1xf32>
    %99 = arith.addf %97, %98 : vector<1x1xf32>
    %100 = math.rsqrt %99 : vector<1x1xf32>
    %101 = vector.broadcast %100 : vector<1x1xf32> to vector<8x1xf32>
    %102 = arith.mulf %96, %101 : vector<8x1xf32>
    %c3_i32 = arith.constant 3 : i32
    %103 = vector.broadcast %c3_i32 : i32 to vector<8x1xi32>
    %104 = arith.cmpi eq, %4, %103 : vector<8x1xi32>
    %105 = arith.mulf %99, %100 : vector<1x1xf32>
    %106 = vector.shape_cast %105 : vector<1x1xf32> to vector<1x1xf32>
    %107 = vector.broadcast %106 : vector<1x1xf32> to vector<8x1xf32>
    %108 = arith.select %104, %107, %102 : vector<8x1xi1>, vector<8x1xf32>
    %c3_i32_20 = arith.constant 3 : i32
    %109 = vector.broadcast %c3_i32_20 : i32 to vector<8x1xi32>
    %110 = arith.cmpi sge, %4, %109 : vector<8x1xi32>
    %cst_21 = arith.constant 0.000000e+00 : f32
    %111 = vector.broadcast %cst_21 : f32 to vector<8x1xf32>
    %112 = arith.select %110, %108, %111 : vector<8x1xi1>, vector<8x1xf32>
    %c3_i32_22 = arith.constant 3 : i32
    %113 = vector.broadcast %c3_i32_22 : i32 to vector<8x8xi32>
    %114 = arith.cmpi eq, %3, %113 : vector<8x8xi32>
    %115 = vector.shape_cast %112 : vector<8x1xf32> to vector<8x1xf32>
    %116 = vector.broadcast %115 : vector<8x1xf32> to vector<8x8xf32>
    %117 = arith.select %114, %116, %89 : vector<8x8xi1>, vector<8x8xf32>
    %118 = vector.extract_strided_slice %117 {offsets = [4, 0], sizes = [1, 8], strides = [1, 1]} : vector<8x8xf32> to vector<1x8xf32>
    %119 = vector.broadcast %118 : vector<1x8xf32> to vector<8x8xf32>
    %120 = arith.mulf %117, %119 : vector<8x8xf32>
    %cst_23 = arith.constant dense<0.000000e+00> : vector<8xf32>
    %121 = vector.multi_reduction <add>, %120, %cst_23 [1] : vector<8x8xf32> to vector<8xf32>
    %122 = vector.shape_cast %121 : vector<8xf32> to vector<8x1xf32>
    %123 = vector.extract_strided_slice %2 {offsets = [0, 4], sizes = [8, 1], strides = [1, 1]} : vector<8x8xf32> to vector<8x1xf32>
    %124 = arith.subf %123, %122 : vector<8x1xf32>
    %125 = vector.extract_strided_slice %124 {offsets = [4, 0], sizes = [1, 1], strides = [1, 1]} : vector<8x1xf32> to vector<1x1xf32>
    %cst_24 = arith.constant 0.00999999977 : f32
    %126 = vector.broadcast %cst_24 : f32 to vector<1x1xf32>
    %127 = arith.addf %125, %126 : vector<1x1xf32>
    %128 = math.rsqrt %127 : vector<1x1xf32>
    %129 = vector.broadcast %128 : vector<1x1xf32> to vector<8x1xf32>
    %130 = arith.mulf %124, %129 : vector<8x1xf32>
    %c4_i32 = arith.constant 4 : i32
    %131 = vector.broadcast %c4_i32 : i32 to vector<8x1xi32>
    %132 = arith.cmpi eq, %4, %131 : vector<8x1xi32>
    %133 = arith.mulf %127, %128 : vector<1x1xf32>
    %134 = vector.shape_cast %133 : vector<1x1xf32> to vector<1x1xf32>
    %135 = vector.broadcast %134 : vector<1x1xf32> to vector<8x1xf32>
    %136 = arith.select %132, %135, %130 : vector<8x1xi1>, vector<8x1xf32>
    %c4_i32_25 = arith.constant 4 : i32
    %137 = vector.broadcast %c4_i32_25 : i32 to vector<8x1xi32>
    %138 = arith.cmpi sge, %4, %137 : vector<8x1xi32>
    %cst_26 = arith.constant 0.000000e+00 : f32
    %139 = vector.broadcast %cst_26 : f32 to vector<8x1xf32>
    %140 = arith.select %138, %136, %139 : vector<8x1xi1>, vector<8x1xf32>
    %c4_i32_27 = arith.constant 4 : i32
    %141 = vector.broadcast %c4_i32_27 : i32 to vector<8x8xi32>
    %142 = arith.cmpi eq, %3, %141 : vector<8x8xi32>
    %143 = vector.shape_cast %140 : vector<8x1xf32> to vector<8x1xf32>
    %144 = vector.broadcast %143 : vector<8x1xf32> to vector<8x8xf32>
    %145 = arith.select %142, %144, %117 : vector<8x8xi1>, vector<8x8xf32>
    %146 = vector.extract_strided_slice %145 {offsets = [5, 0], sizes = [1, 8], strides = [1, 1]} : vector<8x8xf32> to vector<1x8xf32>
    %147 = vector.broadcast %146 : vector<1x8xf32> to vector<8x8xf32>
    %148 = arith.mulf %145, %147 : vector<8x8xf32>
    %cst_28 = arith.constant dense<0.000000e+00> : vector<8xf32>
    %149 = vector.multi_reduction <add>, %148, %cst_28 [1] : vector<8x8xf32> to vector<8xf32>
    %150 = vector.shape_cast %149 : vector<8xf32> to vector<8x1xf32>
    %151 = vector.extract_strided_slice %2 {offsets = [0, 5], sizes = [8, 1], strides = [1, 1]} : vector<8x8xf32> to vector<8x1xf32>
    %152 = arith.subf %151, %150 : vector<8x1xf32>
    %153 = vector.extract_strided_slice %152 {offsets = [5, 0], sizes = [1, 1], strides = [1, 1]} : vector<8x1xf32> to vector<1x1xf32>
    %cst_29 = arith.constant 0.00999999977 : f32
    %154 = vector.broadcast %cst_29 : f32 to vector<1x1xf32>
    %155 = arith.addf %153, %154 : vector<1x1xf32>
    %156 = math.rsqrt %155 : vector<1x1xf32>
    %157 = vector.broadcast %156 : vector<1x1xf32> to vector<8x1xf32>
    %158 = arith.mulf %152, %157 : vector<8x1xf32>
    %c5_i32 = arith.constant 5 : i32
    %159 = vector.broadcast %c5_i32 : i32 to vector<8x1xi32>
    %160 = arith.cmpi eq, %4, %159 : vector<8x1xi32>
    %161 = arith.mulf %155, %156 : vector<1x1xf32>
    %162 = vector.shape_cast %161 : vector<1x1xf32> to vector<1x1xf32>
    %163 = vector.broadcast %162 : vector<1x1xf32> to vector<8x1xf32>
    %164 = arith.select %160, %163, %158 : vector<8x1xi1>, vector<8x1xf32>
    %c5_i32_30 = arith.constant 5 : i32
    %165 = vector.broadcast %c5_i32_30 : i32 to vector<8x1xi32>
    %166 = arith.cmpi sge, %4, %165 : vector<8x1xi32>
    %cst_31 = arith.constant 0.000000e+00 : f32
    %167 = vector.broadcast %cst_31 : f32 to vector<8x1xf32>
    %168 = arith.select %166, %164, %167 : vector<8x1xi1>, vector<8x1xf32>
    %c5_i32_32 = arith.constant 5 : i32
    %169 = vector.broadcast %c5_i32_32 : i32 to vector<8x8xi32>
    %170 = arith.cmpi eq, %3, %169 : vector<8x8xi32>
    %171 = vector.shape_cast %168 : vector<8x1xf32> to vector<8x1xf32>
    %172 = vector.broadcast %171 : vector<8x1xf32> to vector<8x8xf32>
    %173 = arith.select %170, %172, %145 : vector<8x8xi1>, vector<8x8xf32>
    %174 = vector.extract_strided_slice %173 {offsets = [6, 0], sizes = [1, 8], strides = [1, 1]} : vector<8x8xf32> to vector<1x8xf32>
    %175 = vector.broadcast %174 : vector<1x8xf32> to vector<8x8xf32>
    %176 = arith.mulf %173, %175 : vector<8x8xf32>
    %cst_33 = arith.constant dense<0.000000e+00> : vector<8xf32>
    %177 = vector.multi_reduction <add>, %176, %cst_33 [1] : vector<8x8xf32> to vector<8xf32>
    %178 = vector.shape_cast %177 : vector<8xf32> to vector<8x1xf32>
    %179 = vector.extract_strided_slice %2 {offsets = [0, 6], sizes = [8, 1], strides = [1, 1]} : vector<8x8xf32> to vector<8x1xf32>
    %180 = arith.subf %179, %178 : vector<8x1xf32>
    %181 = vector.extract_strided_slice %180 {offsets = [6, 0], sizes = [1, 1], strides = [1, 1]} : vector<8x1xf32> to vector<1x1xf32>
    %cst_34 = arith.constant 0.00999999977 : f32
    %182 = vector.broadcast %cst_34 : f32 to vector<1x1xf32>
    %183 = arith.addf %181, %182 : vector<1x1xf32>
    %184 = math.rsqrt %183 : vector<1x1xf32>
    %185 = vector.broadcast %184 : vector<1x1xf32> to vector<8x1xf32>
    %186 = arith.mulf %180, %185 : vector<8x1xf32>
    %c6_i32 = arith.constant 6 : i32
    %187 = vector.broadcast %c6_i32 : i32 to vector<8x1xi32>
    %188 = arith.cmpi eq, %4, %187 : vector<8x1xi32>
    %189 = arith.mulf %183, %184 : vector<1x1xf32>
    %190 = vector.shape_cast %189 : vector<1x1xf32> to vector<1x1xf32>
    %191 = vector.broadcast %190 : vector<1x1xf32> to vector<8x1xf32>
    %192 = arith.select %188, %191, %186 : vector<8x1xi1>, vector<8x1xf32>
    %c6_i32_35 = arith.constant 6 : i32
    %193 = vector.broadcast %c6_i32_35 : i32 to vector<8x1xi32>
    %194 = arith.cmpi sge, %4, %193 : vector<8x1xi32>
    %cst_36 = arith.constant 0.000000e+00 : f32
    %195 = vector.broadcast %cst_36 : f32 to vector<8x1xf32>
    %196 = arith.select %194, %192, %195 : vector<8x1xi1>, vector<8x1xf32>
    %c6_i32_37 = arith.constant 6 : i32
    %197 = vector.broadcast %c6_i32_37 : i32 to vector<8x8xi32>
    %198 = arith.cmpi eq, %3, %197 : vector<8x8xi32>
    %199 = vector.shape_cast %196 : vector<8x1xf32> to vector<8x1xf32>
    %200 = vector.broadcast %199 : vector<8x1xf32> to vector<8x8xf32>
    %201 = arith.select %198, %200, %173 : vector<8x8xi1>, vector<8x8xf32>
    %202 = vector.extract_strided_slice %201 {offsets = [7, 0], sizes = [1, 8], strides = [1, 1]} : vector<8x8xf32> to vector<1x8xf32>
    %203 = vector.broadcast %202 : vector<1x8xf32> to vector<8x8xf32>
    %204 = arith.mulf %201, %203 : vector<8x8xf32>
    %cst_38 = arith.constant dense<0.000000e+00> : vector<8xf32>
    %205 = vector.multi_reduction <add>, %204, %cst_38 [1] : vector<8x8xf32> to vector<8xf32>
    %206 = vector.shape_cast %205 : vector<8xf32> to vector<8x1xf32>
    %207 = vector.extract_strided_slice %2 {offsets = [0, 7], sizes = [8, 1], strides = [1, 1]} : vector<8x8xf32> to vector<8x1xf32>
    %208 = arith.subf %207, %206 : vector<8x1xf32>
    %209 = vector.extract_strided_slice %208 {offsets = [7, 0], sizes = [1, 1], strides = [1, 1]} : vector<8x1xf32> to vector<1x1xf32>
    %cst_39 = arith.constant 0.00999999977 : f32
    %210 = vector.broadcast %cst_39 : f32 to vector<1x1xf32>
    %211 = arith.addf %209, %210 : vector<1x1xf32>
    %212 = math.rsqrt %211 : vector<1x1xf32>
    %213 = vector.broadcast %212 : vector<1x1xf32> to vector<8x1xf32>
    %214 = arith.mulf %208, %213 : vector<8x1xf32>
    %c7_i32 = arith.constant 7 : i32
    %215 = vector.broadcast %c7_i32 : i32 to vector<8x1xi32>
    %216 = arith.cmpi eq, %4, %215 : vector<8x1xi32>
    %217 = arith.mulf %211, %212 : vector<1x1xf32>
    %218 = vector.shape_cast %217 : vector<1x1xf32> to vector<1x1xf32>
    %219 = vector.broadcast %218 : vector<1x1xf32> to vector<8x1xf32>
    %220 = arith.select %216, %219, %214 : vector<8x1xi1>, vector<8x1xf32>
    %c7_i32_40 = arith.constant 7 : i32
    %221 = vector.broadcast %c7_i32_40 : i32 to vector<8x1xi32>
    %222 = arith.cmpi sge, %4, %221 : vector<8x1xi32>
    %cst_41 = arith.constant 0.000000e+00 : f32
    %223 = vector.broadcast %cst_41 : f32 to vector<8x1xf32>
    %224 = arith.select %222, %220, %223 : vector<8x1xi1>, vector<8x1xf32>
    %c7_i32_42 = arith.constant 7 : i32
    %225 = vector.broadcast %c7_i32_42 : i32 to vector<8x8xi32>
    %226 = arith.cmpi eq, %3, %225 : vector<8x8xi32>
    %227 = vector.shape_cast %224 : vector<8x1xf32> to vector<8x1xf32>
    %228 = vector.broadcast %227 : vector<8x1xf32> to vector<8x8xf32>
    %229 = arith.select %226, %228, %201 : vector<8x8xi1>, vector<8x8xf32>
    %230 = arith.extf %1 : vector<8x256xbf16> to vector<8x256xf32>
    %231 = vector.extract_strided_slice %230 {offsets = [0, 0], sizes = [1, 256], strides = [1, 1]} : vector<8x256xf32> to vector<1x256xf32>
    %232 = vector.extract_strided_slice %229 {offsets = [0, 0], sizes = [1, 1], strides = [1, 1]} : vector<8x8xf32> to vector<1x1xf32>
    %cst_43 = arith.constant 1.000000e+00 : f32
    %233 = vector.broadcast %cst_43 : f32 to vector<1x1xf32>
    %234 = arith.divf %233, %232 : vector<1x1xf32>
    %235 = vector.broadcast %234 : vector<1x1xf32> to vector<1x256xf32>
    %236 = arith.mulf %231, %235 : vector<1x256xf32>
    %237 = vector.extract_strided_slice %230 {offsets = [1, 0], sizes = [1, 256], strides = [1, 1]} : vector<8x256xf32> to vector<1x256xf32>
    %238 = vector.extract_strided_slice %229 {offsets = [1, 0], sizes = [1, 1], strides = [1, 1]} : vector<8x8xf32> to vector<1x1xf32>
    %239 = vector.broadcast %238 : vector<1x1xf32> to vector<1x256xf32>
    %240 = arith.mulf %239, %236 : vector<1x256xf32>
    %241 = arith.subf %237, %240 : vector<1x256xf32>
    %242 = vector.extract_strided_slice %229 {offsets = [1, 1], sizes = [1, 1], strides = [1, 1]} : vector<8x8xf32> to vector<1x1xf32>
    %cst_44 = arith.constant 1.000000e+00 : f32
    %243 = vector.broadcast %cst_44 : f32 to vector<1x1xf32>
    %244 = arith.divf %243, %242 : vector<1x1xf32>
    %245 = vector.broadcast %244 : vector<1x1xf32> to vector<1x256xf32>
    %246 = arith.mulf %241, %245 : vector<1x256xf32>
    %247 = vector.extract_strided_slice %230 {offsets = [2, 0], sizes = [1, 256], strides = [1, 1]} : vector<8x256xf32> to vector<1x256xf32>
    %248 = vector.extract_strided_slice %229 {offsets = [2, 0], sizes = [1, 1], strides = [1, 1]} : vector<8x8xf32> to vector<1x1xf32>
    %249 = vector.broadcast %248 : vector<1x1xf32> to vector<1x256xf32>
    %250 = arith.mulf %249, %236 : vector<1x256xf32>
    %251 = arith.subf %247, %250 : vector<1x256xf32>
    %252 = vector.extract_strided_slice %229 {offsets = [2, 1], sizes = [1, 1], strides = [1, 1]} : vector<8x8xf32> to vector<1x1xf32>
    %253 = vector.broadcast %252 : vector<1x1xf32> to vector<1x256xf32>
    %254 = arith.mulf %253, %246 : vector<1x256xf32>
    %255 = arith.subf %251, %254 : vector<1x256xf32>
    %256 = vector.extract_strided_slice %229 {offsets = [2, 2], sizes = [1, 1], strides = [1, 1]} : vector<8x8xf32> to vector<1x1xf32>
    %cst_45 = arith.constant 1.000000e+00 : f32
    %257 = vector.broadcast %cst_45 : f32 to vector<1x1xf32>
    %258 = arith.divf %257, %256 : vector<1x1xf32>
    %259 = vector.broadcast %258 : vector<1x1xf32> to vector<1x256xf32>
    %260 = arith.mulf %255, %259 : vector<1x256xf32>
    %261 = vector.extract_strided_slice %230 {offsets = [3, 0], sizes = [1, 256], strides = [1, 1]} : vector<8x256xf32> to vector<1x256xf32>
    %262 = vector.extract_strided_slice %229 {offsets = [3, 0], sizes = [1, 1], strides = [1, 1]} : vector<8x8xf32> to vector<1x1xf32>
    %263 = vector.broadcast %262 : vector<1x1xf32> to vector<1x256xf32>
    %264 = arith.mulf %263, %236 : vector<1x256xf32>
    %265 = arith.subf %261, %264 : vector<1x256xf32>
    %266 = vector.extract_strided_slice %229 {offsets = [3, 1], sizes = [1, 1], strides = [1, 1]} : vector<8x8xf32> to vector<1x1xf32>
    %267 = vector.broadcast %266 : vector<1x1xf32> to vector<1x256xf32>
    %268 = arith.mulf %267, %246 : vector<1x256xf32>
    %269 = arith.subf %265, %268 : vector<1x256xf32>
    %270 = vector.extract_strided_slice %229 {offsets = [3, 2], sizes = [1, 1], strides = [1, 1]} : vector<8x8xf32> to vector<1x1xf32>
    %271 = vector.broadcast %270 : vector<1x1xf32> to vector<1x256xf32>
    %272 = arith.mulf %271, %260 : vector<1x256xf32>
    %273 = arith.subf %269, %272 : vector<1x256xf32>
    %274 = vector.extract_strided_slice %229 {offsets = [3, 3], sizes = [1, 1], strides = [1, 1]} : vector<8x8xf32> to vector<1x1xf32>
    %cst_46 = arith.constant 1.000000e+00 : f32
    %275 = vector.broadcast %cst_46 : f32 to vector<1x1xf32>
    %276 = arith.divf %275, %274 : vector<1x1xf32>
    %277 = vector.broadcast %276 : vector<1x1xf32> to vector<1x256xf32>
    %278 = arith.mulf %273, %277 : vector<1x256xf32>
    %279 = vector.extract_strided_slice %230 {offsets = [4, 0], sizes = [1, 256], strides = [1, 1]} : vector<8x256xf32> to vector<1x256xf32>
    %280 = vector.extract_strided_slice %229 {offsets = [4, 0], sizes = [1, 1], strides = [1, 1]} : vector<8x8xf32> to vector<1x1xf32>
    %281 = vector.broadcast %280 : vector<1x1xf32> to vector<1x256xf32>
    %282 = arith.mulf %281, %236 : vector<1x256xf32>
    %283 = arith.subf %279, %282 : vector<1x256xf32>
    %284 = vector.extract_strided_slice %229 {offsets = [4, 1], sizes = [1, 1], strides = [1, 1]} : vector<8x8xf32> to vector<1x1xf32>
    %285 = vector.broadcast %284 : vector<1x1xf32> to vector<1x256xf32>
    %286 = arith.mulf %285, %246 : vector<1x256xf32>
    %287 = arith.subf %283, %286 : vector<1x256xf32>
    %288 = vector.extract_strided_slice %229 {offsets = [4, 2], sizes = [1, 1], strides = [1, 1]} : vector<8x8xf32> to vector<1x1xf32>
    %289 = vector.broadcast %288 : vector<1x1xf32> to vector<1x256xf32>
    %290 = arith.mulf %289, %260 : vector<1x256xf32>
    %291 = arith.subf %287, %290 : vector<1x256xf32>
    %292 = vector.extract_strided_slice %229 {offsets = [4, 3], sizes = [1, 1], strides = [1, 1]} : vector<8x8xf32> to vector<1x1xf32>
    %293 = vector.broadcast %292 : vector<1x1xf32> to vector<1x256xf32>
    %294 = arith.mulf %293, %278 : vector<1x256xf32>
    %295 = arith.subf %291, %294 : vector<1x256xf32>
    %296 = vector.extract_strided_slice %229 {offsets = [4, 4], sizes = [1, 1], strides = [1, 1]} : vector<8x8xf32> to vector<1x1xf32>
    %cst_47 = arith.constant 1.000000e+00 : f32
    %297 = vector.broadcast %cst_47 : f32 to vector<1x1xf32>
    %298 = arith.divf %297, %296 : vector<1x1xf32>
    %299 = vector.broadcast %298 : vector<1x1xf32> to vector<1x256xf32>
    %300 = arith.mulf %295, %299 : vector<1x256xf32>
    %301 = vector.extract_strided_slice %230 {offsets = [5, 0], sizes = [1, 256], strides = [1, 1]} : vector<8x256xf32> to vector<1x256xf32>
    %302 = vector.extract_strided_slice %229 {offsets = [5, 0], sizes = [1, 1], strides = [1, 1]} : vector<8x8xf32> to vector<1x1xf32>
    %303 = vector.broadcast %302 : vector<1x1xf32> to vector<1x256xf32>
    %304 = arith.mulf %303, %236 : vector<1x256xf32>
    %305 = arith.subf %301, %304 : vector<1x256xf32>
    %306 = vector.extract_strided_slice %229 {offsets = [5, 1], sizes = [1, 1], strides = [1, 1]} : vector<8x8xf32> to vector<1x1xf32>
    %307 = vector.broadcast %306 : vector<1x1xf32> to vector<1x256xf32>
    %308 = arith.mulf %307, %246 : vector<1x256xf32>
    %309 = arith.subf %305, %308 : vector<1x256xf32>
    %310 = vector.extract_strided_slice %229 {offsets = [5, 2], sizes = [1, 1], strides = [1, 1]} : vector<8x8xf32> to vector<1x1xf32>
    %311 = vector.broadcast %310 : vector<1x1xf32> to vector<1x256xf32>
    %312 = arith.mulf %311, %260 : vector<1x256xf32>
    %313 = arith.subf %309, %312 : vector<1x256xf32>
    %314 = vector.extract_strided_slice %229 {offsets = [5, 3], sizes = [1, 1], strides = [1, 1]} : vector<8x8xf32> to vector<1x1xf32>
    %315 = vector.broadcast %314 : vector<1x1xf32> to vector<1x256xf32>
    %316 = arith.mulf %315, %278 : vector<1x256xf32>
    %317 = arith.subf %313, %316 : vector<1x256xf32>
    %318 = vector.extract_strided_slice %229 {offsets = [5, 4], sizes = [1, 1], strides = [1, 1]} : vector<8x8xf32> to vector<1x1xf32>
    %319 = vector.broadcast %318 : vector<1x1xf32> to vector<1x256xf32>
    %320 = arith.mulf %319, %300 : vector<1x256xf32>
    %321 = arith.subf %317, %320 : vector<1x256xf32>
    %322 = vector.extract_strided_slice %229 {offsets = [5, 5], sizes = [1, 1], strides = [1, 1]} : vector<8x8xf32> to vector<1x1xf32>
    %cst_48 = arith.constant 1.000000e+00 : f32
    %323 = vector.broadcast %cst_48 : f32 to vector<1x1xf32>
    %324 = arith.divf %323, %322 : vector<1x1xf32>
    %325 = vector.broadcast %324 : vector<1x1xf32> to vector<1x256xf32>
    %326 = arith.mulf %321, %325 : vector<1x256xf32>
    %327 = vector.extract_strided_slice %230 {offsets = [6, 0], sizes = [1, 256], strides = [1, 1]} : vector<8x256xf32> to vector<1x256xf32>
    %328 = vector.extract_strided_slice %229 {offsets = [6, 0], sizes = [1, 1], strides = [1, 1]} : vector<8x8xf32> to vector<1x1xf32>
    %329 = vector.broadcast %328 : vector<1x1xf32> to vector<1x256xf32>
    %330 = arith.mulf %329, %236 : vector<1x256xf32>
    %331 = arith.subf %327, %330 : vector<1x256xf32>
    %332 = vector.extract_strided_slice %229 {offsets = [6, 1], sizes = [1, 1], strides = [1, 1]} : vector<8x8xf32> to vector<1x1xf32>
    %333 = vector.broadcast %332 : vector<1x1xf32> to vector<1x256xf32>
    %334 = arith.mulf %333, %246 : vector<1x256xf32>
    %335 = arith.subf %331, %334 : vector<1x256xf32>
    %336 = vector.extract_strided_slice %229 {offsets = [6, 2], sizes = [1, 1], strides = [1, 1]} : vector<8x8xf32> to vector<1x1xf32>
    %337 = vector.broadcast %336 : vector<1x1xf32> to vector<1x256xf32>
    %338 = arith.mulf %337, %260 : vector<1x256xf32>
    %339 = arith.subf %335, %338 : vector<1x256xf32>
    %340 = vector.extract_strided_slice %229 {offsets = [6, 3], sizes = [1, 1], strides = [1, 1]} : vector<8x8xf32> to vector<1x1xf32>
    %341 = vector.broadcast %340 : vector<1x1xf32> to vector<1x256xf32>
    %342 = arith.mulf %341, %278 : vector<1x256xf32>
    %343 = arith.subf %339, %342 : vector<1x256xf32>
    %344 = vector.extract_strided_slice %229 {offsets = [6, 4], sizes = [1, 1], strides = [1, 1]} : vector<8x8xf32> to vector<1x1xf32>
    %345 = vector.broadcast %344 : vector<1x1xf32> to vector<1x256xf32>
    %346 = arith.mulf %345, %300 : vector<1x256xf32>
    %347 = arith.subf %343, %346 : vector<1x256xf32>
    %348 = vector.extract_strided_slice %229 {offsets = [6, 5], sizes = [1, 1], strides = [1, 1]} : vector<8x8xf32> to vector<1x1xf32>
    %349 = vector.broadcast %348 : vector<1x1xf32> to vector<1x256xf32>
    %350 = arith.mulf %349, %326 : vector<1x256xf32>
    %351 = arith.subf %347, %350 : vector<1x256xf32>
    %352 = vector.extract_strided_slice %229 {offsets = [6, 6], sizes = [1, 1], strides = [1, 1]} : vector<8x8xf32> to vector<1x1xf32>
    %cst_49 = arith.constant 1.000000e+00 : f32
    %353 = vector.broadcast %cst_49 : f32 to vector<1x1xf32>
    %354 = arith.divf %353, %352 : vector<1x1xf32>
    %355 = vector.broadcast %354 : vector<1x1xf32> to vector<1x256xf32>
    %356 = arith.mulf %351, %355 : vector<1x256xf32>
    %357 = vector.extract_strided_slice %230 {offsets = [7, 0], sizes = [1, 256], strides = [1, 1]} : vector<8x256xf32> to vector<1x256xf32>
    %358 = vector.extract_strided_slice %229 {offsets = [7, 0], sizes = [1, 1], strides = [1, 1]} : vector<8x8xf32> to vector<1x1xf32>
    %359 = vector.broadcast %358 : vector<1x1xf32> to vector<1x256xf32>
    %360 = arith.mulf %359, %236 : vector<1x256xf32>
    %361 = arith.subf %357, %360 : vector<1x256xf32>
    %362 = vector.extract_strided_slice %229 {offsets = [7, 1], sizes = [1, 1], strides = [1, 1]} : vector<8x8xf32> to vector<1x1xf32>
    %363 = vector.broadcast %362 : vector<1x1xf32> to vector<1x256xf32>
    %364 = arith.mulf %363, %246 : vector<1x256xf32>
    %365 = arith.subf %361, %364 : vector<1x256xf32>
    %366 = vector.extract_strided_slice %229 {offsets = [7, 2], sizes = [1, 1], strides = [1, 1]} : vector<8x8xf32> to vector<1x1xf32>
    %367 = vector.broadcast %366 : vector<1x1xf32> to vector<1x256xf32>
    %368 = arith.mulf %367, %260 : vector<1x256xf32>
    %369 = arith.subf %365, %368 : vector<1x256xf32>
    %370 = vector.extract_strided_slice %229 {offsets = [7, 3], sizes = [1, 1], strides = [1, 1]} : vector<8x8xf32> to vector<1x1xf32>
    %371 = vector.broadcast %370 : vector<1x1xf32> to vector<1x256xf32>
    %372 = arith.mulf %371, %278 : vector<1x256xf32>
    %373 = arith.subf %369, %372 : vector<1x256xf32>
    %374 = vector.extract_strided_slice %229 {offsets = [7, 4], sizes = [1, 1], strides = [1, 1]} : vector<8x8xf32> to vector<1x1xf32>
    %375 = vector.broadcast %374 : vector<1x1xf32> to vector<1x256xf32>
    %376 = arith.mulf %375, %300 : vector<1x256xf32>
    %377 = arith.subf %373, %376 : vector<1x256xf32>
    %378 = vector.extract_strided_slice %229 {offsets = [7, 5], sizes = [1, 1], strides = [1, 1]} : vector<8x8xf32> to vector<1x1xf32>
    %379 = vector.broadcast %378 : vector<1x1xf32> to vector<1x256xf32>
    %380 = arith.mulf %379, %326 : vector<1x256xf32>
    %381 = arith.subf %377, %380 : vector<1x256xf32>
    %382 = vector.extract_strided_slice %229 {offsets = [7, 6], sizes = [1, 1], strides = [1, 1]} : vector<8x8xf32> to vector<1x1xf32>
    %383 = vector.broadcast %382 : vector<1x1xf32> to vector<1x256xf32>
    %384 = arith.mulf %383, %356 : vector<1x256xf32>
    %385 = arith.subf %381, %384 : vector<1x256xf32>
    %386 = vector.extract_strided_slice %229 {offsets = [7, 7], sizes = [1, 1], strides = [1, 1]} : vector<8x8xf32> to vector<1x1xf32>
    %cst_50 = arith.constant 1.000000e+00 : f32
    %387 = vector.broadcast %cst_50 : f32 to vector<1x1xf32>
    %388 = arith.divf %387, %386 : vector<1x1xf32>
    %389 = vector.broadcast %388 : vector<1x1xf32> to vector<1x256xf32>
    %390 = arith.mulf %385, %389 : vector<1x256xf32>
    %391 = tpu.iota {dimensions = array<i32: 0>} : vector<8x1xi32>
    %cst_51 = arith.constant 0.000000e+00 : f32
    %392 = vector.broadcast %cst_51 : f32 to vector<8x256xf32>
    %c0_i32_52 = arith.constant 0 : i32
    %393 = vector.broadcast %c0_i32_52 : i32 to vector<8x1xi32>
    %394 = arith.cmpi eq, %391, %393 : vector<8x1xi32>
    %395 = vector.shape_cast %394 : vector<8x1xi1> to vector<8x1xi1>
    %396 = vector.broadcast %395 : vector<8x1xi1> to vector<8x256xi1>
    %397 = vector.shape_cast %236 : vector<1x256xf32> to vector<1x256xf32>
    %398 = vector.broadcast %397 : vector<1x256xf32> to vector<8x256xf32>
    %399 = arith.select %396, %398, %392 : vector<8x256xi1>, vector<8x256xf32>
    %c1_i32_53 = arith.constant 1 : i32
    %400 = vector.broadcast %c1_i32_53 : i32 to vector<8x1xi32>
    %401 = arith.cmpi eq, %391, %400 : vector<8x1xi32>
    %402 = vector.shape_cast %401 : vector<8x1xi1> to vector<8x1xi1>
    %403 = vector.broadcast %402 : vector<8x1xi1> to vector<8x256xi1>
    %404 = vector.shape_cast %246 : vector<1x256xf32> to vector<1x256xf32>
    %405 = vector.broadcast %404 : vector<1x256xf32> to vector<8x256xf32>
    %406 = arith.select %403, %405, %399 : vector<8x256xi1>, vector<8x256xf32>
    %c2_i32_54 = arith.constant 2 : i32
    %407 = vector.broadcast %c2_i32_54 : i32 to vector<8x1xi32>
    %408 = arith.cmpi eq, %391, %407 : vector<8x1xi32>
    %409 = vector.shape_cast %408 : vector<8x1xi1> to vector<8x1xi1>
    %410 = vector.broadcast %409 : vector<8x1xi1> to vector<8x256xi1>
    %411 = vector.shape_cast %260 : vector<1x256xf32> to vector<1x256xf32>
    %412 = vector.broadcast %411 : vector<1x256xf32> to vector<8x256xf32>
    %413 = arith.select %410, %412, %406 : vector<8x256xi1>, vector<8x256xf32>
    %c3_i32_55 = arith.constant 3 : i32
    %414 = vector.broadcast %c3_i32_55 : i32 to vector<8x1xi32>
    %415 = arith.cmpi eq, %391, %414 : vector<8x1xi32>
    %416 = vector.shape_cast %415 : vector<8x1xi1> to vector<8x1xi1>
    %417 = vector.broadcast %416 : vector<8x1xi1> to vector<8x256xi1>
    %418 = vector.shape_cast %278 : vector<1x256xf32> to vector<1x256xf32>
    %419 = vector.broadcast %418 : vector<1x256xf32> to vector<8x256xf32>
    %420 = arith.select %417, %419, %413 : vector<8x256xi1>, vector<8x256xf32>
    %c4_i32_56 = arith.constant 4 : i32
    %421 = vector.broadcast %c4_i32_56 : i32 to vector<8x1xi32>
    %422 = arith.cmpi eq, %391, %421 : vector<8x1xi32>
    %423 = vector.shape_cast %422 : vector<8x1xi1> to vector<8x1xi1>
    %424 = vector.broadcast %423 : vector<8x1xi1> to vector<8x256xi1>
    %425 = vector.shape_cast %300 : vector<1x256xf32> to vector<1x256xf32>
    %426 = vector.broadcast %425 : vector<1x256xf32> to vector<8x256xf32>
    %427 = arith.select %424, %426, %420 : vector<8x256xi1>, vector<8x256xf32>
    %c5_i32_57 = arith.constant 5 : i32
    %428 = vector.broadcast %c5_i32_57 : i32 to vector<8x1xi32>
    %429 = arith.cmpi eq, %391, %428 : vector<8x1xi32>
    %430 = vector.shape_cast %429 : vector<8x1xi1> to vector<8x1xi1>
    %431 = vector.broadcast %430 : vector<8x1xi1> to vector<8x256xi1>
    %432 = vector.shape_cast %326 : vector<1x256xf32> to vector<1x256xf32>
    %433 = vector.broadcast %432 : vector<1x256xf32> to vector<8x256xf32>
    %434 = arith.select %431, %433, %427 : vector<8x256xi1>, vector<8x256xf32>
    %c6_i32_58 = arith.constant 6 : i32
    %435 = vector.broadcast %c6_i32_58 : i32 to vector<8x1xi32>
    %436 = arith.cmpi eq, %391, %435 : vector<8x1xi32>
    %437 = vector.shape_cast %436 : vector<8x1xi1> to vector<8x1xi1>
    %438 = vector.broadcast %437 : vector<8x1xi1> to vector<8x256xi1>
    %439 = vector.shape_cast %356 : vector<1x256xf32> to vector<1x256xf32>
    %440 = vector.broadcast %439 : vector<1x256xf32> to vector<8x256xf32>
    %441 = arith.select %438, %440, %434 : vector<8x256xi1>, vector<8x256xf32>
    %c7_i32_59 = arith.constant 7 : i32
    %442 = vector.broadcast %c7_i32_59 : i32 to vector<8x1xi32>
    %443 = arith.cmpi eq, %391, %442 : vector<8x1xi32>
    %444 = vector.shape_cast %443 : vector<8x1xi1> to vector<8x1xi1>
    %445 = vector.broadcast %444 : vector<8x1xi1> to vector<8x256xi1>
    %446 = vector.shape_cast %390 : vector<1x256xf32> to vector<1x256xf32>
    %447 = vector.broadcast %446 : vector<1x256xf32> to vector<8x256xf32>
    %448 = arith.select %445, %447, %441 : vector<8x256xi1>, vector<8x256xf32>
    %449 = arith.truncf %448 : vector<8x256xf32> to vector<8x256xbf16>
    %c0_60 = arith.constant 0 : index
    %c0_61 = arith.constant 0 : index
    %c0_62 = arith.constant 0 : index
    %450 = vector.load %arg2[%c0_60, %c0_61, %c0_62] : memref<1x8x256xbf16, #tpu.memory_space<vmem>>, vector<1x8x256xbf16>
    %451 = vector.shape_cast %450 : vector<1x8x256xbf16> to vector<8x256xbf16>
    %452 = vector.shape_cast %449 : vector<8x256xbf16> to vector<1x8x256xbf16>
    tpu.vector_store %arg2[%c0_60, %c0_61, %c0_62], %452 {strides = array<i32>} : memref<1x8x256xbf16, #tpu.memory_space<vmem>>, vector<1x8x256xbf16>,
    return
  }
  func.func @transform_0(%arg0: i32) -> (i32, i32, i32) {
    %c0_i32 = arith.constant 0 : i32
    %c0_i32_0 = arith.constant 0 : i32
    %c0_i32_1 = arith.constant 0 : i32
    return %arg0, %c0_i32, %c0_i32_0 : i32, i32, i32
  }
  func.func @transform_1(%arg0: i32) -> (i32, i32, i32) {
    %c0_i32 = arith.constant 0 : i32
    %c0_i32_0 = arith.constant 0 : i32
    %c0_i32_1 = arith.constant 0 : i32
    return %arg0, %c0_i32, %c0_i32_0 : i32, i32, i32
  }
}

module attributes {stable_mosaic.version = 11 : i64} {
  func.func @_frechet_kernel(%arg0: i32, %arg1: memref<4xf32, #tpu.memory_space<smem>>, %arg2: memref<1x8x256xbf16, #tpu.memory_space<vmem>>, %arg3: memref<8x256xf32, #tpu.memory_space<vmem>>) attributes {dimension_semantics = [#tpu.dimension_semantics<arbitrary>], iteration_bounds = array<i64: 4>, scalar_prefetch = 0 : i64, scratch_operands = 0 : i64, tpu.core_type = #tpu.core_type<tc>, window_params = [{transform_indices = @transform_0, window_bounds = array<i64: 4>}, {transform_indices = @transform_1, window_bounds = array<i64: 1, 8, 256>}, {pipeline_mode = #tpu.pipeline_mode<synchronous>, transform_indices = @transform_2, window_bounds = array<i64: 8, 256>}]} {
    %c0 = arith.constant 0 : index
    %c0_0 = arith.constant 0 : index
    %c0_1 = arith.constant 0 : index
    %0 = vector.load %arg2[%c0, %c0_0, %c0_1] : memref<1x8x256xbf16, #tpu.memory_space<vmem>>, vector<1x8x256xbf16>
    %1 = vector.shape_cast %0 : vector<1x8x256xbf16> to vector<8x256xbf16>
    %2 = arith.extf %1 : vector<8x256xbf16> to vector<8x256xf32>
    %c0_i32 = arith.constant 0 : i32
    %3 = arith.cmpi eq, %arg0, %c0_i32 : i32
    %4 = arith.extui %3 : i1 to i32
    %c0_i32_2 = arith.constant 0 : i32
    %5 = arith.cmpi ne, %4, %c0_i32_2 : i32
    scf.if %5 {
      %c0_5 = arith.constant 0 : index
      %c0_6 = arith.constant 0 : index
      %9 = vector.load %arg3[%c0_5, %c0_6] : memref<8x256xf32, #tpu.memory_space<vmem>>, vector<8x256xf32>
      tpu.vector_store %arg3[%c0_5, %c0_6], %2 {strides = array<i32>} : memref<8x256xf32, #tpu.memory_space<vmem>>, vector<8x256xf32>,
    } else {
    }
    %c0_i32_3 = arith.constant 0 : i32
    %6 = arith.cmpi sgt, %arg0, %c0_i32_3 : i32
    %7 = arith.extui %6 : i1 to i32
    %c0_i32_4 = arith.constant 0 : i32
    %8 = arith.cmpi ne, %7, %c0_i32_4 : i32
    scf.if %8 {
      %c1_i32 = arith.constant 1 : i32
      %9 = arith.subi %arg0, %c1_i32 : i32
      %10 = arith.index_cast %9 : i32 to index
      %11 = memref.load %arg1[%10] : memref<4xf32, #tpu.memory_space<smem>>
      %cst = arith.constant 1.000000e+00 : f32
      %12 = arith.subf %cst, %11 : f32
      %c0_5 = arith.constant 0 : index
      %c0_6 = arith.constant 0 : index
      %13 = vector.load %arg3[%c0_5, %c0_6] : memref<8x256xf32, #tpu.memory_space<vmem>>, vector<8x256xf32>
      %14 = vector.broadcast %12 : f32 to vector<8x256xf32>
      %15 = arith.mulf %14, %13 : vector<8x256xf32>
      %16 = vector.broadcast %11 : f32 to vector<8x256xf32>
      %17 = arith.mulf %16, %2 : vector<8x256xf32>
      %18 = arith.addf %15, %17 : vector<8x256xf32>
      %19 = arith.truncf %18 : vector<8x256xf32> to vector<8x256xbf16>
      %cst_7 = arith.constant dense<0.000000e+00> : vector<8x8xf32>
      %20 = tpu.matmul %19, %19, %cst_7 {dimension_numbers = #tpu.dot_dimension_numbers<[1], [1], [0], [0], [0, 0, 1, 0], [], []>} : vector<8x256xbf16>, vector<8x256xbf16>, vector<8x8xf32> -> vector<8x8xf32>
      %21 = tpu.iota {dimensions = array<i32: 1>} : vector<8x8xi32>
      %22 = tpu.iota {dimensions = array<i32: 0>} : vector<8x1xi32>
      %cst_8 = arith.constant 0.000000e+00 : f32
      %23 = vector.broadcast %cst_8 : f32 to vector<8x8xf32>
      %24 = vector.extract_strided_slice %23 {offsets = [0, 0], sizes = [1, 8], strides = [1, 1]} : vector<8x8xf32> to vector<1x8xf32>
      %25 = vector.broadcast %24 : vector<1x8xf32> to vector<8x8xf32>
      %26 = arith.mulf %23, %25 : vector<8x8xf32>
      %cst_9 = arith.constant dense<0.000000e+00> : vector<8xf32>
      %27 = vector.multi_reduction <add>, %26, %cst_9 [1] : vector<8x8xf32> to vector<8xf32>
      %28 = vector.shape_cast %27 : vector<8xf32> to vector<8x1xf32>
      %29 = vector.extract_strided_slice %20 {offsets = [0, 0], sizes = [8, 1], strides = [1, 1]} : vector<8x8xf32> to vector<8x1xf32>
      %30 = arith.subf %29, %28 : vector<8x1xf32>
      %31 = vector.extract_strided_slice %30 {offsets = [0, 0], sizes = [1, 1], strides = [1, 1]} : vector<8x1xf32> to vector<1x1xf32>
      %cst_10 = arith.constant 0.00999999977 : f32
      %32 = vector.broadcast %cst_10 : f32 to vector<1x1xf32>
      %33 = arith.addf %31, %32 : vector<1x1xf32>
      %34 = math.rsqrt %33 : vector<1x1xf32>
      %35 = vector.broadcast %34 : vector<1x1xf32> to vector<8x1xf32>
      %36 = arith.mulf %30, %35 : vector<8x1xf32>
      %c0_i32_11 = arith.constant 0 : i32
      %37 = vector.broadcast %c0_i32_11 : i32 to vector<8x1xi32>
      %38 = arith.cmpi eq, %22, %37 : vector<8x1xi32>
      %39 = arith.mulf %33, %34 : vector<1x1xf32>
      %40 = vector.shape_cast %39 : vector<1x1xf32> to vector<1x1xf32>
      %41 = vector.broadcast %40 : vector<1x1xf32> to vector<8x1xf32>
      %42 = arith.select %38, %41, %36 : vector<8x1xi1>, vector<8x1xf32>
      %c0_i32_12 = arith.constant 0 : i32
      %43 = vector.broadcast %c0_i32_12 : i32 to vector<8x1xi32>
      %44 = arith.cmpi sge, %22, %43 : vector<8x1xi32>
      %cst_13 = arith.constant 0.000000e+00 : f32
      %45 = vector.broadcast %cst_13 : f32 to vector<8x1xf32>
      %46 = arith.select %44, %42, %45 : vector<8x1xi1>, vector<8x1xf32>
      %c0_i32_14 = arith.constant 0 : i32
      %47 = vector.broadcast %c0_i32_14 : i32 to vector<8x8xi32>
      %48 = arith.cmpi eq, %21, %47 : vector<8x8xi32>
      %49 = vector.shape_cast %46 : vector<8x1xf32> to vector<8x1xf32>
      %50 = vector.broadcast %49 : vector<8x1xf32> to vector<8x8xf32>
      %51 = arith.select %48, %50, %23 : vector<8x8xi1>, vector<8x8xf32>
      %52 = vector.extract_strided_slice %51 {offsets = [1, 0], sizes = [1, 8], strides = [1, 1]} : vector<8x8xf32> to vector<1x8xf32>
      %53 = vector.broadcast %52 : vector<1x8xf32> to vector<8x8xf32>
      %54 = arith.mulf %51, %53 : vector<8x8xf32>
      %cst_15 = arith.constant dense<0.000000e+00> : vector<8xf32>
      %55 = vector.multi_reduction <add>, %54, %cst_15 [1] : vector<8x8xf32> to vector<8xf32>
      %56 = vector.shape_cast %55 : vector<8xf32> to vector<8x1xf32>
      %57 = vector.extract_strided_slice %20 {offsets = [0, 1], sizes = [8, 1], strides = [1, 1]} : vector<8x8xf32> to vector<8x1xf32>
      %58 = arith.subf %57, %56 : vector<8x1xf32>
      %59 = vector.extract_strided_slice %58 {offsets = [1, 0], sizes = [1, 1], strides = [1, 1]} : vector<8x1xf32> to vector<1x1xf32>
      %cst_16 = arith.constant 0.00999999977 : f32
      %60 = vector.broadcast %cst_16 : f32 to vector<1x1xf32>
      %61 = arith.addf %59, %60 : vector<1x1xf32>
      %62 = math.rsqrt %61 : vector<1x1xf32>
      %63 = vector.broadcast %62 : vector<1x1xf32> to vector<8x1xf32>
      %64 = arith.mulf %58, %63 : vector<8x1xf32>
      %c1_i32_17 = arith.constant 1 : i32
      %65 = vector.broadcast %c1_i32_17 : i32 to vector<8x1xi32>
      %66 = arith.cmpi eq, %22, %65 : vector<8x1xi32>
      %67 = arith.mulf %61, %62 : vector<1x1xf32>
      %68 = vector.shape_cast %67 : vector<1x1xf32> to vector<1x1xf32>
      %69 = vector.broadcast %68 : vector<1x1xf32> to vector<8x1xf32>
      %70 = arith.select %66, %69, %64 : vector<8x1xi1>, vector<8x1xf32>
      %c1_i32_18 = arith.constant 1 : i32
      %71 = vector.broadcast %c1_i32_18 : i32 to vector<8x1xi32>
      %72 = arith.cmpi sge, %22, %71 : vector<8x1xi32>
      %cst_19 = arith.constant 0.000000e+00 : f32
      %73 = vector.broadcast %cst_19 : f32 to vector<8x1xf32>
      %74 = arith.select %72, %70, %73 : vector<8x1xi1>, vector<8x1xf32>
      %c1_i32_20 = arith.constant 1 : i32
      %75 = vector.broadcast %c1_i32_20 : i32 to vector<8x8xi32>
      %76 = arith.cmpi eq, %21, %75 : vector<8x8xi32>
      %77 = vector.shape_cast %74 : vector<8x1xf32> to vector<8x1xf32>
      %78 = vector.broadcast %77 : vector<8x1xf32> to vector<8x8xf32>
      %79 = arith.select %76, %78, %51 : vector<8x8xi1>, vector<8x8xf32>
      %80 = vector.extract_strided_slice %79 {offsets = [2, 0], sizes = [1, 8], strides = [1, 1]} : vector<8x8xf32> to vector<1x8xf32>
      %81 = vector.broadcast %80 : vector<1x8xf32> to vector<8x8xf32>
      %82 = arith.mulf %79, %81 : vector<8x8xf32>
      %cst_21 = arith.constant dense<0.000000e+00> : vector<8xf32>
      %83 = vector.multi_reduction <add>, %82, %cst_21 [1] : vector<8x8xf32> to vector<8xf32>
      %84 = vector.shape_cast %83 : vector<8xf32> to vector<8x1xf32>
      %85 = vector.extract_strided_slice %20 {offsets = [0, 2], sizes = [8, 1], strides = [1, 1]} : vector<8x8xf32> to vector<8x1xf32>
      %86 = arith.subf %85, %84 : vector<8x1xf32>
      %87 = vector.extract_strided_slice %86 {offsets = [2, 0], sizes = [1, 1], strides = [1, 1]} : vector<8x1xf32> to vector<1x1xf32>
      %cst_22 = arith.constant 0.00999999977 : f32
      %88 = vector.broadcast %cst_22 : f32 to vector<1x1xf32>
      %89 = arith.addf %87, %88 : vector<1x1xf32>
      %90 = math.rsqrt %89 : vector<1x1xf32>
      %91 = vector.broadcast %90 : vector<1x1xf32> to vector<8x1xf32>
      %92 = arith.mulf %86, %91 : vector<8x1xf32>
      %c2_i32 = arith.constant 2 : i32
      %93 = vector.broadcast %c2_i32 : i32 to vector<8x1xi32>
      %94 = arith.cmpi eq, %22, %93 : vector<8x1xi32>
      %95 = arith.mulf %89, %90 : vector<1x1xf32>
      %96 = vector.shape_cast %95 : vector<1x1xf32> to vector<1x1xf32>
      %97 = vector.broadcast %96 : vector<1x1xf32> to vector<8x1xf32>
      %98 = arith.select %94, %97, %92 : vector<8x1xi1>, vector<8x1xf32>
      %c2_i32_23 = arith.constant 2 : i32
      %99 = vector.broadcast %c2_i32_23 : i32 to vector<8x1xi32>
      %100 = arith.cmpi sge, %22, %99 : vector<8x1xi32>
      %cst_24 = arith.constant 0.000000e+00 : f32
      %101 = vector.broadcast %cst_24 : f32 to vector<8x1xf32>
      %102 = arith.select %100, %98, %101 : vector<8x1xi1>, vector<8x1xf32>
      %c2_i32_25 = arith.constant 2 : i32
      %103 = vector.broadcast %c2_i32_25 : i32 to vector<8x8xi32>
      %104 = arith.cmpi eq, %21, %103 : vector<8x8xi32>
      %105 = vector.shape_cast %102 : vector<8x1xf32> to vector<8x1xf32>
      %106 = vector.broadcast %105 : vector<8x1xf32> to vector<8x8xf32>
      %107 = arith.select %104, %106, %79 : vector<8x8xi1>, vector<8x8xf32>
      %108 = vector.extract_strided_slice %107 {offsets = [3, 0], sizes = [1, 8], strides = [1, 1]} : vector<8x8xf32> to vector<1x8xf32>
      %109 = vector.broadcast %108 : vector<1x8xf32> to vector<8x8xf32>
      %110 = arith.mulf %107, %109 : vector<8x8xf32>
      %cst_26 = arith.constant dense<0.000000e+00> : vector<8xf32>
      %111 = vector.multi_reduction <add>, %110, %cst_26 [1] : vector<8x8xf32> to vector<8xf32>
      %112 = vector.shape_cast %111 : vector<8xf32> to vector<8x1xf32>
      %113 = vector.extract_strided_slice %20 {offsets = [0, 3], sizes = [8, 1], strides = [1, 1]} : vector<8x8xf32> to vector<8x1xf32>
      %114 = arith.subf %113, %112 : vector<8x1xf32>
      %115 = vector.extract_strided_slice %114 {offsets = [3, 0], sizes = [1, 1], strides = [1, 1]} : vector<8x1xf32> to vector<1x1xf32>
      %cst_27 = arith.constant 0.00999999977 : f32
      %116 = vector.broadcast %cst_27 : f32 to vector<1x1xf32>
      %117 = arith.addf %115, %116 : vector<1x1xf32>
      %118 = math.rsqrt %117 : vector<1x1xf32>
      %119 = vector.broadcast %118 : vector<1x1xf32> to vector<8x1xf32>
      %120 = arith.mulf %114, %119 : vector<8x1xf32>
      %c3_i32 = arith.constant 3 : i32
      %121 = vector.broadcast %c3_i32 : i32 to vector<8x1xi32>
      %122 = arith.cmpi eq, %22, %121 : vector<8x1xi32>
      %123 = arith.mulf %117, %118 : vector<1x1xf32>
      %124 = vector.shape_cast %123 : vector<1x1xf32> to vector<1x1xf32>
      %125 = vector.broadcast %124 : vector<1x1xf32> to vector<8x1xf32>
      %126 = arith.select %122, %125, %120 : vector<8x1xi1>, vector<8x1xf32>
      %c3_i32_28 = arith.constant 3 : i32
      %127 = vector.broadcast %c3_i32_28 : i32 to vector<8x1xi32>
      %128 = arith.cmpi sge, %22, %127 : vector<8x1xi32>
      %cst_29 = arith.constant 0.000000e+00 : f32
      %129 = vector.broadcast %cst_29 : f32 to vector<8x1xf32>
      %130 = arith.select %128, %126, %129 : vector<8x1xi1>, vector<8x1xf32>
      %c3_i32_30 = arith.constant 3 : i32
      %131 = vector.broadcast %c3_i32_30 : i32 to vector<8x8xi32>
      %132 = arith.cmpi eq, %21, %131 : vector<8x8xi32>
      %133 = vector.shape_cast %130 : vector<8x1xf32> to vector<8x1xf32>
      %134 = vector.broadcast %133 : vector<8x1xf32> to vector<8x8xf32>
      %135 = arith.select %132, %134, %107 : vector<8x8xi1>, vector<8x8xf32>
      %136 = vector.extract_strided_slice %135 {offsets = [4, 0], sizes = [1, 8], strides = [1, 1]} : vector<8x8xf32> to vector<1x8xf32>
      %137 = vector.broadcast %136 : vector<1x8xf32> to vector<8x8xf32>
      %138 = arith.mulf %135, %137 : vector<8x8xf32>
      %cst_31 = arith.constant dense<0.000000e+00> : vector<8xf32>
      %139 = vector.multi_reduction <add>, %138, %cst_31 [1] : vector<8x8xf32> to vector<8xf32>
      %140 = vector.shape_cast %139 : vector<8xf32> to vector<8x1xf32>
      %141 = vector.extract_strided_slice %20 {offsets = [0, 4], sizes = [8, 1], strides = [1, 1]} : vector<8x8xf32> to vector<8x1xf32>
      %142 = arith.subf %141, %140 : vector<8x1xf32>
      %143 = vector.extract_strided_slice %142 {offsets = [4, 0], sizes = [1, 1], strides = [1, 1]} : vector<8x1xf32> to vector<1x1xf32>
      %cst_32 = arith.constant 0.00999999977 : f32
      %144 = vector.broadcast %cst_32 : f32 to vector<1x1xf32>
      %145 = arith.addf %143, %144 : vector<1x1xf32>
      %146 = math.rsqrt %145 : vector<1x1xf32>
      %147 = vector.broadcast %146 : vector<1x1xf32> to vector<8x1xf32>
      %148 = arith.mulf %142, %147 : vector<8x1xf32>
      %c4_i32 = arith.constant 4 : i32
      %149 = vector.broadcast %c4_i32 : i32 to vector<8x1xi32>
      %150 = arith.cmpi eq, %22, %149 : vector<8x1xi32>
      %151 = arith.mulf %145, %146 : vector<1x1xf32>
      %152 = vector.shape_cast %151 : vector<1x1xf32> to vector<1x1xf32>
      %153 = vector.broadcast %152 : vector<1x1xf32> to vector<8x1xf32>
      %154 = arith.select %150, %153, %148 : vector<8x1xi1>, vector<8x1xf32>
      %c4_i32_33 = arith.constant 4 : i32
      %155 = vector.broadcast %c4_i32_33 : i32 to vector<8x1xi32>
      %156 = arith.cmpi sge, %22, %155 : vector<8x1xi32>
      %cst_34 = arith.constant 0.000000e+00 : f32
      %157 = vector.broadcast %cst_34 : f32 to vector<8x1xf32>
      %158 = arith.select %156, %154, %157 : vector<8x1xi1>, vector<8x1xf32>
      %c4_i32_35 = arith.constant 4 : i32
      %159 = vector.broadcast %c4_i32_35 : i32 to vector<8x8xi32>
      %160 = arith.cmpi eq, %21, %159 : vector<8x8xi32>
      %161 = vector.shape_cast %158 : vector<8x1xf32> to vector<8x1xf32>
      %162 = vector.broadcast %161 : vector<8x1xf32> to vector<8x8xf32>
      %163 = arith.select %160, %162, %135 : vector<8x8xi1>, vector<8x8xf32>
      %164 = vector.extract_strided_slice %163 {offsets = [5, 0], sizes = [1, 8], strides = [1, 1]} : vector<8x8xf32> to vector<1x8xf32>
      %165 = vector.broadcast %164 : vector<1x8xf32> to vector<8x8xf32>
      %166 = arith.mulf %163, %165 : vector<8x8xf32>
      %cst_36 = arith.constant dense<0.000000e+00> : vector<8xf32>
      %167 = vector.multi_reduction <add>, %166, %cst_36 [1] : vector<8x8xf32> to vector<8xf32>
      %168 = vector.shape_cast %167 : vector<8xf32> to vector<8x1xf32>
      %169 = vector.extract_strided_slice %20 {offsets = [0, 5], sizes = [8, 1], strides = [1, 1]} : vector<8x8xf32> to vector<8x1xf32>
      %170 = arith.subf %169, %168 : vector<8x1xf32>
      %171 = vector.extract_strided_slice %170 {offsets = [5, 0], sizes = [1, 1], strides = [1, 1]} : vector<8x1xf32> to vector<1x1xf32>
      %cst_37 = arith.constant 0.00999999977 : f32
      %172 = vector.broadcast %cst_37 : f32 to vector<1x1xf32>
      %173 = arith.addf %171, %172 : vector<1x1xf32>
      %174 = math.rsqrt %173 : vector<1x1xf32>
      %175 = vector.broadcast %174 : vector<1x1xf32> to vector<8x1xf32>
      %176 = arith.mulf %170, %175 : vector<8x1xf32>
      %c5_i32 = arith.constant 5 : i32
      %177 = vector.broadcast %c5_i32 : i32 to vector<8x1xi32>
      %178 = arith.cmpi eq, %22, %177 : vector<8x1xi32>
      %179 = arith.mulf %173, %174 : vector<1x1xf32>
      %180 = vector.shape_cast %179 : vector<1x1xf32> to vector<1x1xf32>
      %181 = vector.broadcast %180 : vector<1x1xf32> to vector<8x1xf32>
      %182 = arith.select %178, %181, %176 : vector<8x1xi1>, vector<8x1xf32>
      %c5_i32_38 = arith.constant 5 : i32
      %183 = vector.broadcast %c5_i32_38 : i32 to vector<8x1xi32>
      %184 = arith.cmpi sge, %22, %183 : vector<8x1xi32>
      %cst_39 = arith.constant 0.000000e+00 : f32
      %185 = vector.broadcast %cst_39 : f32 to vector<8x1xf32>
      %186 = arith.select %184, %182, %185 : vector<8x1xi1>, vector<8x1xf32>
      %c5_i32_40 = arith.constant 5 : i32
      %187 = vector.broadcast %c5_i32_40 : i32 to vector<8x8xi32>
      %188 = arith.cmpi eq, %21, %187 : vector<8x8xi32>
      %189 = vector.shape_cast %186 : vector<8x1xf32> to vector<8x1xf32>
      %190 = vector.broadcast %189 : vector<8x1xf32> to vector<8x8xf32>
      %191 = arith.select %188, %190, %163 : vector<8x8xi1>, vector<8x8xf32>
      %192 = vector.extract_strided_slice %191 {offsets = [6, 0], sizes = [1, 8], strides = [1, 1]} : vector<8x8xf32> to vector<1x8xf32>
      %193 = vector.broadcast %192 : vector<1x8xf32> to vector<8x8xf32>
      %194 = arith.mulf %191, %193 : vector<8x8xf32>
      %cst_41 = arith.constant dense<0.000000e+00> : vector<8xf32>
      %195 = vector.multi_reduction <add>, %194, %cst_41 [1] : vector<8x8xf32> to vector<8xf32>
      %196 = vector.shape_cast %195 : vector<8xf32> to vector<8x1xf32>
      %197 = vector.extract_strided_slice %20 {offsets = [0, 6], sizes = [8, 1], strides = [1, 1]} : vector<8x8xf32> to vector<8x1xf32>
      %198 = arith.subf %197, %196 : vector<8x1xf32>
      %199 = vector.extract_strided_slice %198 {offsets = [6, 0], sizes = [1, 1], strides = [1, 1]} : vector<8x1xf32> to vector<1x1xf32>
      %cst_42 = arith.constant 0.00999999977 : f32
      %200 = vector.broadcast %cst_42 : f32 to vector<1x1xf32>
      %201 = arith.addf %199, %200 : vector<1x1xf32>
      %202 = math.rsqrt %201 : vector<1x1xf32>
      %203 = vector.broadcast %202 : vector<1x1xf32> to vector<8x1xf32>
      %204 = arith.mulf %198, %203 : vector<8x1xf32>
      %c6_i32 = arith.constant 6 : i32
      %205 = vector.broadcast %c6_i32 : i32 to vector<8x1xi32>
      %206 = arith.cmpi eq, %22, %205 : vector<8x1xi32>
      %207 = arith.mulf %201, %202 : vector<1x1xf32>
      %208 = vector.shape_cast %207 : vector<1x1xf32> to vector<1x1xf32>
      %209 = vector.broadcast %208 : vector<1x1xf32> to vector<8x1xf32>
      %210 = arith.select %206, %209, %204 : vector<8x1xi1>, vector<8x1xf32>
      %c6_i32_43 = arith.constant 6 : i32
      %211 = vector.broadcast %c6_i32_43 : i32 to vector<8x1xi32>
      %212 = arith.cmpi sge, %22, %211 : vector<8x1xi32>
      %cst_44 = arith.constant 0.000000e+00 : f32
      %213 = vector.broadcast %cst_44 : f32 to vector<8x1xf32>
      %214 = arith.select %212, %210, %213 : vector<8x1xi1>, vector<8x1xf32>
      %c6_i32_45 = arith.constant 6 : i32
      %215 = vector.broadcast %c6_i32_45 : i32 to vector<8x8xi32>
      %216 = arith.cmpi eq, %21, %215 : vector<8x8xi32>
      %217 = vector.shape_cast %214 : vector<8x1xf32> to vector<8x1xf32>
      %218 = vector.broadcast %217 : vector<8x1xf32> to vector<8x8xf32>
      %219 = arith.select %216, %218, %191 : vector<8x8xi1>, vector<8x8xf32>
      %220 = vector.extract_strided_slice %219 {offsets = [7, 0], sizes = [1, 8], strides = [1, 1]} : vector<8x8xf32> to vector<1x8xf32>
      %221 = vector.broadcast %220 : vector<1x8xf32> to vector<8x8xf32>
      %222 = arith.mulf %219, %221 : vector<8x8xf32>
      %cst_46 = arith.constant dense<0.000000e+00> : vector<8xf32>
      %223 = vector.multi_reduction <add>, %222, %cst_46 [1] : vector<8x8xf32> to vector<8xf32>
      %224 = vector.shape_cast %223 : vector<8xf32> to vector<8x1xf32>
      %225 = vector.extract_strided_slice %20 {offsets = [0, 7], sizes = [8, 1], strides = [1, 1]} : vector<8x8xf32> to vector<8x1xf32>
      %226 = arith.subf %225, %224 : vector<8x1xf32>
      %227 = vector.extract_strided_slice %226 {offsets = [7, 0], sizes = [1, 1], strides = [1, 1]} : vector<8x1xf32> to vector<1x1xf32>
      %cst_47 = arith.constant 0.00999999977 : f32
      %228 = vector.broadcast %cst_47 : f32 to vector<1x1xf32>
      %229 = arith.addf %227, %228 : vector<1x1xf32>
      %230 = math.rsqrt %229 : vector<1x1xf32>
      %231 = vector.broadcast %230 : vector<1x1xf32> to vector<8x1xf32>
      %232 = arith.mulf %226, %231 : vector<8x1xf32>
      %c7_i32 = arith.constant 7 : i32
      %233 = vector.broadcast %c7_i32 : i32 to vector<8x1xi32>
      %234 = arith.cmpi eq, %22, %233 : vector<8x1xi32>
      %235 = arith.mulf %229, %230 : vector<1x1xf32>
      %236 = vector.shape_cast %235 : vector<1x1xf32> to vector<1x1xf32>
      %237 = vector.broadcast %236 : vector<1x1xf32> to vector<8x1xf32>
      %238 = arith.select %234, %237, %232 : vector<8x1xi1>, vector<8x1xf32>
      %c7_i32_48 = arith.constant 7 : i32
      %239 = vector.broadcast %c7_i32_48 : i32 to vector<8x1xi32>
      %240 = arith.cmpi sge, %22, %239 : vector<8x1xi32>
      %cst_49 = arith.constant 0.000000e+00 : f32
      %241 = vector.broadcast %cst_49 : f32 to vector<8x1xf32>
      %242 = arith.select %240, %238, %241 : vector<8x1xi1>, vector<8x1xf32>
      %c7_i32_50 = arith.constant 7 : i32
      %243 = vector.broadcast %c7_i32_50 : i32 to vector<8x8xi32>
      %244 = arith.cmpi eq, %21, %243 : vector<8x8xi32>
      %245 = vector.shape_cast %242 : vector<8x1xf32> to vector<8x1xf32>
      %246 = vector.broadcast %245 : vector<8x1xf32> to vector<8x8xf32>
      %247 = arith.select %244, %246, %219 : vector<8x8xi1>, vector<8x8xf32>
      %248 = vector.extract_strided_slice %18 {offsets = [0, 0], sizes = [1, 256], strides = [1, 1]} : vector<8x256xf32> to vector<1x256xf32>
      %249 = vector.extract_strided_slice %247 {offsets = [0, 0], sizes = [1, 1], strides = [1, 1]} : vector<8x8xf32> to vector<1x1xf32>
      %cst_51 = arith.constant 1.000000e+00 : f32
      %250 = vector.broadcast %cst_51 : f32 to vector<1x1xf32>
      %251 = arith.divf %250, %249 : vector<1x1xf32>
      %252 = vector.broadcast %251 : vector<1x1xf32> to vector<1x256xf32>
      %253 = arith.mulf %248, %252 : vector<1x256xf32>
      %254 = vector.extract_strided_slice %18 {offsets = [1, 0], sizes = [1, 256], strides = [1, 1]} : vector<8x256xf32> to vector<1x256xf32>
      %255 = vector.extract_strided_slice %247 {offsets = [1, 0], sizes = [1, 1], strides = [1, 1]} : vector<8x8xf32> to vector<1x1xf32>
      %256 = vector.broadcast %255 : vector<1x1xf32> to vector<1x256xf32>
      %257 = arith.mulf %256, %253 : vector<1x256xf32>
      %258 = arith.subf %254, %257 : vector<1x256xf32>
      %259 = vector.extract_strided_slice %247 {offsets = [1, 1], sizes = [1, 1], strides = [1, 1]} : vector<8x8xf32> to vector<1x1xf32>
      %cst_52 = arith.constant 1.000000e+00 : f32
      %260 = vector.broadcast %cst_52 : f32 to vector<1x1xf32>
      %261 = arith.divf %260, %259 : vector<1x1xf32>
      %262 = vector.broadcast %261 : vector<1x1xf32> to vector<1x256xf32>
      %263 = arith.mulf %258, %262 : vector<1x256xf32>
      %264 = vector.extract_strided_slice %18 {offsets = [2, 0], sizes = [1, 256], strides = [1, 1]} : vector<8x256xf32> to vector<1x256xf32>
      %265 = vector.extract_strided_slice %247 {offsets = [2, 0], sizes = [1, 1], strides = [1, 1]} : vector<8x8xf32> to vector<1x1xf32>
      %266 = vector.broadcast %265 : vector<1x1xf32> to vector<1x256xf32>
      %267 = arith.mulf %266, %253 : vector<1x256xf32>
      %268 = arith.subf %264, %267 : vector<1x256xf32>
      %269 = vector.extract_strided_slice %247 {offsets = [2, 1], sizes = [1, 1], strides = [1, 1]} : vector<8x8xf32> to vector<1x1xf32>
      %270 = vector.broadcast %269 : vector<1x1xf32> to vector<1x256xf32>
      %271 = arith.mulf %270, %263 : vector<1x256xf32>
      %272 = arith.subf %268, %271 : vector<1x256xf32>
      %273 = vector.extract_strided_slice %247 {offsets = [2, 2], sizes = [1, 1], strides = [1, 1]} : vector<8x8xf32> to vector<1x1xf32>
      %cst_53 = arith.constant 1.000000e+00 : f32
      %274 = vector.broadcast %cst_53 : f32 to vector<1x1xf32>
      %275 = arith.divf %274, %273 : vector<1x1xf32>
      %276 = vector.broadcast %275 : vector<1x1xf32> to vector<1x256xf32>
      %277 = arith.mulf %272, %276 : vector<1x256xf32>
      %278 = vector.extract_strided_slice %18 {offsets = [3, 0], sizes = [1, 256], strides = [1, 1]} : vector<8x256xf32> to vector<1x256xf32>
      %279 = vector.extract_strided_slice %247 {offsets = [3, 0], sizes = [1, 1], strides = [1, 1]} : vector<8x8xf32> to vector<1x1xf32>
      %280 = vector.broadcast %279 : vector<1x1xf32> to vector<1x256xf32>
      %281 = arith.mulf %280, %253 : vector<1x256xf32>
      %282 = arith.subf %278, %281 : vector<1x256xf32>
      %283 = vector.extract_strided_slice %247 {offsets = [3, 1], sizes = [1, 1], strides = [1, 1]} : vector<8x8xf32> to vector<1x1xf32>
      %284 = vector.broadcast %283 : vector<1x1xf32> to vector<1x256xf32>
      %285 = arith.mulf %284, %263 : vector<1x256xf32>
      %286 = arith.subf %282, %285 : vector<1x256xf32>
      %287 = vector.extract_strided_slice %247 {offsets = [3, 2], sizes = [1, 1], strides = [1, 1]} : vector<8x8xf32> to vector<1x1xf32>
      %288 = vector.broadcast %287 : vector<1x1xf32> to vector<1x256xf32>
      %289 = arith.mulf %288, %277 : vector<1x256xf32>
      %290 = arith.subf %286, %289 : vector<1x256xf32>
      %291 = vector.extract_strided_slice %247 {offsets = [3, 3], sizes = [1, 1], strides = [1, 1]} : vector<8x8xf32> to vector<1x1xf32>
      %cst_54 = arith.constant 1.000000e+00 : f32
      %292 = vector.broadcast %cst_54 : f32 to vector<1x1xf32>
      %293 = arith.divf %292, %291 : vector<1x1xf32>
      %294 = vector.broadcast %293 : vector<1x1xf32> to vector<1x256xf32>
      %295 = arith.mulf %290, %294 : vector<1x256xf32>
      %296 = vector.extract_strided_slice %18 {offsets = [4, 0], sizes = [1, 256], strides = [1, 1]} : vector<8x256xf32> to vector<1x256xf32>
      %297 = vector.extract_strided_slice %247 {offsets = [4, 0], sizes = [1, 1], strides = [1, 1]} : vector<8x8xf32> to vector<1x1xf32>
      %298 = vector.broadcast %297 : vector<1x1xf32> to vector<1x256xf32>
      %299 = arith.mulf %298, %253 : vector<1x256xf32>
      %300 = arith.subf %296, %299 : vector<1x256xf32>
      %301 = vector.extract_strided_slice %247 {offsets = [4, 1], sizes = [1, 1], strides = [1, 1]} : vector<8x8xf32> to vector<1x1xf32>
      %302 = vector.broadcast %301 : vector<1x1xf32> to vector<1x256xf32>
      %303 = arith.mulf %302, %263 : vector<1x256xf32>
      %304 = arith.subf %300, %303 : vector<1x256xf32>
      %305 = vector.extract_strided_slice %247 {offsets = [4, 2], sizes = [1, 1], strides = [1, 1]} : vector<8x8xf32> to vector<1x1xf32>
      %306 = vector.broadcast %305 : vector<1x1xf32> to vector<1x256xf32>
      %307 = arith.mulf %306, %277 : vector<1x256xf32>
      %308 = arith.subf %304, %307 : vector<1x256xf32>
      %309 = vector.extract_strided_slice %247 {offsets = [4, 3], sizes = [1, 1], strides = [1, 1]} : vector<8x8xf32> to vector<1x1xf32>
      %310 = vector.broadcast %309 : vector<1x1xf32> to vector<1x256xf32>
      %311 = arith.mulf %310, %295 : vector<1x256xf32>
      %312 = arith.subf %308, %311 : vector<1x256xf32>
      %313 = vector.extract_strided_slice %247 {offsets = [4, 4], sizes = [1, 1], strides = [1, 1]} : vector<8x8xf32> to vector<1x1xf32>
      %cst_55 = arith.constant 1.000000e+00 : f32
      %314 = vector.broadcast %cst_55 : f32 to vector<1x1xf32>
      %315 = arith.divf %314, %313 : vector<1x1xf32>
      %316 = vector.broadcast %315 : vector<1x1xf32> to vector<1x256xf32>
      %317 = arith.mulf %312, %316 : vector<1x256xf32>
      %318 = vector.extract_strided_slice %18 {offsets = [5, 0], sizes = [1, 256], strides = [1, 1]} : vector<8x256xf32> to vector<1x256xf32>
      %319 = vector.extract_strided_slice %247 {offsets = [5, 0], sizes = [1, 1], strides = [1, 1]} : vector<8x8xf32> to vector<1x1xf32>
      %320 = vector.broadcast %319 : vector<1x1xf32> to vector<1x256xf32>
      %321 = arith.mulf %320, %253 : vector<1x256xf32>
      %322 = arith.subf %318, %321 : vector<1x256xf32>
      %323 = vector.extract_strided_slice %247 {offsets = [5, 1], sizes = [1, 1], strides = [1, 1]} : vector<8x8xf32> to vector<1x1xf32>
      %324 = vector.broadcast %323 : vector<1x1xf32> to vector<1x256xf32>
      %325 = arith.mulf %324, %263 : vector<1x256xf32>
      %326 = arith.subf %322, %325 : vector<1x256xf32>
      %327 = vector.extract_strided_slice %247 {offsets = [5, 2], sizes = [1, 1], strides = [1, 1]} : vector<8x8xf32> to vector<1x1xf32>
      %328 = vector.broadcast %327 : vector<1x1xf32> to vector<1x256xf32>
      %329 = arith.mulf %328, %277 : vector<1x256xf32>
      %330 = arith.subf %326, %329 : vector<1x256xf32>
      %331 = vector.extract_strided_slice %247 {offsets = [5, 3], sizes = [1, 1], strides = [1, 1]} : vector<8x8xf32> to vector<1x1xf32>
      %332 = vector.broadcast %331 : vector<1x1xf32> to vector<1x256xf32>
      %333 = arith.mulf %332, %295 : vector<1x256xf32>
      %334 = arith.subf %330, %333 : vector<1x256xf32>
      %335 = vector.extract_strided_slice %247 {offsets = [5, 4], sizes = [1, 1], strides = [1, 1]} : vector<8x8xf32> to vector<1x1xf32>
      %336 = vector.broadcast %335 : vector<1x1xf32> to vector<1x256xf32>
      %337 = arith.mulf %336, %317 : vector<1x256xf32>
      %338 = arith.subf %334, %337 : vector<1x256xf32>
      %339 = vector.extract_strided_slice %247 {offsets = [5, 5], sizes = [1, 1], strides = [1, 1]} : vector<8x8xf32> to vector<1x1xf32>
      %cst_56 = arith.constant 1.000000e+00 : f32
      %340 = vector.broadcast %cst_56 : f32 to vector<1x1xf32>
      %341 = arith.divf %340, %339 : vector<1x1xf32>
      %342 = vector.broadcast %341 : vector<1x1xf32> to vector<1x256xf32>
      %343 = arith.mulf %338, %342 : vector<1x256xf32>
      %344 = vector.extract_strided_slice %18 {offsets = [6, 0], sizes = [1, 256], strides = [1, 1]} : vector<8x256xf32> to vector<1x256xf32>
      %345 = vector.extract_strided_slice %247 {offsets = [6, 0], sizes = [1, 1], strides = [1, 1]} : vector<8x8xf32> to vector<1x1xf32>
      %346 = vector.broadcast %345 : vector<1x1xf32> to vector<1x256xf32>
      %347 = arith.mulf %346, %253 : vector<1x256xf32>
      %348 = arith.subf %344, %347 : vector<1x256xf32>
      %349 = vector.extract_strided_slice %247 {offsets = [6, 1], sizes = [1, 1], strides = [1, 1]} : vector<8x8xf32> to vector<1x1xf32>
      %350 = vector.broadcast %349 : vector<1x1xf32> to vector<1x256xf32>
      %351 = arith.mulf %350, %263 : vector<1x256xf32>
      %352 = arith.subf %348, %351 : vector<1x256xf32>
      %353 = vector.extract_strided_slice %247 {offsets = [6, 2], sizes = [1, 1], strides = [1, 1]} : vector<8x8xf32> to vector<1x1xf32>
      %354 = vector.broadcast %353 : vector<1x1xf32> to vector<1x256xf32>
      %355 = arith.mulf %354, %277 : vector<1x256xf32>
      %356 = arith.subf %352, %355 : vector<1x256xf32>
      %357 = vector.extract_strided_slice %247 {offsets = [6, 3], sizes = [1, 1], strides = [1, 1]} : vector<8x8xf32> to vector<1x1xf32>
      %358 = vector.broadcast %357 : vector<1x1xf32> to vector<1x256xf32>
      %359 = arith.mulf %358, %295 : vector<1x256xf32>
      %360 = arith.subf %356, %359 : vector<1x256xf32>
      %361 = vector.extract_strided_slice %247 {offsets = [6, 4], sizes = [1, 1], strides = [1, 1]} : vector<8x8xf32> to vector<1x1xf32>
      %362 = vector.broadcast %361 : vector<1x1xf32> to vector<1x256xf32>
      %363 = arith.mulf %362, %317 : vector<1x256xf32>
      %364 = arith.subf %360, %363 : vector<1x256xf32>
      %365 = vector.extract_strided_slice %247 {offsets = [6, 5], sizes = [1, 1], strides = [1, 1]} : vector<8x8xf32> to vector<1x1xf32>
      %366 = vector.broadcast %365 : vector<1x1xf32> to vector<1x256xf32>
      %367 = arith.mulf %366, %343 : vector<1x256xf32>
      %368 = arith.subf %364, %367 : vector<1x256xf32>
      %369 = vector.extract_strided_slice %247 {offsets = [6, 6], sizes = [1, 1], strides = [1, 1]} : vector<8x8xf32> to vector<1x1xf32>
      %cst_57 = arith.constant 1.000000e+00 : f32
      %370 = vector.broadcast %cst_57 : f32 to vector<1x1xf32>
      %371 = arith.divf %370, %369 : vector<1x1xf32>
      %372 = vector.broadcast %371 : vector<1x1xf32> to vector<1x256xf32>
      %373 = arith.mulf %368, %372 : vector<1x256xf32>
      %374 = vector.extract_strided_slice %18 {offsets = [7, 0], sizes = [1, 256], strides = [1, 1]} : vector<8x256xf32> to vector<1x256xf32>
      %375 = vector.extract_strided_slice %247 {offsets = [7, 0], sizes = [1, 1], strides = [1, 1]} : vector<8x8xf32> to vector<1x1xf32>
      %376 = vector.broadcast %375 : vector<1x1xf32> to vector<1x256xf32>
      %377 = arith.mulf %376, %253 : vector<1x256xf32>
      %378 = arith.subf %374, %377 : vector<1x256xf32>
      %379 = vector.extract_strided_slice %247 {offsets = [7, 1], sizes = [1, 1], strides = [1, 1]} : vector<8x8xf32> to vector<1x1xf32>
      %380 = vector.broadcast %379 : vector<1x1xf32> to vector<1x256xf32>
      %381 = arith.mulf %380, %263 : vector<1x256xf32>
      %382 = arith.subf %378, %381 : vector<1x256xf32>
      %383 = vector.extract_strided_slice %247 {offsets = [7, 2], sizes = [1, 1], strides = [1, 1]} : vector<8x8xf32> to vector<1x1xf32>
      %384 = vector.broadcast %383 : vector<1x1xf32> to vector<1x256xf32>
      %385 = arith.mulf %384, %277 : vector<1x256xf32>
      %386 = arith.subf %382, %385 : vector<1x256xf32>
      %387 = vector.extract_strided_slice %247 {offsets = [7, 3], sizes = [1, 1], strides = [1, 1]} : vector<8x8xf32> to vector<1x1xf32>
      %388 = vector.broadcast %387 : vector<1x1xf32> to vector<1x256xf32>
      %389 = arith.mulf %388, %295 : vector<1x256xf32>
      %390 = arith.subf %386, %389 : vector<1x256xf32>
      %391 = vector.extract_strided_slice %247 {offsets = [7, 4], sizes = [1, 1], strides = [1, 1]} : vector<8x8xf32> to vector<1x1xf32>
      %392 = vector.broadcast %391 : vector<1x1xf32> to vector<1x256xf32>
      %393 = arith.mulf %392, %317 : vector<1x256xf32>
      %394 = arith.subf %390, %393 : vector<1x256xf32>
      %395 = vector.extract_strided_slice %247 {offsets = [7, 5], sizes = [1, 1], strides = [1, 1]} : vector<8x8xf32> to vector<1x1xf32>
      %396 = vector.broadcast %395 : vector<1x1xf32> to vector<1x256xf32>
      %397 = arith.mulf %396, %343 : vector<1x256xf32>
      %398 = arith.subf %394, %397 : vector<1x256xf32>
      %399 = vector.extract_strided_slice %247 {offsets = [7, 6], sizes = [1, 1], strides = [1, 1]} : vector<8x8xf32> to vector<1x1xf32>
      %400 = vector.broadcast %399 : vector<1x1xf32> to vector<1x256xf32>
      %401 = arith.mulf %400, %373 : vector<1x256xf32>
      %402 = arith.subf %398, %401 : vector<1x256xf32>
      %403 = vector.extract_strided_slice %247 {offsets = [7, 7], sizes = [1, 1], strides = [1, 1]} : vector<8x8xf32> to vector<1x1xf32>
      %cst_58 = arith.constant 1.000000e+00 : f32
      %404 = vector.broadcast %cst_58 : f32 to vector<1x1xf32>
      %405 = arith.divf %404, %403 : vector<1x1xf32>
      %406 = vector.broadcast %405 : vector<1x1xf32> to vector<1x256xf32>
      %407 = arith.mulf %402, %406 : vector<1x256xf32>
      %408 = tpu.iota {dimensions = array<i32: 0>} : vector<8x1xi32>
      %cst_59 = arith.constant 0.000000e+00 : f32
      %409 = vector.broadcast %cst_59 : f32 to vector<8x256xf32>
      %c0_i32_60 = arith.constant 0 : i32
      %410 = vector.broadcast %c0_i32_60 : i32 to vector<8x1xi32>
      %411 = arith.cmpi eq, %408, %410 : vector<8x1xi32>
      %412 = vector.shape_cast %411 : vector<8x1xi1> to vector<8x1xi1>
      %413 = vector.broadcast %412 : vector<8x1xi1> to vector<8x256xi1>
      %414 = vector.shape_cast %253 : vector<1x256xf32> to vector<1x256xf32>
      %415 = vector.broadcast %414 : vector<1x256xf32> to vector<8x256xf32>
      %416 = arith.select %413, %415, %409 : vector<8x256xi1>, vector<8x256xf32>
      %c1_i32_61 = arith.constant 1 : i32
      %417 = vector.broadcast %c1_i32_61 : i32 to vector<8x1xi32>
      %418 = arith.cmpi eq, %408, %417 : vector<8x1xi32>
      %419 = vector.shape_cast %418 : vector<8x1xi1> to vector<8x1xi1>
      %420 = vector.broadcast %419 : vector<8x1xi1> to vector<8x256xi1>
      %421 = vector.shape_cast %263 : vector<1x256xf32> to vector<1x256xf32>
      %422 = vector.broadcast %421 : vector<1x256xf32> to vector<8x256xf32>
      %423 = arith.select %420, %422, %416 : vector<8x256xi1>, vector<8x256xf32>
      %c2_i32_62 = arith.constant 2 : i32
      %424 = vector.broadcast %c2_i32_62 : i32 to vector<8x1xi32>
      %425 = arith.cmpi eq, %408, %424 : vector<8x1xi32>
      %426 = vector.shape_cast %425 : vector<8x1xi1> to vector<8x1xi1>
      %427 = vector.broadcast %426 : vector<8x1xi1> to vector<8x256xi1>
      %428 = vector.shape_cast %277 : vector<1x256xf32> to vector<1x256xf32>
      %429 = vector.broadcast %428 : vector<1x256xf32> to vector<8x256xf32>
      %430 = arith.select %427, %429, %423 : vector<8x256xi1>, vector<8x256xf32>
      %c3_i32_63 = arith.constant 3 : i32
      %431 = vector.broadcast %c3_i32_63 : i32 to vector<8x1xi32>
      %432 = arith.cmpi eq, %408, %431 : vector<8x1xi32>
      %433 = vector.shape_cast %432 : vector<8x1xi1> to vector<8x1xi1>
      %434 = vector.broadcast %433 : vector<8x1xi1> to vector<8x256xi1>
      %435 = vector.shape_cast %295 : vector<1x256xf32> to vector<1x256xf32>
      %436 = vector.broadcast %435 : vector<1x256xf32> to vector<8x256xf32>
      %437 = arith.select %434, %436, %430 : vector<8x256xi1>, vector<8x256xf32>
      %c4_i32_64 = arith.constant 4 : i32
      %438 = vector.broadcast %c4_i32_64 : i32 to vector<8x1xi32>
      %439 = arith.cmpi eq, %408, %438 : vector<8x1xi32>
      %440 = vector.shape_cast %439 : vector<8x1xi1> to vector<8x1xi1>
      %441 = vector.broadcast %440 : vector<8x1xi1> to vector<8x256xi1>
      %442 = vector.shape_cast %317 : vector<1x256xf32> to vector<1x256xf32>
      %443 = vector.broadcast %442 : vector<1x256xf32> to vector<8x256xf32>
      %444 = arith.select %441, %443, %437 : vector<8x256xi1>, vector<8x256xf32>
      %c5_i32_65 = arith.constant 5 : i32
      %445 = vector.broadcast %c5_i32_65 : i32 to vector<8x1xi32>
      %446 = arith.cmpi eq, %408, %445 : vector<8x1xi32>
      %447 = vector.shape_cast %446 : vector<8x1xi1> to vector<8x1xi1>
      %448 = vector.broadcast %447 : vector<8x1xi1> to vector<8x256xi1>
      %449 = vector.shape_cast %343 : vector<1x256xf32> to vector<1x256xf32>
      %450 = vector.broadcast %449 : vector<1x256xf32> to vector<8x256xf32>
      %451 = arith.select %448, %450, %444 : vector<8x256xi1>, vector<8x256xf32>
      %c6_i32_66 = arith.constant 6 : i32
      %452 = vector.broadcast %c6_i32_66 : i32 to vector<8x1xi32>
      %453 = arith.cmpi eq, %408, %452 : vector<8x1xi32>
      %454 = vector.shape_cast %453 : vector<8x1xi1> to vector<8x1xi1>
      %455 = vector.broadcast %454 : vector<8x1xi1> to vector<8x256xi1>
      %456 = vector.shape_cast %373 : vector<1x256xf32> to vector<1x256xf32>
      %457 = vector.broadcast %456 : vector<1x256xf32> to vector<8x256xf32>
      %458 = arith.select %455, %457, %451 : vector<8x256xi1>, vector<8x256xf32>
      %c7_i32_67 = arith.constant 7 : i32
      %459 = vector.broadcast %c7_i32_67 : i32 to vector<8x1xi32>
      %460 = arith.cmpi eq, %408, %459 : vector<8x1xi32>
      %461 = vector.shape_cast %460 : vector<8x1xi1> to vector<8x1xi1>
      %462 = vector.broadcast %461 : vector<8x1xi1> to vector<8x256xi1>
      %463 = vector.shape_cast %407 : vector<1x256xf32> to vector<1x256xf32>
      %464 = vector.broadcast %463 : vector<1x256xf32> to vector<8x256xf32>
      %465 = arith.select %462, %464, %458 : vector<8x256xi1>, vector<8x256xf32>
      %c0_68 = arith.constant 0 : index
      %c0_69 = arith.constant 0 : index
      %466 = vector.load %arg3[%c0_68, %c0_69] : memref<8x256xf32, #tpu.memory_space<vmem>>, vector<8x256xf32>
      tpu.vector_store %arg3[%c0_68, %c0_69], %465 {strides = array<i32>} : memref<8x256xf32, #tpu.memory_space<vmem>>, vector<8x256xf32>,
    } else {
    }
    return
  }
  func.func @transform_0(%arg0: i32) -> i32 {
    %c0_i32 = arith.constant 0 : i32
    %c0_i32_0 = arith.constant 0 : i32
    return %c0_i32 : i32
  }
  func.func @transform_1(%arg0: i32) -> (i32, i32, i32) {
    %c0_i32 = arith.constant 0 : i32
    %c0_i32_0 = arith.constant 0 : i32
    %c0_i32_1 = arith.constant 0 : i32
    return %arg0, %c0_i32, %c0_i32_0 : i32, i32, i32
  }
  func.func @transform_2(%arg0: i32) -> (i32, i32) {
    %c0_i32 = arith.constant 0 : i32
    %c0_i32_0 = arith.constant 0 : i32
    %c0_i32_1 = arith.constant 0 : i32
    return %c0_i32, %c0_i32_0 : i32, i32
  }
}

module attributes {stable_mosaic.version = 11 : i64} {
  func.func @_proj_kernel(%arg0: i32, %arg1: memref<32x256xbf16, #tpu.memory_space<vmem>>, %arg2: memref<8x256xbf16, #tpu.memory_space<vmem>>, %arg3: memref<32x8xf32, #tpu.memory_space<vmem>>) attributes {dimension_semantics = [#tpu.dimension_semantics<parallel>], iteration_bounds = array<i64: 1>, scalar_prefetch = 0 : i64, scratch_operands = 0 : i64, tpu.core_type = #tpu.core_type<tc>, window_params = [{transform_indices = @transform_0, window_bounds = array<i64: 32, 256>}, {pipeline_mode = #tpu.pipeline_mode<synchronous>, transform_indices = @transform_1, window_bounds = array<i64: 8, 256>}, {transform_indices = @transform_2, window_bounds = array<i64: 32, 8>}]} {
    %c0 = arith.constant 0 : index
    %c0_0 = arith.constant 0 : index
    %0 = vector.load %arg1[%c0, %c0_0] : memref<32x256xbf16, #tpu.memory_space<vmem>>, vector<32x256xbf16>
    %c0_1 = arith.constant 0 : index
    %c0_2 = arith.constant 0 : index
    %1 = vector.load %arg2[%c0_1, %c0_2] : memref<8x256xbf16, #tpu.memory_space<vmem>>, vector<8x256xbf16>
    %cst = arith.constant dense<0.000000e+00> : vector<32x8xf32>
    %2 = tpu.matmul %0, %1, %cst {dimension_numbers = #tpu.dot_dimension_numbers<[1], [1], [0], [0], [0, 0, 1, 0], [], []>} : vector<32x256xbf16>, vector<8x256xbf16>, vector<32x8xf32> -> vector<32x8xf32>
    %c0_3 = arith.constant 0 : index
    %c0_4 = arith.constant 0 : index
    %3 = vector.load %arg3[%c0_3, %c0_4] : memref<32x8xf32, #tpu.memory_space<vmem>>, vector<32x8xf32>
    tpu.vector_store %arg3[%c0_3, %c0_4], %2 {strides = array<i32>} : memref<32x8xf32, #tpu.memory_space<vmem>>, vector<32x8xf32>,
    return
  }
  func.func @transform_0(%arg0: i32) -> (i32, i32) {
    %c0_i32 = arith.constant 0 : i32
    %c0_i32_0 = arith.constant 0 : i32
    return %arg0, %c0_i32 : i32, i32
  }
  func.func @transform_1(%arg0: i32) -> (i32, i32) {
    %c0_i32 = arith.constant 0 : i32
    %c0_i32_0 = arith.constant 0 : i32
    %c0_i32_1 = arith.constant 0 : i32
    return %c0_i32, %c0_i32_0 : i32, i32
  }
  func.func @transform_2(%arg0: i32) -> (i32, i32) {
    %c0_i32 = arith.constant 0 : i32
    %c0_i32_0 = arith.constant 0 : i32
    return %arg0, %c0_i32 : i32, i32
  }
}

</mosaic_0001>

<llo_original>
// kernel: a_call__.5
$region0: #{a_call__.5}
  #allocation0 [shape = 'u32[]', space=smem, size = 0x4, offset = 0x4, fixed_abs, tag = 'smem constant byte address 0x4 - core index']
  #allocation1 [shape = 'u32[144,128]{1,0:T(1,128)}', space=vmem, size = 0x12000, scoped, tag = 'internal scratch']
  %s0 = inlined_call_operand.vmem [shape: bf16[32,256], index: 0, kind: input, shape index: {}]
  %s1 = inlined_call_operand.vmem [shape: bf16[8,256], index: 1, kind: input, shape index: {}]
  %s2 = inlined_call_operand.vmem [shape: f32[32,8], index: 2, kind: output, shape index: {}]
  %s3 = sld [smem:[#allocation0]]
  $region18: #{a_call__.5} parent=0
    _
  %s5 = ssub.s32 1, %s3
  %s6 = scalar_select 0, %s5, %s3
  // Predicated region
  $region2: #{a_call__.5} parent=0 // pred_check
    _
  $region3: #{a_call__.5} parent=0 // pred_check_branch
    %8 = sbr.rel (0) target = $region5
  $region4: #{a_call__.5} parent=0 // pred_region
    _
  $region5: #{a_call__.5} parent=0 // pred_fallthru
    _
  // Predicated region
  $region6: #{a_call__.5} parent=0 // pred_check
    _
  $region7: #{a_call__.5} parent=0 // pred_check_branch
    %10 = sbr.rel (0) target = $region9
  $region8: #{a_call__.5} parent=0 // pred_region
    _
  $region9: #{a_call__.5} parent=0 // pred_fallthru
    _
  %v12 = vld [vmem:[%s0] sm:$0xff]
  %v13 = vld [vmem:[%s0 + $0x8] sm:$0xff]
  %v14 = vld [vmem:[%s0 + $0x10] sm:$0xff]
  %v15 = vld [vmem:[%s0 + $0x18] sm:$0xff]
  %v16 = vld [vmem:[%s1] sm:$0xff]
  %v21 = vunpack.c.l.b16 %v12
  %v22 = vunpack.c.h.b16 %v12
  %v23 = vunpack.c.l.b16 %v13
  %v24 = vunpack.c.h.b16 %v13
  %v25 = vunpack.c.l.b16 %v14
  %v26 = vunpack.c.h.b16 %v14
  %v27 = vunpack.c.l.b16 %v15
  %v28 = vunpack.c.h.b16 %v15
  %v29 = vpack.c.b16 %v23, %v21
  %v30 = vpack.c.b16 %v24, %v22
  %v31 = vpack.c.b16 %v27, %v25
  %v32 = vpack.c.b16 %v28, %v26
  %v38 = vunpack.c.l.b16 %v16
  %v39 = vunpack.c.h.b16 %v16
  %v40 = vpack.c.b16 %v38, %v38
  %v41 = vpack.c.b16 %v39, %v39
  %44 = vmatprep.subr.bf16.mxu0 %v41
  %45 = vmatpush1.bf16.xpose.msra.mxu0 %v40
  %46 = vmatprep.subr.bf16.mxu0 0
  %47 = vmatpush1.bf16.xpose.msra.mxu0 0
  %48 = vmatprep.subr.bf16.mxu0 0
  %49 = vmatpush1.bf16.xpose.msra.mxu0 0
  %50 = vmatprep.subr.bf16.mxu0 0
  %51 = vmatpush1.bf16.xpose.msra.mxu0 0
  %52 = vmatprep.subr.bf16.mxu0 0
  %53 = vmatpush1.bf16.xpose.msra.mxu0 0
  %54 = vmatprep.subr.bf16.mxu0 0
  %55 = vmatpush1.bf16.xpose.msra.mxu0 0
  %56 = vmatprep.subr.bf16.mxu0 0
  %57 = vmatpush1.bf16.xpose.msra.mxu0 0
  %58 = vmatprep.subr.bf16.mxu0 0
  %59 = vmatpush1.bf16.xpose.msra.mxu0 0
  %60 = vmatprep.subr.bf16.mxu0 0
  %61 = vmatpush1.bf16.xpose.msra.mxu0 0
  %62 = vmatprep.subr.bf16.mxu0 0
  %63 = vmatpush1.bf16.xpose.msra.mxu0 0
  %64 = vmatprep.subr.bf16.mxu0 0
  %65 = vmatpush1.bf16.xpose.msra.mxu0 0
  %66 = vmatprep.subr.bf16.mxu0 0
  %67 = vmatpush1.bf16.xpose.msra.mxu0 0
  %68 = vmatprep.subr.bf16.mxu0 0
  %69 = vmatpush1.bf16.xpose.msra.mxu0 0
  %70 = vmatprep.subr.bf16.mxu0 0
  %71 = vmatpush1.bf16.xpose.msra.mxu0 0
  %72 = vmatprep.subr.bf16.mxu0 0
  %73 = vmatpush1.bf16.xpose.msra.mxu0 0
  %74 = vmatprep.subr.bf16.mxu0 0
  %75 = vmatpush1.bf16.xpose.msra.mxu0 0
  %76 = vmatprep.mubr.bf16.mxu0 %v30
  %77 = vmatmul.mubr.bf16.gmra.mrb[0].mxu0 %v29
  %v78 = vpop.f32.mrb[0].mxu0
  %v79 = vadd.f32 0.0, %v78
  %v80 = vpop.f32.mrb[0].mxu0
  %v81 = vpop.f32.mrb[0].mxu0
  %v82 = vadd.f32 0.0, %v81
  %v83 = vpop.f32.mrb[0].mxu0
  %84 = vmatprep.mubr.bf16.mxu0 %v32
  %85 = vmatmul.mubr.bf16.gmra.mrb[0].mxu0 %v31
  %v86 = vpop.f32.mrb[0].mxu0
  %v87 = vadd.f32 0.0, %v86
  %v88 = vpop.f32.mrb[0].mxu0
  %v89 = vpop.f32.mrb[0].mxu0
  %v90 = vadd.f32 0.0, %v89
  %v91 = vpop.f32.mrb[0].mxu0
  %92 = vdwg.mxu0
  %vm93 = vcmask 64512
  %94 = vst.msk [vmem:[%s2] sm:$0xff] %vm93, %v79
  %95 = vst.msk [vmem:[%s2 + $0x8] sm:$0xff] %vm93, %v82
  %96 = vst.msk [vmem:[%s2 + $0x10] sm:$0xff] %vm93, %v87
  %97 = vst.msk [vmem:[%s2 + $0x18] sm:$0xff] %vm93, %v90
  // Predicated region
  $region10: #{a_call__.5} parent=0 // pred_check
    _
  $region11: #{a_call__.5} parent=0 // pred_check_branch
    %99 = sbr.rel (0) target = $region13
  $region12: #{a_call__.5} parent=0 // pred_region
    _
  $region13: #{a_call__.5} parent=0 // pred_fallthru
    _
  // Predicated region
  $region14: #{a_call__.5} parent=0 // pred_check
    _
  $region15: #{a_call__.5} parent=0 // pred_check_branch
    %101 = sbr.rel (0) target = $region17
  $region16: #{a_call__.5} parent=0 // pred_region
    _
  $region17: #{a_call__.5} parent=0 // pred_fallthru
    _

// kernel: a_call__.4
$region0: #{a_call__.4}
  #allocation0 [shape = 'u32[]', space=smem, size = 0x4, offset = 0x4, fixed_abs, tag = 'smem constant byte address 0x4 - core index']
  #allocation1 [shape = 'u32[144,128]{1,0:T(1,128)}', space=vmem, size = 0x12000, scoped, tag = 'internal scratch']
  %s0 = inlined_call_operand.vmem [shape: f32[4], index: 0, kind: input, shape index: {}]
  %s1 = inlined_call_operand.vmem [shape: bf16[4,8,256], index: 1, kind: input, shape index: {}]
  %s2 = inlined_call_operand.vmem [shape: f32[8,256], index: 2, kind: output, shape index: {}]
  %s3 = sld [smem:[#allocation0]]
  $region53: #{a_call__.4} parent=0
    _
  %s5 = ssub.s32 1, %s3
  %s6 = scalar_select 0, %s5, %s3
  $region1: #{a_call__.4} parent=0
    #allocation2 [shape = 'u8[512]{0}', space=smem, size = 0x200, scoped, tag = 'input window, operand 0, single buffered']
    #allocation3 [shape = 's32[2]{0}', space=sflag, size = 0x8, scoped, tag = 'scoped memory for a_call__.4']
    %7 = vsyncpa [#allocation3], 0
    loop: start=0, step=1, limit=6
    $region2: #{a_call__.4} parent=1 // loop_pre_header
      _
    $region3: #{a_call__.4} parent=1 // loop_header
      %s9 = sphi 0, %s13
      %p10 = scmp.ge.s32.totalorder %s9, 6
      %s17 = sphi 0, %s17
      %s19 = sphi 0, %s17
      %s20 = sphi 0, %s19
      %s34 = sphi 0, %s20
      %s40 = sphi 0, %s42
      %s43 = sphi 0, %s40
      %s44 = sphi 0, %s43
      %s60 = sphi 0, %s44
      %s64 = sphi 0, %s64
      %s66 = sphi 0, %s64
      %s67 = sphi 0, %s66
      %s81 = sphi 0, %s67
    $region4: #{a_call__.4} parent=1 // loop_header_branch
      %12 = sbr.rel (%p10) target = $region8
    $region5: #{a_call__.4} parent=1 // loop_body
      %s14 = ssub.s32 %s9, 1
      %s15 = ssub.s32 %s9, 2
      %s16 = sadd.s32 %s9, 1
      %s18 = sadd.s32 %s17, 1
      %p21 = scmp.eq.s32.totalorder %s9, 3
      %p22 = scmp.ne.s32.totalorder %s17, %s19
      %p23 = scmp.eq.s32.totalorder %s9, 0
      %p24 = por %p22, %p23
      %p25 = scmp.ne.s32.totalorder %s17, %s19
      %p26 = scmp.eq.s32.totalorder %s14, 3
      %p27 = por %p25, %p26
      %p28 = scmp.ne.s32.totalorder %s19, %s20
      %p29 = scmp.eq.s32.totalorder %s14, 0
      %p30 = por %p28, %p29
      %p31 = scmp.ne.s32.totalorder %s19, %s20
      %p32 = scmp.eq.s32.totalorder %s15, 3
      %p33 = por %p31, %p32
      %p35 = scmp.ne.s32.totalorder %s20, %s34
      %p36 = scmp.eq.s32.totalorder %s15, 0
      %p37 = por %p35, %p36
      %s38 = ssub.s32 %s9, %s16
      %p39 = scmp.eq.s32.totalorder %s38, 0
      %s41 = sadd.s32 %s40, 1
      %s42 = scalar_select %p39, %s40, %s41
      %p45 = pneg %p39
      %p46 = scmp.eq.s32.totalorder %s9, 3
      %p47 = por %p45, %p46
      %p48 = scmp.ne.s32.totalorder %s40, %s43
      %p49 = scmp.eq.s32.totalorder %s9, 0
      %p50 = por %p48, %p49
      %p51 = scmp.ne.s32.totalorder %s40, %s43
      %p52 = scmp.eq.s32.totalorder %s14, 3
      %p53 = por %p51, %p52
      %p54 = scmp.ne.s32.totalorder %s43, %s44
      %p55 = scmp.eq.s32.totalorder %s14, 0
      %p56 = por %p54, %p55
      %p57 = scmp.ne.s32.totalorder %s43, %s44
      %p58 = scmp.eq.s32.totalorder %s15, 3
      %p59 = por %p57, %p58
      %p61 = scmp.ne.s32.totalorder %s44, %s60
      %p62 = scmp.eq.s32.totalorder %s15, 0
      %p63 = por %p61, %p62
      %s65 = sadd.s32 %s64, 1
      %p68 = scmp.eq.s32.totalorder %s9, 3
      %p69 = scmp.ne.s32.totalorder %s64, %s66
      %p70 = scmp.eq.s32.totalorder %s9, 0
      %p71 = por %p69, %p70
      %p72 = scmp.ne.s32.totalorder %s64, %s66
      %p73 = scmp.eq.s32.totalorder %s14, 3
      %p74 = por %p72, %p73
      %p75 = scmp.ne.s32.totalorder %s66, %s67
      %p76 = scmp.eq.s32.totalorder %s14, 0
      %p77 = por %p75, %p76
      %p78 = scmp.ne.s32.totalorder %s66, %s67
      %p79 = scmp.eq.s32.totalorder %s15, 3
      %p80 = por %p78, %p79
      %p82 = scmp.ne.s32.totalorder %s67, %s81
      %p83 = scmp.eq.s32.totalorder %s15, 0
      %p84 = por %p82, %p83
      %p85 = scmp.le.s32.totalorder 1, %s9
      %p86 = scmp.lt.s32.totalorder %s9, 5
      %p87 = pnand %p85, %p86
      %p88 = pneg %p87
      // Predicated region
      $region9: #{a_call__.4} parent=5 // pred_check
        _
      $region10: #{a_call__.4} parent=5 // pred_check_branch
        %90 = sbr.rel (%p87) target = $region12
      $region11: #{a_call__.4} parent=5 // pred_region
        %s91 = ssub.s32 %s9, 1
        // Predicated region
        $region13: #{a_call__.4} parent=11 // pred_check
          %p92 = pneg %p30
        $region14: #{a_call__.4} parent=11 // pred_check_branch
          %94 = sbr.rel (%p92) target = $region16
        $region15: #{a_call__.4} parent=11 // pred_region
          %s96 = ssub.s32 16, 16
          %97 = vsyncadd [#allocation3], %s96
          %s99 = sshll.u32 %s0, 4
          %s100 = int_to_ptr.vmem [resolvable:$true] %s99
          %102 = dma.vmem_to_smem %s100, 16, [#allocation2], [#allocation3]
        $region16: #{a_call__.4} parent=11 // pred_fallthru
          _
      $region12: #{a_call__.4} parent=5 // pred_fallthru
        _
      %p103 = scmp.lt.s32.totalorder %s9, 4
      // Predicated region
      $region17: #{a_call__.4} parent=5 // pred_check
        %p104 = pneg %p103
      $region18: #{a_call__.4} parent=5 // pred_check_branch
        %106 = sbr.rel (%p104) target = $region20
      $region19: #{a_call__.4} parent=5 // pred_region
        // Predicated region
        $region21: #{a_call__.4} parent=19 // pred_check
          %p107 = pneg %p50
        $region22: #{a_call__.4} parent=19 // pred_check_branch
          %109 = sbr.rel (%p107) target = $region24
        $region23: #{a_call__.4} parent=19 // pred_region
          %p110 = scmp.lt.s32.totalorder %s9, 3
          %s111 = scalar_select %p110, %s9, 3
          %s112 = smul.addr %s111, 2
          %s113 = smul.addr %s112, 4
          %s114 = scalar_lea.vmem %s1, %s113
        $region24: #{a_call__.4} parent=19 // pred_fallthru
          _
      $region20: #{a_call__.4} parent=5 // pred_fallthru
        _
      %p115 = scmp.le.s32.totalorder 1, %s9
      %p116 = scmp.lt.s32.totalorder %s9, 5
      %p117 = pnand %p115, %p116
      %p118 = pneg %p117
      // Predicated region
      $region25: #{a_call__.4} parent=5 // pred_check
        _
      $region26: #{a_call__.4} parent=5 // pred_check_branch
        %120 = sbr.rel (%p117) target = $region28
      $region27: #{a_call__.4} parent=5 // pred_region
        %s121 = ssub.s32 %s9, 1
        // Predicated region
        $region29: #{a_call__.4} parent=27 // pred_check
          %p122 = pneg %p30
        $region30: #{a_call__.4} parent=27 // pred_check_branch
          %124 = sbr.rel (%p122) target = $region32
        $region31: #{a_call__.4} parent=27 // pred_region
          %125 = dma.done [#allocation3], 16
        $region32: #{a_call__.4} parent=27 // pred_fallthru
          _
        %126 = sfence
        %p127 = pneg %p30
        %p128 = pneg %p27
        %p129 = scmp.lt.s32.totalorder %s14, 3
        %s130 = scalar_select %p129, %s14, 3
        %s131 = smul.addr %s130, 2
        %s132 = smul.addr %s131, 4
        %s133 = scalar_lea.vmem %s1, %s132
        %p134 = pneg %p56
        %p135 = pneg %p53
        %p136 = pneg %p77
        %p137 = pneg %p74
        %p138 = scmp.lt.s32.totalorder %s14, 3
        %s139 = scalar_select %p138, %s14, 3
        %s140 = smul.addr %s139, 2
        %s141 = smul.addr %s140, 4
        %s142 = scalar_lea.vmem %s1, %s141
        %v144 = vld [vmem:[%s142] sm:$0xff]
        %v145 = vunpack.c.l.bf16 %v144
        %v146 = vunpack.c.h.bf16 %v144
        %p147 = scmp.eq.s32.totalorder %s14, 0
        // Predicated region
        $region33: #{a_call__.4} parent=27 // pred_check
          %p148 = pneg %p147
        $region34: #{a_call__.4} parent=27 // pred_check_branch
          %150 = sbr.rel (%p148) target = $region36
        $region35: #{a_call__.4} parent=27 // pred_region
          %151 = vst [vmem:[%s2] sm:$0xff] %v145
          %152 = vst [vmem:[%s2 + $0x8] sm:$0xff] %v146
        $region36: #{a_call__.4} parent=27 // pred_fallthru
          _
        %p153 = scmp.gt.s32.totalorder %s14, 0
        // Predicated region
        $region37: #{a_call__.4} parent=27 // pred_check
          %p154 = pneg %p153
        $region38: #{a_call__.4} parent=27 // pred_check_branch
          %156 = sbr.rel (%p154) target = $region40
        $region39: #{a_call__.4} parent=27 // pred_region
          %s157 = ssub.s32 %s14, 1
          %s158 = sld [smem:[#allocation2 + %s157]]
          %s159 = ssub.f32 1.0, %s158
          %v160 = vld [vmem:[%s2] sm:$0xff]
          %v161 = vld [vmem:[%s2 + $0x8] sm:$0xff]
          %v162 = vstv %s159
          %v163 = vmul.f32 %v162, %v160
          %v164 = vmul.f32 %v162, %v161
          %v165 = vstv %s158
          %v166 = vmul.f32 %v165, %v145
          %v167 = vmul.f32 %v165, %v146
          %v168 = vadd.f32 %v163, %v166
          %v169 = vadd.f32 %v164, %v167
          %v170 = vpack.c.bf16 %v168, %v168
          %v171 = vpack.c.bf16 %v169, %v169
          %172 = vmatprep.subr.bf16.mxu0 %v171
          %173 = vmatpush1.bf16.xpose.msra.mxu0 %v170
          %174 = vmatprep.subr.bf16.mxu0 0
          %175 = vmatpush1.bf16.xpose.msra.mxu0 0
          %176 = vmatprep.subr.bf16.mxu0 0
          %177 = vmatpush1.bf16.xpose.msra.mxu0 0
          %178 = vmatprep.subr.bf16.mxu0 0
          %179 = vmatpush1.bf16.xpose.msra.mxu0 0
          %180 = vmatprep.subr.bf16.mxu0 0
          %181 = vmatpush1.bf16.xpose.msra.mxu0 0
          %182 = vmatprep.subr.bf16.mxu0 0
          %183 = vmatpush1.bf16.xpose.msra.mxu0 0
          %184 = vmatprep.subr.bf16.mxu0 0
          %185 = vmatpush1.bf16.xpose.msra.mxu0 0
          %186 = vmatprep.subr.bf16.mxu0 0
          %187 = vmatpush1.bf16.xpose.msra.mxu0 0
          %188 = vmatprep.subr.bf16.mxu0 0
          %189 = vmatpush1.bf16.xpose.msra.mxu0 0
          %190 = vmatprep.subr.bf16.mxu0 0
          %191 = vmatpush1.bf16.xpose.msra.mxu0 0
          %192 = vmatprep.subr.bf16.mxu0 0
          %193 = vmatpush1.bf16.xpose.msra.mxu0 0
          %194 = vmatprep.subr.bf16.mxu0 0
          %195 = vmatpush1.bf16.xpose.msra.mxu0 0
          %196 = vmatprep.subr.bf16.mxu0 0
          %197 = vmatpush1.bf16.xpose.msra.mxu0 0
          %198 = vmatprep.subr.bf16.mxu0 0
          %199 = vmatpush1.bf16.xpose.msra.mxu0 0
          %200 = vmatprep.subr.bf16.mxu0 0
          %201 = vmatpush1.bf16.xpose.msra.mxu0 0
          %202 = vmatprep.subr.bf16.mxu0 0
          %203 = vmatpush1.bf16.xpose.msra.mxu0 0
          %204 = vmatprep.mubr.bf16.mxu0 %v171
          %205 = vmatmul.mubr.bf16.gmra.mrb[0].mxu0 %v170
          %v206 = vpop.f32.mrb[0].mxu0
          %v207 = vadd.f32 0.0, %v206
          %v208 = vpop.f32.mrb[0].mxu0
          %v209 = vpop.f32.mrb[0].mxu0
          %v210 = vpop.f32.mrb[0].mxu0
          %211 = vdwg.mxu0
          %v212 = vlaneseq
          %v213 = vand.u32 %v212, 127
          %v214 = vlaneseq
          %v215 = vshrl.u32 %v214, 7
          %216 = vadd.xlane.f32.xlu0 0.0
          %v217 = vpop.xlane.xlu0 %216
          %v218 = vsub.f32 %v207, %v217
          %v219 = vadd.f32 %v218, 0.01
          %v220 = vrsqrt.pop %v219
          %v221 = vlaneseq
          %v222 = vshrl.u32 %v221, 7
          %v223 = vsub.s32 0, %v222
          %v224 = vrot.slane %v220, %v223
          %v225 = vmul.f32 %v218, %v224
          %vm226 = vcmp.eq.s32.totalorder %v215, 0
          %v227 = vmul.f32 %v219, %v220
          %v228 = vlaneseq
          %v229 = vshrl.u32 %v228, 7
          %v230 = vsub.s32 0, %v229
          %v231 = vrot.slane %v227, %v230
          %v232 = vsel %vm226, %v231, %v225
          %vm233 = vcmp.ge.s32.totalorder %v215, 0
          %v234 = vsel %vm233, %v232, 0.0
          %vm235 = vcmp.eq.s32.totalorder %v213, 0
          %237 = vset.pattern.permute.xlu0 0
          %238 = vperm.xlu0 %237, %v234
          %v239 = vpop.permute.xlu0 %238
          %v241 = vsel %vm235, %v239, 0.0
          %v242 = vlaneseq
          %v243 = vshrl.u32 %v242, 7
          %v244 = vsub.s32 1, %v243
          %v245 = vrot.slane %v241, %v244
          %v246 = vmul.f32 %v241, %v245
          %vm247 = vcmask 64512
          %v248 = vsel %vm247, %v246, 0.0
          %249 = vadd.xlane.f32.xlu0 %v248
          %v250 = vpop.xlane.xlu0 %249
          %v251 = vsub.f32 %v207, %v250
          %v252 = vadd.f32 %v251, 0.01
          %v253 = vrsqrt.pop %v252
          %v254 = vlaneseq
          %v255 = vshrl.u32 %v254, 7
          %v256 = vsub.s32 1, %v255
          %v257 = vrot.slane %v253, %v256
          %v258 = vmul.f32 %v251, %v257
          %vm259 = vcmp.eq.s32.totalorder %v215, 1
          %v260 = vmul.f32 %v252, %v253
          %v261 = vlaneseq
          %v262 = vshrl.u32 %v261, 7
          %v263 = vsub.s32 1, %v262
          %v264 = vrot.slane %v260, %v263
          %v265 = vsel %vm259, %v264, %v258
          %vm266 = vcmp.ge.s32.totalorder %v215, 1
          %v267 = vsel %vm266, %v265, 0.0
          %vm268 = vcmp.eq.s32.totalorder %v213, 1
          %270 = vset.pattern.permute.xlu0 1
          %271 = vperm.xlu0 %270, %v267
          %v272 = vpop.permute.xlu0 %271
          %v274 = vsel %vm268, %v272, %v241
          %v275 = vlaneseq
          %v276 = vshrl.u32 %v275, 7
          %v277 = vsub.s32 2, %v276
          %v278 = vrot.slane %v274, %v277
          %v279 = vmul.f32 %v274, %v278
          %v280 = vsel %vm247, %v279, 0.0
          %281 = vadd.xlane.f32.xlu0 %v280
          %v282 = vpop.xlane.xlu0 %281
          %v283 = vsub.f32 %v207, %v282
          %v284 = vadd.f32 %v283, 0.01
          %v285 = vrsqrt.pop %v284
          %v286 = vlaneseq
          %v287 = vshrl.u32 %v286, 7
          %v288 = vsub.s32 2, %v287
          %v289 = vrot.slane %v285, %v288
          %v290 = vmul.f32 %v283, %v289
          %vm291 = vcmp.eq.s32.totalorder %v215, 2
          %v292 = vmul.f32 %v284, %v285
          %v293 = vlaneseq
          %v294 = vshrl.u32 %v293, 7
          %v295 = vsub.s32 2, %v294
          %v296 = vrot.slane %v292, %v295
          %v297 = vsel %vm291, %v296, %v290
          %vm298 = vcmp.ge.s32.totalorder %v215, 2
          %v299 = vsel %vm298, %v297, 0.0
          %vm300 = vcmp.eq.s32.totalorder %v213, 2
          %302 = vset.pattern.permute.xlu0 2
          %303 = vperm.xlu0 %302, %v299
          %v304 = vpop.permute.xlu0 %303
          %v306 = vsel %vm300, %v304, %v274
          %v307 = vlaneseq
          %v308 = vshrl.u32 %v307, 7
          %v309 = vsub.s32 3, %v308
          %v310 = vrot.slane %v306, %v309
          %v311 = vmul.f32 %v306, %v310
          %v312 = vsel %vm247, %v311, 0.0
          %313 = vadd.xlane.f32.xlu0 %v312
          %v314 = vpop.xlane.xlu0 %313
          %v315 = vsub.f32 %v207, %v314
          %v316 = vadd.f32 %v315, 0.01
          %v317 = vrsqrt.pop %v316
          %v318 = vlaneseq
          %v319 = vshrl.u32 %v318, 7
          %v320 = vsub.s32 3, %v319
          %v321 = vrot.slane %v317, %v320
          %v322 = vmul.f32 %v315, %v321
          %vm323 = vcmp.eq.s32.totalorder %v215, 3
          %v324 = vmul.f32 %v316, %v317
          %v325 = vlaneseq
          %v326 = vshrl.u32 %v325, 7
          %v327 = vsub.s32 3, %v326
          %v328 = vrot.slane %v324, %v327
          %v329 = vsel %vm323, %v328, %v322
          %vm330 = vcmp.ge.s32.totalorder %v215, 3
          %v331 = vsel %vm330, %v329, 0.0
          %vm332 = vcmp.eq.s32.totalorder %v213, 3
          %334 = vset.pattern.permute.xlu0 3
          %335 = vperm.xlu0 %334, %v331
          %v336 = vpop.permute.xlu0 %335
          %v338 = vsel %vm332, %v336, %v306
          %v339 = vlaneseq
          %v340 = vshrl.u32 %v339, 7
          %v341 = vsub.s32 4, %v340
          %v342 = vrot.slane %v338, %v341
          %v343 = vmul.f32 %v338, %v342
          %v344 = vsel %vm247, %v343, 0.0
          %345 = vadd.xlane.f32.xlu0 %v344
          %v346 = vpop.xlane.xlu0 %345
          %v347 = vsub.f32 %v207, %v346
          %v348 = vadd.f32 %v347, 0.01
          %v349 = vrsqrt.pop %v348
          %v350 = vlaneseq
          %v351 = vshrl.u32 %v350, 7
          %v352 = vsub.s32 4, %v351
          %v353 = vrot.slane %v349, %v352
          %v354 = vmul.f32 %v347, %v353
          %vm355 = vcmp.eq.s32.totalorder %v215, 4
          %v356 = vmul.f32 %v348, %v349
          %v357 = vlaneseq
          %v358 = vshrl.u32 %v357, 7
          %v359 = vsub.s32 4, %v358
          %v360 = vrot.slane %v356, %v359
          %v361 = vsel %vm355, %v360, %v354
          %vm362 = vcmp.ge.s32.totalorder %v215, 4
          %v363 = vsel %vm362, %v361, 0.0
          %vm364 = vcmp.eq.s32.totalorder %v213, 4
          %366 = vset.pattern.permute.xlu0 4
          %367 = vperm.xlu0 %366, %v363
          %v368 = vpop.permute.xlu0 %367
          %v370 = vsel %vm364, %v368, %v338
          %v371 = vlaneseq
          %v372 = vshrl.u32 %v371, 7
          %v373 = vsub.s32 5, %v372
          %v374 = vrot.slane %v370, %v373
          %v375 = vmul.f32 %v370, %v374
          %v376 = vsel %vm247, %v375, 0.0
          %377 = vadd.xlane.f32.xlu0 %v376
          %v378 = vpop.xlane.xlu0 %377
          %v379 = vsub.f32 %v207, %v378
          %v380 = vadd.f32 %v379, 0.01
          %v381 = vrsqrt.pop %v380
          %v382 = vlaneseq
          %v383 = vshrl.u32 %v382, 7
          %v384 = vsub.s32 5, %v383
          %v385 = vrot.slane %v381, %v384
          %v386 = vmul.f32 %v379, %v385
          %vm387 = vcmp.eq.s32.totalorder %v215, 5
          %v388 = vmul.f32 %v380, %v381
          %v389 = vlaneseq
          %v390 = vshrl.u32 %v389, 7
          %v391 = vsub.s32 5, %v390
          %v392 = vrot.slane %v388, %v391
          %v393 = vsel %vm387, %v392, %v386
          %vm394 = vcmp.ge.s32.totalorder %v215, 5
          %v395 = vsel %vm394, %v393, 0.0
          %vm396 = vcmp.eq.s32.totalorder %v213, 5
          %398 = vset.pattern.permute.xlu0 5
          %399 = vperm.xlu0 %398, %v395
          %v400 = vpop.permute.xlu0 %399
          %v402 = vsel %vm396, %v400, %v370
          %v403 = vlaneseq
          %v404 = vshrl.u32 %v403, 7
          %v405 = vsub.s32 6, %v404
          %v406 = vrot.slane %v402, %v405
          %v407 = vmul.f32 %v402, %v406
          %v408 = vsel %vm247, %v407, 0.0
          %409 = vadd.xlane.f32.xlu0 %v408
          %v410 = vpop.xlane.xlu0 %409
          %v411 = vsub.f32 %v207, %v410
          %v412 = vadd.f32 %v411, 0.01
          %v413 = vrsqrt.pop %v412
          %v414 = vlaneseq
          %v415 = vshrl.u32 %v414, 7
          %v416 = vsub.s32 6, %v415
          %v417 = vrot.slane %v413, %v416
          %v418 = vmul.f32 %v411, %v417
          %vm419 = vcmp.eq.s32.totalorder %v215, 6
          %v420 = vmul.f32 %v412, %v413
          %v421 = vlaneseq
          %v422 = vshrl.u32 %v421, 7
          %v423 = vsub.s32 6, %v422
          %v424 = vrot.slane %v420, %v423
          %v425 = vsel %vm419, %v424, %v418
          %vm426 = vcmp.ge.s32.totalorder %v215, 6
          %v427 = vsel %vm426, %v425, 0.0
          %vm428 = vcmp.eq.s32.totalorder %v213, 6
          %430 = vset.pattern.permute.xlu0 6
          %431 = vperm.xlu0 %430, %v427
          %v432 = vpop.permute.xlu0 %431
          %v434 = vsel %vm428, %v432, %v402
          %v435 = vlaneseq
          %v436 = vshrl.u32 %v435, 7
          %v437 = vsub.s32 7, %v436
          %v438 = vrot.slane %v434, %v437
          %v439 = vmul.f32 %v434, %v438
          %v440 = vsel %vm247, %v439, 0.0
          %441 = vadd.xlane.f32.xlu0 %v440
          %v442 = vpop.xlane.xlu0 %441
          %v443 = vsub.f32 %v207, %v442
          %v444 = vadd.f32 %v443, 0.01
          %v445 = vrsqrt.pop %v444
          %v446 = vlaneseq
          %v447 = vshrl.u32 %v446, 7
          %v448 = vsub.s32 7, %v447
          %v449 = vrot.slane %v445, %v448
          %v450 = vmul.f32 %v443, %v449
          %vm451 = vcmp.eq.s32.totalorder %v215, 7
          %v452 = vmul.f32 %v444, %v445
          %v453 = vlaneseq
          %v454 = vshrl.u32 %v453, 7
          %v455 = vsub.s32 7, %v454
          %v456 = vrot.slane %v452, %v455
          %v457 = vsel %vm451, %v456, %v450
          %vm458 = vcmp.ge.s32.totalorder %v215, 7
          %v459 = vsel %vm458, %v457, 0.0
          %vm460 = vcmp.eq.s32.totalorder %v213, 7
          %462 = vset.pattern.permute.xlu0 7
          %463 = vperm.xlu0 %462, %v459
          %v464 = vpop.permute.xlu0 %463
          %v466 = vsel %vm460, %v464, %v434
          %v467 = vrcp.pop %v466
          %v468 = vmul.f32 1.0, %v467
          %470 = vset.pattern.permute.xlu0 0
          %471 = vperm.xlu0 %470, %v468
          %v472 = vpop.permute.xlu0 %471
          %v474 = vmul.f32 %v168, %v472
          %v475 = vmul.f32 %v169, %v472
          %477 = vset.pattern.permute.xlu0 0
          %478 = vperm.xlu0 %477, %v466
          %v479 = vpop.permute.xlu0 %478
          %v483 = vrot.slane %v474, 7
          %v484 = vrot.slane %v475, 7
          %v487 = vmul.f32 %v479, %v483
          %v488 = vmul.f32 %v479, %v484
          %v489 = vsub.f32 %v168, %v487
          %v490 = vsub.f32 %v169, %v488
          %491 = vset.pattern.permute.xlu0 1
          %492 = vperm.xlu0 %491, %v468
          %v493 = vpop.permute.xlu0 %492
          %v495 = vmul.f32 %v489, %v493
          %v496 = vmul.f32 %v490, %v493
          %v497 = vrot.slane %v474, 6
          %v498 = vrot.slane %v475, 6
          %v501 = vmul.f32 %v479, %v497
          %v502 = vmul.f32 %v479, %v498
          %v503 = vsub.f32 %v168, %v501
          %v504 = vsub.f32 %v169, %v502
          %505 = vset.pattern.permute.xlu0 1
          %506 = vperm.xlu0 %505, %v466
          %v507 = vpop.permute.xlu0 %506
          %v511 = vrot.slane %v495, 7
          %v512 = vrot.slane %v496, 7
          %v515 = vmul.f32 %v507, %v511
          %v516 = vmul.f32 %v507, %v512
          %v517 = vsub.f32 %v503, %v515
          %v518 = vsub.f32 %v504, %v516
          %519 = vset.pattern.permute.xlu0 2
          %520 = vperm.xlu0 %519, %v468
          %v521 = vpop.permute.xlu0 %520
          %v523 = vmul.f32 %v517, %v521
          %v524 = vmul.f32 %v518, %v521
          %v525 = vrot.slane %v474, 5
          %v526 = vrot.slane %v475, 5
          %v529 = vmul.f32 %v479, %v525
          %v530 = vmul.f32 %v479, %v526
          %v531 = vsub.f32 %v168, %v529
          %v532 = vsub.f32 %v169, %v530
          %v533 = vrot.slane %v495, 6
          %v534 = vrot.slane %v496, 6
          %v537 = vmul.f32 %v507, %v533
          %v538 = vmul.f32 %v507, %v534
          %v539 = vsub.f32 %v531, %v537
          %v540 = vsub.f32 %v532, %v538
          %541 = vset.pattern.permute.xlu0 2
          %542 = vperm.xlu0 %541, %v466
          %v543 = vpop.permute.xlu0 %542
          %v547 = vrot.slane %v523, 7
          %v548 = vrot.slane %v524, 7
          %v551 = vmul.f32 %v543, %v547
          %v552 = vmul.f32 %v543, %v548
          %v553 = vsub.f32 %v539, %v551
          %v554 = vsub.f32 %v540, %v552
          %555 = vset.pattern.permute.xlu0 3
          %556 = vperm.xlu0 %555, %v468
          %v557 = vpop.permute.xlu0 %556
          %v559 = vmul.f32 %v553, %v557
          %v560 = vmul.f32 %v554, %v557
          %v561 = vrot.slane %v474, 4
          %v562 = vrot.slane %v475, 4
          %v565 = vmul.f32 %v479, %v561
          %v566 = vmul.f32 %v479, %v562
          %v567 = vsub.f32 %v168, %v565
          %v568 = vsub.f32 %v169, %v566
          %v569 = vrot.slane %v495, 5
          %v570 = vrot.slane %v496, 5
          %v573 = vmul.f32 %v507, %v569
          %v574 = vmul.f32 %v507, %v570
          %v575 = vsub.f32 %v567, %v573
          %v576 = vsub.f32 %v568, %v574
          %v577 = vrot.slane %v523, 6
          %v578 = vrot.slane %v524, 6
          %v581 = vmul.f32 %v543, %v577
          %v582 = vmul.f32 %v543, %v578
          %v583 = vsub.f32 %v575, %v581
          %v584 = vsub.f32 %v576, %v582
          %585 = vset.pattern.permute.xlu0 3
          %586 = vperm.xlu0 %585, %v466
          %v587 = vpop.permute.xlu0 %586
          %v591 = vrot.slane %v559, 7
          %v592 = vrot.slane %v560, 7
          %v595 = vmul.f32 %v587, %v591
          %v596 = vmul.f32 %v587, %v592
          %v597 = vsub.f32 %v583, %v595
          %v598 = vsub.f32 %v584, %v596
          %599 = vset.pattern.permute.xlu0 4
          %600 = vperm.xlu0 %599, %v468
          %v601 = vpop.permute.xlu0 %600
          %v603 = vmul.f32 %v597, %v601
          %v604 = vmul.f32 %v598, %v601
          %v605 = vrot.slane %v474, 3
          %v606 = vrot.slane %v475, 3
          %v609 = vmul.f32 %v479, %v605
          %v610 = vmul.f32 %v479, %v606
          %v611 = vsub.f32 %v168, %v609
          %v612 = vsub.f32 %v169, %v610
          %v613 = vrot.slane %v495, 4
          %v614 = vrot.slane %v496, 4
          %v617 = vmul.f32 %v507, %v613
          %v618 = vmul.f32 %v507, %v614
          %v619 = vsub.f32 %v611, %v617
          %v620 = vsub.f32 %v612, %v618
          %v621 = vrot.slane %v523, 5
          %v622 = vrot.slane %v524, 5
          %v625 = vmul.f32 %v543, %v621
          %v626 = vmul.f32 %v543, %v622
          %v627 = vsub.f32 %v619, %v625
          %v628 = vsub.f32 %v620, %v626
          %v629 = vrot.slane %v559, 6
          %v630 = vrot.slane %v560, 6
          %v633 = vmul.f32 %v587, %v629
          %v634 = vmul.f32 %v587, %v630
          %v635 = vsub.f32 %v627, %v633
          %v636 = vsub.f32 %v628, %v634
          %637 = vset.pattern.permute.xlu0 4
          %638 = vperm.xlu0 %637, %v466
          %v639 = vpop.permute.xlu0 %638
          %v643 = vrot.slane %v603, 7
          %v644 = vrot.slane %v604, 7
          %v647 = vmul.f32 %v639, %v643
          %v648 = vmul.f32 %v639, %v644
          %v649 = vsub.f32 %v635, %v647
          %v650 = vsub.f32 %v636, %v648
          %651 = vset.pattern.permute.xlu0 5
          %652 = vperm.xlu0 %651, %v468
          %v653 = vpop.permute.xlu0 %652
          %v655 = vmul.f32 %v649, %v653
          %v656 = vmul.f32 %v650, %v653
          %v657 = vrot.slane %v474, 2
          %v658 = vrot.slane %v475, 2
          %v661 = vmul.f32 %v479, %v657
          %v662 = vmul.f32 %v479, %v658
          %v663 = vsub.f32 %v168, %v661
          %v664 = vsub.f32 %v169, %v662
          %v665 = vrot.slane %v495, 3
          %v666 = vrot.slane %v496, 3
          %v669 = vmul.f32 %v507, %v665
          %v670 = vmul.f32 %v507, %v666
          %v671 = vsub.f32 %v663, %v669
          %v672 = vsub.f32 %v664, %v670
          %v673 = vrot.slane %v523, 4
          %v674 = vrot.slane %v524, 4
          %v677 = vmul.f32 %v543, %v673
          %v678 = vmul.f32 %v543, %v674
          %v679 = vsub.f32 %v671, %v677
          %v680 = vsub.f32 %v672, %v678
          %v681 = vrot.slane %v559, 5
          %v682 = vrot.slane %v560, 5
          %v685 = vmul.f32 %v587, %v681
          %v686 = vmul.f32 %v587, %v682
          %v687 = vsub.f32 %v679, %v685
          %v688 = vsub.f32 %v680, %v686
          %v689 = vrot.slane %v603, 6
          %v690 = vrot.slane %v604, 6
          %v693 = vmul.f32 %v639, %v689
          %v694 = vmul.f32 %v639, %v690
          %v695 = vsub.f32 %v687, %v693
          %v696 = vsub.f32 %v688, %v694
          %697 = vset.pattern.permute.xlu0 5
          %698 = vperm.xlu0 %697, %v466
          %v699 = vpop.permute.xlu0 %698
          %v703 = vrot.slane %v655, 7
          %v704 = vrot.slane %v656, 7
          %v707 = vmul.f32 %v699, %v703
          %v708 = vmul.f32 %v699, %v704
          %v709 = vsub.f32 %v695, %v707
          %v710 = vsub.f32 %v696, %v708
          %711 = vset.pattern.permute.xlu0 6
          %712 = vperm.xlu0 %711, %v468
          %v713 = vpop.permute.xlu0 %712
          %v715 = vmul.f32 %v709, %v713
          %v716 = vmul.f32 %v710, %v713
          %v717 = vrot.slane %v474, 1
          %v718 = vrot.slane %v475, 1
          %v721 = vmul.f32 %v479, %v717
          %v722 = vmul.f32 %v479, %v718
          %v723 = vsub.f32 %v168, %v721
          %v724 = vsub.f32 %v169, %v722
          %v725 = vrot.slane %v495, 2
          %v726 = vrot.slane %v496, 2
          %v729 = vmul.f32 %v507, %v725
          %v730 = vmul.f32 %v507, %v726
          %v731 = vsub.f32 %v723, %v729
          %v732 = vsub.f32 %v724, %v730
          %v733 = vrot.slane %v523, 3
          %v734 = vrot.slane %v524, 3
          %v737 = vmul.f32 %v543, %v733
          %v738 = vmul.f32 %v543, %v734
          %v739 = vsub.f32 %v731, %v737
          %v740 = vsub.f32 %v732, %v738
          %v741 = vrot.slane %v559, 4
          %v742 = vrot.slane %v560, 4
          %v745 = vmul.f32 %v587, %v741
          %v746 = vmul.f32 %v587, %v742
          %v747 = vsub.f32 %v739, %v745
          %v748 = vsub.f32 %v740, %v746
          %v749 = vrot.slane %v603, 5
          %v750 = vrot.slane %v604, 5
          %v753 = vmul.f32 %v639, %v749
          %v754 = vmul.f32 %v639, %v750
          %v755 = vsub.f32 %v747, %v753
          %v756 = vsub.f32 %v748, %v754
          %v757 = vrot.slane %v655, 6
          %v758 = vrot.slane %v656, 6
          %v761 = vmul.f32 %v699, %v757
          %v762 = vmul.f32 %v699, %v758
          %v763 = vsub.f32 %v755, %v761
          %v764 = vsub.f32 %v756, %v762
          %765 = vset.pattern.permute.xlu0 6
          %766 = vperm.xlu0 %765, %v466
          %v767 = vpop.permute.xlu0 %766
          %v771 = vrot.slane %v715, 7
          %v772 = vrot.slane %v716, 7
          %v775 = vmul.f32 %v767, %v771
          %v776 = vmul.f32 %v767, %v772
          %v777 = vsub.f32 %v763, %v775
          %v778 = vsub.f32 %v764, %v776
          %779 = vset.pattern.permute.xlu0 7
          %780 = vperm.xlu0 %779, %v468
          %v781 = vpop.permute.xlu0 %780
          %v783 = vmul.f32 %v777, %v781
          %v784 = vmul.f32 %v778, %v781
          %v785 = vsel %vm226, 1, 0
          %vm786 = vcmp.eq.s32.totalorder %v785, 1
          %v787 = vlaneseq
          %v788 = vshrl.u32 %v787, 7
          %v789 = vsub.s32 0, %v788
          %v790 = vrot.slane %v474, %v789
          %v791 = vlaneseq
          %v792 = vshrl.u32 %v791, 7
          %v793 = vsub.s32 0, %v792
          %v794 = vrot.slane %v475, %v793
          %v795 = vsel %vm786, %v790, 0.0
          %v796 = vsel %vm786, %v794, 0.0
          %v797 = vsel %vm259, 1, 0
          %vm798 = vcmp.eq.s32.totalorder %v797, 1
          %v799 = vlaneseq
          %v800 = vshrl.u32 %v799, 7
          %v801 = vsub.s32 1, %v800
          %v802 = vrot.slane %v495, %v801
          %v803 = vlaneseq
          %v804 = vshrl.u32 %v803, 7
          %v805 = vsub.s32 1, %v804
          %v806 = vrot.slane %v496, %v805
          %v807 = vsel %vm798, %v802, %v795
          %v808 = vsel %vm798, %v806, %v796
          %v809 = vsel %vm291, 1, 0
          %vm810 = vcmp.eq.s32.totalorder %v809, 1
          %v811 = vlaneseq
          %v812 = vshrl.u32 %v811, 7
          %v813 = vsub.s32 2, %v812
          %v814 = vrot.slane %v523, %v813
          %v815 = vlaneseq
          %v816 = vshrl.u32 %v815, 7
          %v817 = vsub.s32 2, %v816
          %v818 = vrot.slane %v524, %v817
          %v819 = vsel %vm810, %v814, %v807
          %v820 = vsel %vm810, %v818, %v808
          %v821 = vsel %vm323, 1, 0
          %vm822 = vcmp.eq.s32.totalorder %v821, 1
          %v823 = vlaneseq
          %v824 = vshrl.u32 %v823, 7
          %v825 = vsub.s32 3, %v824
          %v826 = vrot.slane %v559, %v825
          %v827 = vlaneseq
          %v828 = vshrl.u32 %v827, 7
          %v829 = vsub.s32 3, %v828
          %v830 = vrot.slane %v560, %v829
          %v831 = vsel %vm822, %v826, %v819
          %v832 = vsel %vm822, %v830, %v820
          %v833 = vsel %vm355, 1, 0
          %vm834 = vcmp.eq.s32.totalorder %v833, 1
          %v835 = vlaneseq
          %v836 = vshrl.u32 %v835, 7
          %v837 = vsub.s32 4, %v836
          %v838 = vrot.slane %v603, %v837
          %v839 = vlaneseq
          %v840 = vshrl.u32 %v839, 7
          %v841 = vsub.s32 4, %v840
          %v842 = vrot.slane %v604, %v841
          %v843 = vsel %vm834, %v838, %v831
          %v844 = vsel %vm834, %v842, %v832
          %v845 = vsel %vm387, 1, 0
          %vm846 = vcmp.eq.s32.totalorder %v845, 1
          %v847 = vlaneseq
          %v848 = vshrl.u32 %v847, 7
          %v849 = vsub.s32 5, %v848
          %v850 = vrot.slane %v655, %v849
          %v851 = vlaneseq
          %v852 = vshrl.u32 %v851, 7
          %v853 = vsub.s32 5, %v852
          %v854 = vrot.slane %v656, %v853
          %v855 = vsel %vm846, %v850, %v843
          %v856 = vsel %vm846, %v854, %v844
          %v857 = vsel %vm419, 1, 0
          %vm858 = vcmp.eq.s32.totalorder %v857, 1
          %v859 = vlaneseq
          %v860 = vshrl.u32 %v859, 7
          %v861 = vsub.s32 6, %v860
          %v862 = vrot.slane %v715, %v861
          %v863 = vlaneseq
          %v864 = vshrl.u32 %v863, 7
          %v865 = vsub.s32 6, %v864
          %v866 = vrot.slane %v716, %v865
          %v867 = vsel %vm858, %v862, %v855
          %v868 = vsel %vm858, %v866, %v856
          %v869 = vsel %vm451, 1, 0
          %vm870 = vcmp.eq.s32.totalorder %v869, 1
          %v871 = vlaneseq
          %v872 = vshrl.u32 %v871, 7
          %v873 = vsub.s32 7, %v872
          %v874 = vrot.slane %v783, %v873
          %v875 = vlaneseq
          %v876 = vshrl.u32 %v875, 7
          %v877 = vsub.s32 7, %v876
          %v878 = vrot.slane %v784, %v877
          %v879 = vsel %vm870, %v874, %v867
          %v880 = vsel %vm870, %v878, %v868
          %881 = vst [vmem:[%s2] sm:$0xff] %v879
          %882 = vst [vmem:[%s2 + $0x8] sm:$0xff] %v880
        $region40: #{a_call__.4} parent=27 // pred_fallthru
          _
        // Predicated region
        $region41: #{a_call__.4} parent=27 // pred_check
          %p883 = pneg %p74
        $region42: #{a_call__.4} parent=27 // pred_check_branch
          %885 = sbr.rel (%p883) target = $region44
        $region43: #{a_call__.4} parent=27 // pred_region
          _
        $region44: #{a_call__.4} parent=27 // pred_fallthru
          _
        // Predicated region
        $region45: #{a_call__.4} parent=27 // pred_check
          %p886 = pneg %p74
        $region46: #{a_call__.4} parent=27 // pred_check_branch
          %888 = sbr.rel (%p886) target = $region48
        $region47: #{a_call__.4} parent=27 // pred_region
          _
        $region48: #{a_call__.4} parent=27 // pred_fallthru
          _
      $region28: #{a_call__.4} parent=5 // pred_fallthru
        _
      %p889 = scmp.le.s32.totalorder 2, %s9
      // Predicated region
      $region49: #{a_call__.4} parent=5 // pred_check
        %p890 = pneg %p889
      $region50: #{a_call__.4} parent=5 // pred_check_branch
        %892 = sbr.rel (%p890) target = $region52
      $region51: #{a_call__.4} parent=5 // pred_region
        %s893 = ssub.s32 %s9, 2
      $region52: #{a_call__.4} parent=5 // pred_fallthru
        _
    $region6: #{a_call__.4} parent=1 // loop_footer
      %s13 = sadd.s32 1, %s9
    $region7: #{a_call__.4} parent=1 // loop_footer_branch
      %8 = sbr.rel target = $region3
    $region8: #{a_call__.4} parent=1 // loop_exit
      _
    %894 = vsyncpa [#allocation3], 1
    %s895 = scalar_lea.sflag [#allocation3], 1
    %896 = vsyncpa %s895, 1

// kernel: a_call__.3
$region0: #{a_call__.3}
  #allocation0 [shape = 'u32[]', space=smem, size = 0x4, offset = 0x4, fixed_abs, tag = 'smem constant byte address 0x4 - core index']
  #allocation1 [shape = 'u32[144,128]{1,0:T(1,128)}', space=vmem, size = 0x12000, scoped, tag = 'internal scratch']
  %s0 = inlined_call_operand.vmem [shape: bf16[4,8,256], index: 0, kind: input, shape index: {}]
  %s1 = inlined_call_operand.vmem [shape: bf16[4,8,256], index: 1, kind: output, shape index: {}]
  %s2 = sld [smem:[#allocation0]]
  $region37: #{a_call__.3} parent=0
    _
  %s4 = ssub.s32 1, %s2
  %s5 = scalar_select 0, %s4, %s2
  loop: start=0, step=1, limit=6
  $region2: #{a_call__.3} parent=0 // loop_pre_header
    _
  $region3: #{a_call__.3} parent=0 // loop_header
    %s7 = sphi 0, %s11
    %p8 = scmp.ge.s32.totalorder %s7, 6
    %s17 = sphi 0, %s19
    %s20 = sphi 0, %s17
    %s21 = sphi 0, %s20
    %s37 = sphi 0, %s21
    %s43 = sphi 0, %s45
    %s46 = sphi 0, %s43
    %s47 = sphi 0, %s46
    %s63 = sphi 0, %s47
  $region4: #{a_call__.3} parent=0 // loop_header_branch
    %10 = sbr.rel (%p8) target = $region8
  $region5: #{a_call__.3} parent=0 // loop_body
    %s12 = ssub.s32 %s7, 1
    %s13 = ssub.s32 %s7, 2
    %s14 = sadd.s32 %s7, 1
    %s15 = ssub.s32 %s7, %s14
    %p16 = scmp.eq.s32.totalorder %s15, 0
    %s18 = sadd.s32 %s17, 1
    %s19 = scalar_select %p16, %s17, %s18
    %p22 = pneg %p16
    %p23 = scmp.eq.s32.totalorder %s7, 3
    %p24 = por %p22, %p23
    %p25 = scmp.ne.s32.totalorder %s17, %s20
    %p26 = scmp.eq.s32.totalorder %s7, 0
    %p27 = por %p25, %p26
    %p28 = scmp.ne.s32.totalorder %s17, %s20
    %p29 = scmp.eq.s32.totalorder %s12, 3
    %p30 = por %p28, %p29
    %p31 = scmp.ne.s32.totalorder %s20, %s21
    %p32 = scmp.eq.s32.totalorder %s12, 0
    %p33 = por %p31, %p32
    %p34 = scmp.ne.s32.totalorder %s20, %s21
    %p35 = scmp.eq.s32.totalorder %s13, 3
    %p36 = por %p34, %p35
    %p38 = scmp.ne.s32.totalorder %s21, %s37
    %p39 = scmp.eq.s32.totalorder %s13, 0
    %p40 = por %p38, %p39
    %s41 = ssub.s32 %s7, %s14
    %p42 = scmp.eq.s32.totalorder %s41, 0
    %s44 = sadd.s32 %s43, 1
    %s45 = scalar_select %p42, %s43, %s44
    %p48 = pneg %p42
    %p49 = scmp.eq.s32.totalorder %s7, 3
    %p50 = por %p48, %p49
    %p51 = scmp.ne.s32.totalorder %s43, %s46
    %p52 = scmp.eq.s32.totalorder %s7, 0
    %p53 = por %p51, %p52
    %p54 = scmp.ne.s32.totalorder %s43, %s46
    %p55 = scmp.eq.s32.totalorder %s12, 3
    %p56 = por %p54, %p55
    %p57 = scmp.ne.s32.totalorder %s46, %s47
    %p58 = scmp.eq.s32.totalorder %s12, 0
    %p59 = por %p57, %p58
    %p60 = scmp.ne.s32.totalorder %s46, %s47
    %p61 = scmp.eq.s32.totalorder %s13, 3
    %p62 = por %p60, %p61
    %p64 = scmp.ne.s32.totalorder %s47, %s63
    %p65 = scmp.eq.s32.totalorder %s13, 0
    %p66 = por %p64, %p65
    %p67 = scmp.le.s32.totalorder 1, %s7
    %p68 = scmp.lt.s32.totalorder %s7, 5
    %p69 = pnand %p67, %p68
    %p70 = pneg %p69
    // Predicated region
    $region9: #{a_call__.3} parent=5 // pred_check
      _
    $region10: #{a_call__.3} parent=5 // pred_check_branch
      %72 = sbr.rel (%p69) target = $region12
    $region11: #{a_call__.3} parent=5 // pred_region
      %s73 = ssub.s32 %s7, 1
    $region12: #{a_call__.3} parent=5 // pred_fallthru
      _
    %p74 = scmp.lt.s32.totalorder %s7, 4
    // Predicated region
    $region13: #{a_call__.3} parent=5 // pred_check
      %p75 = pneg %p74
    $region14: #{a_call__.3} parent=5 // pred_check_branch
      %77 = sbr.rel (%p75) target = $region16
    $region15: #{a_call__.3} parent=5 // pred_region
      // Predicated region
      $region17: #{a_call__.3} parent=15 // pred_check
        %p78 = pneg %p27
      $region18: #{a_call__.3} parent=15 // pred_check_branch
        %80 = sbr.rel (%p78) target = $region20
      $region19: #{a_call__.3} parent=15 // pred_region
        %p81 = scmp.lt.s32.totalorder %s7, 3
        %s82 = scalar_select %p81, %s7, 3
        %s83 = smul.addr %s82, 2
        %s84 = smul.addr %s83, 4
        %s85 = scalar_lea.vmem %s0, %s84
      $region20: #{a_call__.3} parent=15 // pred_fallthru
        _
    $region16: #{a_call__.3} parent=5 // pred_fallthru
      _
    %p86 = scmp.le.s32.totalorder 1, %s7
    %p87 = scmp.lt.s32.totalorder %s7, 5
    %p88 = pnand %p86, %p87
    %p89 = pneg %p88
    // Predicated region
    $region21: #{a_call__.3} parent=5 // pred_check
      _
    $region22: #{a_call__.3} parent=5 // pred_check_branch
      %91 = sbr.rel (%p88) target = $region24
    $region23: #{a_call__.3} parent=5 // pred_region
      %s92 = ssub.s32 %s7, 1
      %p93 = scmp.lt.s32.totalorder %s12, 3
      %s94 = scalar_select %p93, %s12, 3
      %s95 = smul.addr %s94, 2
      %s96 = smul.addr %s95, 4
      %s97 = scalar_lea.vmem %s0, %s96
      %p98 = pneg %p33
      %p99 = pneg %p30
      %p100 = pneg %p59
      %p101 = pneg %p56
      %p102 = scmp.lt.s32.totalorder %s12, 3
      %s103 = scalar_select %p102, %s12, 3
      %s104 = smul.addr %s103, 2
      %s105 = smul.addr %s104, 4
      %s106 = scalar_lea.vmem %s1, %s105
      %p107 = scmp.lt.s32.totalorder %s12, 3
      %s108 = scalar_select %p107, %s12, 3
      %s109 = smul.addr %s108, 2
      %s110 = smul.addr %s109, 4
      %s111 = scalar_lea.vmem %s0, %s110
      %p112 = scmp.lt.s32.totalorder %s12, 3
      %s113 = scalar_select %p112, %s12, 3
      %s114 = smul.addr %s113, 2
      %s115 = smul.addr %s114, 4
      %s116 = scalar_lea.vmem %s1, %s115
      %v118 = vld [vmem:[%s111] sm:$0xff]
      %v120 = vunpack.c.l.b16 %v118
      %v121 = vunpack.c.h.b16 %v118
      %v122 = vpack.c.b16 %v120, %v120
      %v123 = vpack.c.b16 %v121, %v121
      %126 = vmatprep.subr.bf16.mxu0 %v123
      %127 = vmatpush1.bf16.xpose.msra.mxu0 %v122
      %128 = vmatprep.subr.bf16.mxu0 0
      %129 = vmatpush1.bf16.xpose.msra.mxu0 0
      %130 = vmatprep.subr.bf16.mxu0 0
      %131 = vmatpush1.bf16.xpose.msra.mxu0 0
      %132 = vmatprep.subr.bf16.mxu0 0
      %133 = vmatpush1.bf16.xpose.msra.mxu0 0
      %134 = vmatprep.subr.bf16.mxu0 0
      %135 = vmatpush1.bf16.xpose.msra.mxu0 0
      %136 = vmatprep.subr.bf16.mxu0 0
      %137 = vmatpush1.bf16.xpose.msra.mxu0 0
      %138 = vmatprep.subr.bf16.mxu0 0
      %139 = vmatpush1.bf16.xpose.msra.mxu0 0
      %140 = vmatprep.subr.bf16.mxu0 0
      %141 = vmatpush1.bf16.xpose.msra.mxu0 0
      %142 = vmatprep.subr.bf16.mxu0 0
      %143 = vmatpush1.bf16.xpose.msra.mxu0 0
      %144 = vmatprep.subr.bf16.mxu0 0
      %145 = vmatpush1.bf16.xpose.msra.mxu0 0
      %146 = vmatprep.subr.bf16.mxu0 0
      %147 = vmatpush1.bf16.xpose.msra.mxu0 0
      %148 = vmatprep.subr.bf16.mxu0 0
      %149 = vmatpush1.bf16.xpose.msra.mxu0 0
      %150 = vmatprep.subr.bf16.mxu0 0
      %151 = vmatpush1.bf16.xpose.msra.mxu0 0
      %152 = vmatprep.subr.bf16.mxu0 0
      %153 = vmatpush1.bf16.xpose.msra.mxu0 0
      %154 = vmatprep.subr.bf16.mxu0 0
      %155 = vmatpush1.bf16.xpose.msra.mxu0 0
      %156 = vmatprep.subr.bf16.mxu0 0
      %157 = vmatpush1.bf16.xpose.msra.mxu0 0
      %158 = vmatprep.mubr.bf16.mxu0 %v123
      %159 = vmatmul.mubr.bf16.gmra.mrb[0].mxu0 %v122
      %v160 = vpop.f32.mrb[0].mxu0
      %v161 = vadd.f32 0.0, %v160
      %v162 = vpop.f32.mrb[0].mxu0
      %v163 = vpop.f32.mrb[0].mxu0
      %v164 = vpop.f32.mrb[0].mxu0
      %165 = vdwg.mxu0
      %v166 = vlaneseq
      %v167 = vand.u32 %v166, 127
      %v168 = vlaneseq
      %v169 = vshrl.u32 %v168, 7
      %170 = vadd.xlane.f32.xlu0 0.0
      %v171 = vpop.xlane.xlu0 %170
      %v172 = vsub.f32 %v161, %v171
      %v173 = vadd.f32 %v172, 0.01
      %v174 = vrsqrt.pop %v173
      %v175 = vlaneseq
      %v176 = vshrl.u32 %v175, 7
      %v177 = vsub.s32 0, %v176
      %v178 = vrot.slane %v174, %v177
      %v179 = vmul.f32 %v172, %v178
      %vm180 = vcmp.eq.s32.totalorder %v169, 0
      %v181 = vmul.f32 %v173, %v174
      %v182 = vlaneseq
      %v183 = vshrl.u32 %v182, 7
      %v184 = vsub.s32 0, %v183
      %v185 = vrot.slane %v181, %v184
      %v186 = vsel %vm180, %v185, %v179
      %vm187 = vcmp.ge.s32.totalorder %v169, 0
      %v188 = vsel %vm187, %v186, 0.0
      %vm189 = vcmp.eq.s32.totalorder %v167, 0
      %191 = vset.pattern.permute.xlu0 0
      %192 = vperm.xlu0 %191, %v188
      %v193 = vpop.permute.xlu0 %192
      %v195 = vsel %vm189, %v193, 0.0
      %v196 = vlaneseq
      %v197 = vshrl.u32 %v196, 7
      %v198 = vsub.s32 1, %v197
      %v199 = vrot.slane %v195, %v198
      %v200 = vmul.f32 %v195, %v199
      %vm201 = vcmask 64512
      %v202 = vsel %vm201, %v200, 0.0
      %203 = vadd.xlane.f32.xlu0 %v202
      %v204 = vpop.xlane.xlu0 %203
      %v205 = vsub.f32 %v161, %v204
      %v206 = vadd.f32 %v205, 0.01
      %v207 = vrsqrt.pop %v206
      %v208 = vlaneseq
      %v209 = vshrl.u32 %v208, 7
      %v210 = vsub.s32 1, %v209
      %v211 = vrot.slane %v207, %v210
      %v212 = vmul.f32 %v205, %v211
      %vm213 = vcmp.eq.s32.totalorder %v169, 1
      %v214 = vmul.f32 %v206, %v207
      %v215 = vlaneseq
      %v216 = vshrl.u32 %v215, 7
      %v217 = vsub.s32 1, %v216
      %v218 = vrot.slane %v214, %v217
      %v219 = vsel %vm213, %v218, %v212
      %vm220 = vcmp.ge.s32.totalorder %v169, 1
      %v221 = vsel %vm220, %v219, 0.0
      %vm222 = vcmp.eq.s32.totalorder %v167, 1
      %224 = vset.pattern.permute.xlu0 1
      %225 = vperm.xlu0 %224, %v221
      %v226 = vpop.permute.xlu0 %225
      %v228 = vsel %vm222, %v226, %v195
      %v229 = vlaneseq
      %v230 = vshrl.u32 %v229, 7
      %v231 = vsub.s32 2, %v230
      %v232 = vrot.slane %v228, %v231
      %v233 = vmul.f32 %v228, %v232
      %v234 = vsel %vm201, %v233, 0.0
      %235 = vadd.xlane.f32.xlu0 %v234
      %v236 = vpop.xlane.xlu0 %235
      %v237 = vsub.f32 %v161, %v236
      %v238 = vadd.f32 %v237, 0.01
      %v239 = vrsqrt.pop %v238
      %v240 = vlaneseq
      %v241 = vshrl.u32 %v240, 7
      %v242 = vsub.s32 2, %v241
      %v243 = vrot.slane %v239, %v242
      %v244 = vmul.f32 %v237, %v243
      %vm245 = vcmp.eq.s32.totalorder %v169, 2
      %v246 = vmul.f32 %v238, %v239
      %v247 = vlaneseq
      %v248 = vshrl.u32 %v247, 7
      %v249 = vsub.s32 2, %v248
      %v250 = vrot.slane %v246, %v249
      %v251 = vsel %vm245, %v250, %v244
      %vm252 = vcmp.ge.s32.totalorder %v169, 2
      %v253 = vsel %vm252, %v251, 0.0
      %vm254 = vcmp.eq.s32.totalorder %v167, 2
      %256 = vset.pattern.permute.xlu0 2
      %257 = vperm.xlu0 %256, %v253
      %v258 = vpop.permute.xlu0 %257
      %v260 = vsel %vm254, %v258, %v228
      %v261 = vlaneseq
      %v262 = vshrl.u32 %v261, 7
      %v263 = vsub.s32 3, %v262
      %v264 = vrot.slane %v260, %v263
      %v265 = vmul.f32 %v260, %v264
      %v266 = vsel %vm201, %v265, 0.0
      %267 = vadd.xlane.f32.xlu0 %v266
      %v268 = vpop.xlane.xlu0 %267
      %v269 = vsub.f32 %v161, %v268
      %v270 = vadd.f32 %v269, 0.01
      %v271 = vrsqrt.pop %v270
      %v272 = vlaneseq
      %v273 = vshrl.u32 %v272, 7
      %v274 = vsub.s32 3, %v273
      %v275 = vrot.slane %v271, %v274
      %v276 = vmul.f32 %v269, %v275
      %vm277 = vcmp.eq.s32.totalorder %v169, 3
      %v278 = vmul.f32 %v270, %v271
      %v279 = vlaneseq
      %v280 = vshrl.u32 %v279, 7
      %v281 = vsub.s32 3, %v280
      %v282 = vrot.slane %v278, %v281
      %v283 = vsel %vm277, %v282, %v276
      %vm284 = vcmp.ge.s32.totalorder %v169, 3
      %v285 = vsel %vm284, %v283, 0.0
      %vm286 = vcmp.eq.s32.totalorder %v167, 3
      %288 = vset.pattern.permute.xlu0 3
      %289 = vperm.xlu0 %288, %v285
      %v290 = vpop.permute.xlu0 %289
      %v292 = vsel %vm286, %v290, %v260
      %v293 = vlaneseq
      %v294 = vshrl.u32 %v293, 7
      %v295 = vsub.s32 4, %v294
      %v296 = vrot.slane %v292, %v295
      %v297 = vmul.f32 %v292, %v296
      %v298 = vsel %vm201, %v297, 0.0
      %299 = vadd.xlane.f32.xlu0 %v298
      %v300 = vpop.xlane.xlu0 %299
      %v301 = vsub.f32 %v161, %v300
      %v302 = vadd.f32 %v301, 0.01
      %v303 = vrsqrt.pop %v302
      %v304 = vlaneseq
      %v305 = vshrl.u32 %v304, 7
      %v306 = vsub.s32 4, %v305
      %v307 = vrot.slane %v303, %v306
      %v308 = vmul.f32 %v301, %v307
      %vm309 = vcmp.eq.s32.totalorder %v169, 4
      %v310 = vmul.f32 %v302, %v303
      %v311 = vlaneseq
      %v312 = vshrl.u32 %v311, 7
      %v313 = vsub.s32 4, %v312
      %v314 = vrot.slane %v310, %v313
      %v315 = vsel %vm309, %v314, %v308
      %vm316 = vcmp.ge.s32.totalorder %v169, 4
      %v317 = vsel %vm316, %v315, 0.0
      %vm318 = vcmp.eq.s32.totalorder %v167, 4
      %320 = vset.pattern.permute.xlu0 4
      %321 = vperm.xlu0 %320, %v317
      %v322 = vpop.permute.xlu0 %321
      %v324 = vsel %vm318, %v322, %v292
      %v325 = vlaneseq
      %v326 = vshrl.u32 %v325, 7
      %v327 = vsub.s32 5, %v326
      %v328 = vrot.slane %v324, %v327
      %v329 = vmul.f32 %v324, %v328
      %v330 = vsel %vm201, %v329, 0.0
      %331 = vadd.xlane.f32.xlu0 %v330
      %v332 = vpop.xlane.xlu0 %331
      %v333 = vsub.f32 %v161, %v332
      %v334 = vadd.f32 %v333, 0.01
      %v335 = vrsqrt.pop %v334
      %v336 = vlaneseq
      %v337 = vshrl.u32 %v336, 7
      %v338 = vsub.s32 5, %v337
      %v339 = vrot.slane %v335, %v338
      %v340 = vmul.f32 %v333, %v339
      %vm341 = vcmp.eq.s32.totalorder %v169, 5
      %v342 = vmul.f32 %v334, %v335
      %v343 = vlaneseq
      %v344 = vshrl.u32 %v343, 7
      %v345 = vsub.s32 5, %v344
      %v346 = vrot.slane %v342, %v345
      %v347 = vsel %vm341, %v346, %v340
      %vm348 = vcmp.ge.s32.totalorder %v169, 5
      %v349 = vsel %vm348, %v347, 0.0
      %vm350 = vcmp.eq.s32.totalorder %v167, 5
      %352 = vset.pattern.permute.xlu0 5
      %353 = vperm.xlu0 %352, %v349
      %v354 = vpop.permute.xlu0 %353
      %v356 = vsel %vm350, %v354, %v324
      %v357 = vlaneseq
      %v358 = vshrl.u32 %v357, 7
      %v359 = vsub.s32 6, %v358
      %v360 = vrot.slane %v356, %v359
      %v361 = vmul.f32 %v356, %v360
      %v362 = vsel %vm201, %v361, 0.0
      %363 = vadd.xlane.f32.xlu0 %v362
      %v364 = vpop.xlane.xlu0 %363
      %v365 = vsub.f32 %v161, %v364
      %v366 = vadd.f32 %v365, 0.01
      %v367 = vrsqrt.pop %v366
      %v368 = vlaneseq
      %v369 = vshrl.u32 %v368, 7
      %v370 = vsub.s32 6, %v369
      %v371 = vrot.slane %v367, %v370
      %v372 = vmul.f32 %v365, %v371
      %vm373 = vcmp.eq.s32.totalorder %v169, 6
      %v374 = vmul.f32 %v366, %v367
      %v375 = vlaneseq
      %v376 = vshrl.u32 %v375, 7
      %v377 = vsub.s32 6, %v376
      %v378 = vrot.slane %v374, %v377
      %v379 = vsel %vm373, %v378, %v372
      %vm380 = vcmp.ge.s32.totalorder %v169, 6
      %v381 = vsel %vm380, %v379, 0.0
      %vm382 = vcmp.eq.s32.totalorder %v167, 6
      %384 = vset.pattern.permute.xlu0 6
      %385 = vperm.xlu0 %384, %v381
      %v386 = vpop.permute.xlu0 %385
      %v388 = vsel %vm382, %v386, %v356
      %v389 = vlaneseq
      %v390 = vshrl.u32 %v389, 7
      %v391 = vsub.s32 7, %v390
      %v392 = vrot.slane %v388, %v391
      %v393 = vmul.f32 %v388, %v392
      %v394 = vsel %vm201, %v393, 0.0
      %395 = vadd.xlane.f32.xlu0 %v394
      %v396 = vpop.xlane.xlu0 %395
      %v397 = vsub.f32 %v161, %v396
      %v398 = vadd.f32 %v397, 0.01
      %v399 = vrsqrt.pop %v398
      %v400 = vlaneseq
      %v401 = vshrl.u32 %v400, 7
      %v402 = vsub.s32 7, %v401
      %v403 = vrot.slane %v399, %v402
      %v404 = vmul.f32 %v397, %v403
      %vm405 = vcmp.eq.s32.totalorder %v169, 7
      %v406 = vmul.f32 %v398, %v399
      %v407 = vlaneseq
      %v408 = vshrl.u32 %v407, 7
      %v409 = vsub.s32 7, %v408
      %v410 = vrot.slane %v406, %v409
      %v411 = vsel %vm405, %v410, %v404
      %vm412 = vcmp.ge.s32.totalorder %v169, 7
      %v413 = vsel %vm412, %v411, 0.0
      %vm414 = vcmp.eq.s32.totalorder %v167, 7
      %416 = vset.pattern.permute.xlu0 7
      %417 = vperm.xlu0 %416, %v413
      %v418 = vpop.permute.xlu0 %417
      %v420 = vsel %vm414, %v418, %v388
      %v421 = vunpack.c.l.bf16 %v118
      %v422 = vunpack.c.h.bf16 %v118
      %v423 = vrcp.pop %v420
      %v424 = vmul.f32 1.0, %v423
      %426 = vset.pattern.permute.xlu0 0
      %427 = vperm.xlu0 %426, %v424
      %v428 = vpop.permute.xlu0 %427
      %v430 = vmul.f32 %v421, %v428
      %v431 = vmul.f32 %v422, %v428
      %433 = vset.pattern.permute.xlu0 0
      %434 = vperm.xlu0 %433, %v420
      %v435 = vpop.permute.xlu0 %434
      %v439 = vrot.slane %v430, 7
      %v440 = vrot.slane %v431, 7
      %v443 = vmul.f32 %v435, %v439
      %v444 = vmul.f32 %v435, %v440
      %v445 = vsub.f32 %v421, %v443
      %v446 = vsub.f32 %v422, %v444
      %447 = vset.pattern.permute.xlu0 1
      %448 = vperm.xlu0 %447, %v424
      %v449 = vpop.permute.xlu0 %448
      %v451 = vmul.f32 %v445, %v449
      %v452 = vmul.f32 %v446, %v449
      %v453 = vrot.slane %v430, 6
      %v454 = vrot.slane %v431, 6
      %v457 = vmul.f32 %v435, %v453
      %v458 = vmul.f32 %v435, %v454
      %v459 = vsub.f32 %v421, %v457
      %v460 = vsub.f32 %v422, %v458
      %461 = vset.pattern.permute.xlu0 1
      %462 = vperm.xlu0 %461, %v420
      %v463 = vpop.permute.xlu0 %462
      %v467 = vrot.slane %v451, 7
      %v468 = vrot.slane %v452, 7
      %v471 = vmul.f32 %v463, %v467
      %v472 = vmul.f32 %v463, %v468
      %v473 = vsub.f32 %v459, %v471
      %v474 = vsub.f32 %v460, %v472
      %475 = vset.pattern.permute.xlu0 2
      %476 = vperm.xlu0 %475, %v424
      %v477 = vpop.permute.xlu0 %476
      %v479 = vmul.f32 %v473, %v477
      %v480 = vmul.f32 %v474, %v477
      %v481 = vrot.slane %v430, 5
      %v482 = vrot.slane %v431, 5
      %v485 = vmul.f32 %v435, %v481
      %v486 = vmul.f32 %v435, %v482
      %v487 = vsub.f32 %v421, %v485
      %v488 = vsub.f32 %v422, %v486
      %v489 = vrot.slane %v451, 6
      %v490 = vrot.slane %v452, 6
      %v493 = vmul.f32 %v463, %v489
      %v494 = vmul.f32 %v463, %v490
      %v495 = vsub.f32 %v487, %v493
      %v496 = vsub.f32 %v488, %v494
      %497 = vset.pattern.permute.xlu0 2
      %498 = vperm.xlu0 %497, %v420
      %v499 = vpop.permute.xlu0 %498
      %v503 = vrot.slane %v479, 7
      %v504 = vrot.slane %v480, 7
      %v507 = vmul.f32 %v499, %v503
      %v508 = vmul.f32 %v499, %v504
      %v509 = vsub.f32 %v495, %v507
      %v510 = vsub.f32 %v496, %v508
      %511 = vset.pattern.permute.xlu0 3
      %512 = vperm.xlu0 %511, %v424
      %v513 = vpop.permute.xlu0 %512
      %v515 = vmul.f32 %v509, %v513
      %v516 = vmul.f32 %v510, %v513
      %v517 = vrot.slane %v430, 4
      %v518 = vrot.slane %v431, 4
      %v521 = vmul.f32 %v435, %v517
      %v522 = vmul.f32 %v435, %v518
      %v523 = vsub.f32 %v421, %v521
      %v524 = vsub.f32 %v422, %v522
      %v525 = vrot.slane %v451, 5
      %v526 = vrot.slane %v452, 5
      %v529 = vmul.f32 %v463, %v525
      %v530 = vmul.f32 %v463, %v526
      %v531 = vsub.f32 %v523, %v529
      %v532 = vsub.f32 %v524, %v530
      %v533 = vrot.slane %v479, 6
      %v534 = vrot.slane %v480, 6
      %v537 = vmul.f32 %v499, %v533
      %v538 = vmul.f32 %v499, %v534
      %v539 = vsub.f32 %v531, %v537
      %v540 = vsub.f32 %v532, %v538
      %541 = vset.pattern.permute.xlu0 3
      %542 = vperm.xlu0 %541, %v420
      %v543 = vpop.permute.xlu0 %542
      %v547 = vrot.slane %v515, 7
      %v548 = vrot.slane %v516, 7
      %v551 = vmul.f32 %v543, %v547
      %v552 = vmul.f32 %v543, %v548
      %v553 = vsub.f32 %v539, %v551
      %v554 = vsub.f32 %v540, %v552
      %555 = vset.pattern.permute.xlu0 4
      %556 = vperm.xlu0 %555, %v424
      %v557 = vpop.permute.xlu0 %556
      %v559 = vmul.f32 %v553, %v557
      %v560 = vmul.f32 %v554, %v557
      %v561 = vrot.slane %v430, 3
      %v562 = vrot.slane %v431, 3
      %v565 = vmul.f32 %v435, %v561
      %v566 = vmul.f32 %v435, %v562
      %v567 = vsub.f32 %v421, %v565
      %v568 = vsub.f32 %v422, %v566
      %v569 = vrot.slane %v451, 4
      %v570 = vrot.slane %v452, 4
      %v573 = vmul.f32 %v463, %v569
      %v574 = vmul.f32 %v463, %v570
      %v575 = vsub.f32 %v567, %v573
      %v576 = vsub.f32 %v568, %v574
      %v577 = vrot.slane %v479, 5
      %v578 = vrot.slane %v480, 5
      %v581 = vmul.f32 %v499, %v577
      %v582 = vmul.f32 %v499, %v578
      %v583 = vsub.f32 %v575, %v581
      %v584 = vsub.f32 %v576, %v582
      %v585 = vrot.slane %v515, 6
      %v586 = vrot.slane %v516, 6
      %v589 = vmul.f32 %v543, %v585
      %v590 = vmul.f32 %v543, %v586
      %v591 = vsub.f32 %v583, %v589
      %v592 = vsub.f32 %v584, %v590
      %593 = vset.pattern.permute.xlu0 4
      %594 = vperm.xlu0 %593, %v420
      %v595 = vpop.permute.xlu0 %594
      %v599 = vrot.slane %v559, 7
      %v600 = vrot.slane %v560, 7
      %v603 = vmul.f32 %v595, %v599
      %v604 = vmul.f32 %v595, %v600
      %v605 = vsub.f32 %v591, %v603
      %v606 = vsub.f32 %v592, %v604
      %607 = vset.pattern.permute.xlu0 5
      %608 = vperm.xlu0 %607, %v424
      %v609 = vpop.permute.xlu0 %608
      %v611 = vmul.f32 %v605, %v609
      %v612 = vmul.f32 %v606, %v609
      %v613 = vrot.slane %v430, 2
      %v614 = vrot.slane %v431, 2
      %v617 = vmul.f32 %v435, %v613
      %v618 = vmul.f32 %v435, %v614
      %v619 = vsub.f32 %v421, %v617
      %v620 = vsub.f32 %v422, %v618
      %v621 = vrot.slane %v451, 3
      %v622 = vrot.slane %v452, 3
      %v625 = vmul.f32 %v463, %v621
      %v626 = vmul.f32 %v463, %v622
      %v627 = vsub.f32 %v619, %v625
      %v628 = vsub.f32 %v620, %v626
      %v629 = vrot.slane %v479, 4
      %v630 = vrot.slane %v480, 4
      %v633 = vmul.f32 %v499, %v629
      %v634 = vmul.f32 %v499, %v630
      %v635 = vsub.f32 %v627, %v633
      %v636 = vsub.f32 %v628, %v634
      %v637 = vrot.slane %v515, 5
      %v638 = vrot.slane %v516, 5
      %v641 = vmul.f32 %v543, %v637
      %v642 = vmul.f32 %v543, %v638
      %v643 = vsub.f32 %v635, %v641
      %v644 = vsub.f32 %v636, %v642
      %v645 = vrot.slane %v559, 6
      %v646 = vrot.slane %v560, 6
      %v649 = vmul.f32 %v595, %v645
      %v650 = vmul.f32 %v595, %v646
      %v651 = vsub.f32 %v643, %v649
      %v652 = vsub.f32 %v644, %v650
      %653 = vset.pattern.permute.xlu0 5
      %654 = vperm.xlu0 %653, %v420
      %v655 = vpop.permute.xlu0 %654
      %v659 = vrot.slane %v611, 7
      %v660 = vrot.slane %v612, 7
      %v663 = vmul.f32 %v655, %v659
      %v664 = vmul.f32 %v655, %v660
      %v665 = vsub.f32 %v651, %v663
      %v666 = vsub.f32 %v652, %v664
      %667 = vset.pattern.permute.xlu0 6
      %668 = vperm.xlu0 %667, %v424
      %v669 = vpop.permute.xlu0 %668
      %v671 = vmul.f32 %v665, %v669
      %v672 = vmul.f32 %v666, %v669
      %v673 = vrot.slane %v430, 1
      %v674 = vrot.slane %v431, 1
      %v677 = vmul.f32 %v435, %v673
      %v678 = vmul.f32 %v435, %v674
      %v679 = vsub.f32 %v421, %v677
      %v680 = vsub.f32 %v422, %v678
      %v681 = vrot.slane %v451, 2
      %v682 = vrot.slane %v452, 2
      %v685 = vmul.f32 %v463, %v681
      %v686 = vmul.f32 %v463, %v682
      %v687 = vsub.f32 %v679, %v685
      %v688 = vsub.f32 %v680, %v686
      %v689 = vrot.slane %v479, 3
      %v690 = vrot.slane %v480, 3
      %v693 = vmul.f32 %v499, %v689
      %v694 = vmul.f32 %v499, %v690
      %v695 = vsub.f32 %v687, %v693
      %v696 = vsub.f32 %v688, %v694
      %v697 = vrot.slane %v515, 4
      %v698 = vrot.slane %v516, 4
      %v701 = vmul.f32 %v543, %v697
      %v702 = vmul.f32 %v543, %v698
      %v703 = vsub.f32 %v695, %v701
      %v704 = vsub.f32 %v696, %v702
      %v705 = vrot.slane %v559, 5
      %v706 = vrot.slane %v560, 5
      %v709 = vmul.f32 %v595, %v705
      %v710 = vmul.f32 %v595, %v706
      %v711 = vsub.f32 %v703, %v709
      %v712 = vsub.f32 %v704, %v710
      %v713 = vrot.slane %v611, 6
      %v714 = vrot.slane %v612, 6
      %v717 = vmul.f32 %v655, %v713
      %v718 = vmul.f32 %v655, %v714
      %v719 = vsub.f32 %v711, %v717
      %v720 = vsub.f32 %v712, %v718
      %721 = vset.pattern.permute.xlu0 6
      %722 = vperm.xlu0 %721, %v420
      %v723 = vpop.permute.xlu0 %722
      %v727 = vrot.slane %v671, 7
      %v728 = vrot.slane %v672, 7
      %v731 = vmul.f32 %v723, %v727
      %v732 = vmul.f32 %v723, %v728
      %v733 = vsub.f32 %v719, %v731
      %v734 = vsub.f32 %v720, %v732
      %735 = vset.pattern.permute.xlu0 7
      %736 = vperm.xlu0 %735, %v424
      %v737 = vpop.permute.xlu0 %736
      %v739 = vmul.f32 %v733, %v737
      %v740 = vmul.f32 %v734, %v737
      %v741 = vsel %vm180, 1, 0
      %vm742 = vcmp.eq.s32.totalorder %v741, 1
      %v743 = vlaneseq
      %v744 = vshrl.u32 %v743, 7
      %v745 = vsub.s32 0, %v744
      %v746 = vrot.slane %v430, %v745
      %v747 = vlaneseq
      %v748 = vshrl.u32 %v747, 7
      %v749 = vsub.s32 0, %v748
      %v750 = vrot.slane %v431, %v749
      %v751 = vsel %vm742, %v746, 0.0
      %v752 = vsel %vm742, %v750, 0.0
      %v753 = vsel %vm213, 1, 0
      %vm754 = vcmp.eq.s32.totalorder %v753, 1
      %v755 = vlaneseq
      %v756 = vshrl.u32 %v755, 7
      %v757 = vsub.s32 1, %v756
      %v758 = vrot.slane %v451, %v757
      %v759 = vlaneseq
      %v760 = vshrl.u32 %v759, 7
      %v761 = vsub.s32 1, %v760
      %v762 = vrot.slane %v452, %v761
      %v763 = vsel %vm754, %v758, %v751
      %v764 = vsel %vm754, %v762, %v752
      %v765 = vsel %vm245, 1, 0
      %vm766 = vcmp.eq.s32.totalorder %v765, 1
      %v767 = vlaneseq
      %v768 = vshrl.u32 %v767, 7
      %v769 = vsub.s32 2, %v768
      %v770 = vrot.slane %v479, %v769
      %v771 = vlaneseq
      %v772 = vshrl.u32 %v771, 7
      %v773 = vsub.s32 2, %v772
      %v774 = vrot.slane %v480, %v773
      %v775 = vsel %vm766, %v770, %v763
      %v776 = vsel %vm766, %v774, %v764
      %v777 = vsel %vm277, 1, 0
      %vm778 = vcmp.eq.s32.totalorder %v777, 1
      %v779 = vlaneseq
      %v780 = vshrl.u32 %v779, 7
      %v781 = vsub.s32 3, %v780
      %v782 = vrot.slane %v515, %v781
      %v783 = vlaneseq
      %v784 = vshrl.u32 %v783, 7
      %v785 = vsub.s32 3, %v784
      %v786 = vrot.slane %v516, %v785
      %v787 = vsel %vm778, %v782, %v775
      %v788 = vsel %vm778, %v786, %v776
      %v789 = vsel %vm309, 1, 0
      %vm790 = vcmp.eq.s32.totalorder %v789, 1
      %v791 = vlaneseq
      %v792 = vshrl.u32 %v791, 7
      %v793 = vsub.s32 4, %v792
      %v794 = vrot.slane %v559, %v793
      %v795 = vlaneseq
      %v796 = vshrl.u32 %v795, 7
      %v797 = vsub.s32 4, %v796
      %v798 = vrot.slane %v560, %v797
      %v799 = vsel %vm790, %v794, %v787
      %v800 = vsel %vm790, %v798, %v788
      %v801 = vsel %vm341, 1, 0
      %vm802 = vcmp.eq.s32.totalorder %v801, 1
      %v803 = vlaneseq
      %v804 = vshrl.u32 %v803, 7
      %v805 = vsub.s32 5, %v804
      %v806 = vrot.slane %v611, %v805
      %v807 = vlaneseq
      %v808 = vshrl.u32 %v807, 7
      %v809 = vsub.s32 5, %v808
      %v810 = vrot.slane %v612, %v809
      %v811 = vsel %vm802, %v806, %v799
      %v812 = vsel %vm802, %v810, %v800
      %v813 = vsel %vm373, 1, 0
      %vm814 = vcmp.eq.s32.totalorder %v813, 1
      %v815 = vlaneseq
      %v816 = vshrl.u32 %v815, 7
      %v817 = vsub.s32 6, %v816
      %v818 = vrot.slane %v671, %v817
      %v819 = vlaneseq
      %v820 = vshrl.u32 %v819, 7
      %v821 = vsub.s32 6, %v820
      %v822 = vrot.slane %v672, %v821
      %v823 = vsel %vm814, %v818, %v811
      %v824 = vsel %vm814, %v822, %v812
      %v825 = vsel %vm405, 1, 0
      %vm826 = vcmp.eq.s32.totalorder %v825, 1
      %v827 = vlaneseq
      %v828 = vshrl.u32 %v827, 7
      %v829 = vsub.s32 7, %v828
      %v830 = vrot.slane %v739, %v829
      %v831 = vlaneseq
      %v832 = vshrl.u32 %v831, 7
      %v833 = vsub.s32 7, %v832
      %v834 = vrot.slane %v740, %v833
      %v835 = vsel %vm826, %v830, %v823
      %v836 = vsel %vm826, %v834, %v824
      %v837 = vpack.c.bf16 %v835, %v835
      %v838 = vpack.c.bf16 %v836, %v836
      %v841 = vunpack.c.l.b16 %v837
      %v842 = vunpack.c.l.b16 %v838
      %v843 = vpack.c.b16 %v842, %v841
      %845 = vst [vmem:[%s116] sm:$0xff] %v843
      %p846 = scmp.lt.s32.totalorder %s12, 3
      %s847 = scalar_select %p846, %s12, 3
      %s848 = smul.addr %s847, 2
      %s849 = smul.addr %s848, 4
      %s850 = scalar_lea.vmem %s1, %s849
      // Predicated region
      $region25: #{a_call__.3} parent=23 // pred_check
        %p851 = pneg %p56
      $region26: #{a_call__.3} parent=23 // pred_check_branch
        %853 = sbr.rel (%p851) target = $region28
      $region27: #{a_call__.3} parent=23 // pred_region
        _
      $region28: #{a_call__.3} parent=23 // pred_fallthru
        _
    $region24: #{a_call__.3} parent=5 // pred_fallthru
      _
    %p854 = scmp.le.s32.totalorder 2, %s7
    // Predicated region
    $region29: #{a_call__.3} parent=5 // pred_check
      %p855 = pneg %p854
    $region30: #{a_call__.3} parent=5 // pred_check_branch
      %857 = sbr.rel (%p855) target = $region32
    $region31: #{a_call__.3} parent=5 // pred_region
      %s858 = ssub.s32 %s7, 2
      // Predicated region
      $region33: #{a_call__.3} parent=31 // pred_check
        %p859 = pneg %p62
      $region34: #{a_call__.3} parent=31 // pred_check_branch
        %861 = sbr.rel (%p859) target = $region36
      $region35: #{a_call__.3} parent=31 // pred_region
        %p862 = scmp.lt.s32.totalorder %s13, 3
        %s863 = scalar_select %p862, %s13, 3
        %s864 = smul.addr %s863, 2
        %s865 = smul.addr %s864, 4
        %s866 = scalar_lea.vmem %s1, %s865
      $region36: #{a_call__.3} parent=31 // pred_fallthru
        _
    $region32: #{a_call__.3} parent=5 // pred_fallthru
      _
  $region6: #{a_call__.3} parent=0 // loop_footer
    %s11 = sadd.s32 1, %s7
  $region7: #{a_call__.3} parent=0 // loop_footer_branch
    %6 = sbr.rel target = $region3
  $region8: #{a_call__.3} parent=0 // loop_exit
    _

</llo_original>
